<compile_context>
chip_gen: v6e
topology: v6e:2x2x1
jax: 0.10.0
libtpu: 0.0.40
codegen_flags: <defaults>
</compile_context>

<pallas_src>
import functools

import jax
import jax.numpy as jnp
from jax import lax
from jax.experimental import pallas as pl
from jax.experimental.pallas import tpu as pltpu

_ROW_TILE_LN = 1024   # row tile for weight-free elementwise/LN kernels
_ROW_TILE_MM = 256    # row tile for weight-pinning matmul kernels
_CHUNK = 64           # time-chunk length for the linear-attention recurrence

_ROW = lambda i: (i, 0)
_PIN2 = lambda i: (0, 0)
_PIN3 = lambda i: (0, 0, 0)

_VMEM_LIMIT = 64 * 1024 * 1024


# ----------------------------------------------------------------------------
# small helpers
# ----------------------------------------------------------------------------
def _row_tiling(m, max_tile):
    """Pick a row tile; prefer divisors of m (multiples of 8) to avoid padding."""
    if m <= max_tile:
        return m, 1, m
    t = max_tile
    while t >= 8:
        if m % t == 0:
            return t, m // t, m
        t -= 8
    nt = -(-m // max_tile)
    return max_tile, nt, nt * max_tile


def _pad_rows(x, mp):
    m = x.shape[0]
    return x if m == mp else jnp.pad(x, ((0, mp - m), (0, 0)))


def _ln(x, w, b, eps):
    mu = jnp.mean(x, axis=-1, keepdims=True)
    xc = x - mu
    var = jnp.mean(xc * xc, axis=-1, keepdims=True)
    return xc * lax.rsqrt(var + eps) * w + b


def token_shift(x3):  # nn.ZeroPad2d((0, 0, 1, -1)) on (B, T, C)
    # TODO(synk): could be fused into the consuming kernels with a carried last-row
    # scratch (grid (B, nT) "arbitrary" over T) to avoid this XLA pad round-trip.
    b, t, c = x3.shape
    return jnp.pad(x3, ((0, 0), (1, 0), (0, 0)))[:, :t]


# ----------------------------------------------------------------------------
# Kernel 1: fused pre_norm + attn_norm  (x -> residual f32, hidden bf16)
# ----------------------------------------------------------------------------
def _double_ln_kernel(x_ref, w1_ref, b1_ref, w2_ref, b2_ref, res_ref, hid_ref, *, eps):
    res = _ln(x_ref[...], w1_ref[...], b1_ref[...], eps)
    res_ref[...] = res
    hid_ref[...] = _ln(res, w2_ref[...], b2_ref[...], eps).astype(hid_ref.dtype)


def double_layernorm(x, w1, b1, w2, b2, eps=1e-5):
    m, c = x.shape
    tm, nt, mp = _row_tiling(m, _ROW_TILE_LN)
    res, hid = pl.pallas_call(
        functools.partial(_double_ln_kernel, eps=eps),
        out_shape=(jax.ShapeDtypeStruct((mp, c), jnp.float32),
                   jax.ShapeDtypeStruct((mp, c), jnp.bfloat16)),
        grid=(nt,),
        in_specs=[pl.BlockSpec((tm, c), _ROW)] + [pl.BlockSpec((1, c), _PIN2)] * 4,
        out_specs=(pl.BlockSpec((tm, c), _ROW), pl.BlockSpec((tm, c), _ROW)),
        compiler_params=pltpu.CompilerParams(dimension_semantics=("parallel",)),
    )(_pad_rows(x, mp), w1.reshape(1, c), b1.reshape(1, c),
      w2.reshape(1, c), b2.reshape(1, c))
    return res[:m], hid[:m]


# ----------------------------------------------------------------------------
# Kernel 2: fused residual add + LayerNorm  (a, b -> a+b f32, LN(a+b) bf16)
# ----------------------------------------------------------------------------
def _add_ln_kernel(a_ref, b_ref, w_ref, bb_ref, s_ref, ln_ref, *, eps):
    s = a_ref[...] + b_ref[...]
    s_ref[...] = s
    ln_ref[...] = _ln(s, w_ref[...], bb_ref[...], eps).astype(ln_ref.dtype)


def add_layernorm(a, b, w, bias, eps=1e-5):
    m, c = a.shape
    tm, nt, mp = _row_tiling(m, _ROW_TILE_LN)
    s, ln = pl.pallas_call(
        functools.partial(_add_ln_kernel, eps=eps),
        out_shape=(jax.ShapeDtypeStruct((mp, c), jnp.float32),
                   jax.ShapeDtypeStruct((mp, c), jnp.bfloat16)),
        grid=(nt,),
        in_specs=[pl.BlockSpec((tm, c), _ROW), pl.BlockSpec((tm, c), _ROW),
                  pl.BlockSpec((1, c), _PIN2), pl.BlockSpec((1, c), _PIN2)],
        out_specs=(pl.BlockSpec((tm, c), _ROW), pl.BlockSpec((tm, c), _ROW)),
        compiler_params=pltpu.CompilerParams(dimension_semantics=("parallel",)),
    )(_pad_rows(a, mp), _pad_rows(b, mp), w.reshape(1, c), bias.reshape(1, c))
    return s[:m], ln[:m]


# ----------------------------------------------------------------------------
# Kernel 3: fused RWKV6 attention projections
#   x1 = tanh((h + d*x_mu) @ W1);  mix_n = x1[:, n] @ W2[n] + x_bias[n]
#   r/k/v/g = (h + d*mix_*) @ W_*;  w = -exp(tanh((h + d*mix_w) @ Wa) @ Wb + b)
# ----------------------------------------------------------------------------
def _attn_proj_kernel(h_ref, d_ref, xmu_ref, xw1_ref, xw2_ref, xb_ref,
                      wr_ref, wk_ref, wv_ref, wg_ref, wwa_ref, wwb_ref, wwbias_ref,
                      r_ref, k_ref, v_ref, g_ref, w_ref, *, plr):
    h = h_ref[...].astype(jnp.float32)
    d = d_ref[...].astype(jnp.float32)
    bf16 = jnp.bfloat16

    x1 = jnp.tanh(jnp.dot((h + d * xmu_ref[...]).astype(bf16), xw1_ref[...],
                          preferred_element_type=jnp.float32))            # (TM, 5*plr)

    def mix(n):
        xn = x1[:, n * plr:(n + 1) * plr].astype(bf16)
        return jnp.dot(xn, xw2_ref[n], preferred_element_type=jnp.float32) + xb_ref[n]

    mr, mw, mk, mv, mg = [mix(n) for n in range(5)]

    def proj(mixv, w):
        return jnp.dot((h + d * mixv).astype(bf16), w,
                       preferred_element_type=jnp.float32)

    r_ref[...] = proj(mr, wr_ref[...]).astype(r_ref.dtype)
    k_ref[...] = proj(mk, wk_ref[...]).astype(k_ref.dtype)
    v_ref[...] = proj(mv, wv_ref[...]).astype(v_ref.dtype)
    g_ref[...] = proj(mg, wg_ref[...]).astype(g_ref.dtype)
    wlo = jnp.tanh(proj(mw, wwa_ref[...]))
    wlin = jnp.dot(wlo.astype(bf16), wwb_ref[...],
                   preferred_element_type=jnp.float32) + wwbias_ref[...]
    w_ref[...] = -jnp.exp(wlin)                                           # log-decay <= 0
    # TODO(synk): RWKV6Config.gate_bound clamp not applied (custom param, semantics unclear).


def attn_projections(hidden, delta, p):
    # TODO(synk): for multi-thousand-wide models, tile the N (output) dim of the
    # r/k/v/g/w weights over an extra grid axis instead of pinning full weights.
    m, c = hidden.shape
    kd = p["w_r"].shape[1]
    vd = p["w_v"].shape[1]
    plr = p["x_w2"].shape[1]
    glr = p["w_w_a"].shape[1]
    tm, nt, mp = _row_tiling(m, _ROW_TILE_MM)
    bf = lambda a: a.astype(jnp.bfloat16)

    outs = pl.pallas_call(
        functools.partial(_attn_proj_kernel, plr=plr),
        out_shape=(jax.ShapeDtypeStruct((mp, kd), jnp.bfloat16),
                   jax.ShapeDtypeStruct((mp, kd), jnp.bfloat16),
                   jax.ShapeDtypeStruct((mp, vd), jnp.bfloat16),
                   jax.ShapeDtypeStruct((mp, vd), jnp.bfloat16),
                   jax.ShapeDtypeStruct((mp, kd), jnp.float32)),
        grid=(nt,),
        in_specs=[
            pl.BlockSpec((tm, c), _ROW),              # hidden (bf16)
            pl.BlockSpec((tm, c), _ROW),              # delta  (bf16)
            pl.BlockSpec((1, c), _PIN2),              # x_mu
            pl.BlockSpec((c, 5 * plr), _PIN2),        # x_w1
            pl.BlockSpec((5, plr, c), _PIN3),         # x_w2
            pl.BlockSpec((5, 1, c), _PIN3),           # x_bias
            pl.BlockSpec((c, kd), _PIN2),             # w_r
            pl.BlockSpec((c, kd), _PIN2),             # w_k
            pl.BlockSpec((c, vd), _PIN2),             # w_v
            pl.BlockSpec((c, vd), _PIN2),             # w_g
            pl.BlockSpec((c, glr), _PIN2),            # w_w_a
            pl.BlockSpec((glr, kd), _PIN2),           # w_w_b
            pl.BlockSpec((1, kd), _PIN2),             # w_w_bias
        ],
        out_specs=(pl.BlockSpec((tm, kd), _ROW), pl.BlockSpec((tm, kd), _ROW),
                   pl.BlockSpec((tm, vd), _ROW), pl.BlockSpec((tm, vd), _ROW),
                   pl.BlockSpec((tm, kd), _ROW)),
        compiler_params=pltpu.CompilerParams(dimension_semantics=("parallel",),
                                             vmem_limit_bytes=_VMEM_LIMIT),
    )(_pad_rows(hidden, mp), _pad_rows(delta, mp),
      p["x_mu"].reshape(1, c), bf(p["x_w1"]), bf(p["x_w2"]),
      p["x_bias"].reshape(5, 1, c),
      bf(p["w_r"]), bf(p["w_k"]), bf(p["w_v"]), bf(p["w_g"]),
      bf(p["w_w_a"]), bf(p["w_w_b"]), p["w_w_bias"].reshape(1, kd))
    r, k, v, g, w = (o[:m] for o in outs)
    return r, k, v, g, w


# ----------------------------------------------------------------------------
# Kernel 4: chunked RWKV6 linear-attention recurrence (fused_recurrent_rwkv6 semantics)
#   per head, per step:  o_t = q_t (h_{t-1} + diag(u) k_t v_t^T)
#                        h_t = diag(exp(w_t)) h_{t-1} + k_t v_t^T    (w_t <= 0)
#   Chunked form (L timesteps, heads folded into the kernel, state (H, Dv, Dk) in VMEM):
#     a_inc = cumsum(w), a_exc = a_inc - w, a_tot = sum(w), half = a_tot/2
#     o_intra = tril_strict(qs @ ks^T) @ v + (q.u.k) * v      qs = q*exp(a_exc - half)
#     o_inter = (qs*exp(half)) . h_prev                       ks = k*exp(half - a_inc)
#     h_new   = exp(a_tot)*h_prev + v^T (ks*exp(half))
#   All matmuls use bf16 operands with f32 accumulation; the state stays f32.
# ----------------------------------------------------------------------------
def _rwkv6_chunk_kernel(r_ref, k_ref, v_ref, w_ref, u_ref, o_ref, hT_ref, h_scr,
                        *, H, Dk, Dv):
    c = pl.program_id(1)

    @pl.when(c == 0)
    def _():
        h_scr[...] = jnp.zeros_like(h_scr)

    L = r_ref.shape[1]
    bf16 = jnp.bfloat16
    q2 = r_ref[0].astype(jnp.float32)                 # (L, H*Dk)
    k2 = k_ref[0].astype(jnp.float32)                 # (L, H*Dk)
    v2 = v_ref[0]                                     # (L, H*Dv) bf16
    w2 = w_ref[0]                                     # (L, H*Dk) log-decay <= 0 (f32)
    u2 = u_ref[...]                                   # (1, H*Dk)

    t_idx = lax.broadcasted_iota(jnp.int32, (L, L), 0)
    s_idx = lax.broadcasted_iota(jnp.int32, (L, L), 1)
    tri_inc = (s_idx <= t_idx).astype(jnp.float32)    # lower-triangular incl. diagonal
    strict = s_idx < t_idx                            # strictly-lower mask (s < t)

    # inclusive / exclusive per-chunk cumulative log-decay (cumsum via tiny f32 matmul)
    a_inc = jnp.dot(tri_inc, w2, preferred_element_type=jnp.float32)   # (L, H*Dk)
    a_exc = a_inc - w2                                                  # (L, H*Dk)
    a_tot = jnp.sum(w2, axis=0, keepdims=True)                          # (1, H*Dk)

    # stabilized factorization around a_tot/2: exponents bounded by |a_tot|/2
    half = 0.5 * a_tot
    exp_half = jnp.exp(half)                                            # (1, H*Dk) <= 1
    qs = q2 * jnp.exp(a_exc - half)                                     # (L, H*Dk)
    ks = k2 * jnp.exp(half - a_inc)                                     # (L, H*Dk)
    q_inter = qs * exp_half                                             # = q*exp(a_exc)
    k_state = ks * exp_half                                             # = k*exp(a_tot-a_inc)
    decay_tot = exp_half * exp_half                                     # = exp(a_tot)
    ru = q2 * u2 * k2                                                   # diag bonus terms

    qs_b = qs.astype(bf16)
    ks_b = ks.astype(bf16)
    qi_b = q_inter.astype(bf16)
    kst_b = k_state.astype(bf16)

    for h in range(H):
        a, b = h * Dk, (h + 1) * Dk
        av, bv = h * Dv, (h + 1) * Dv
        v_h = v2[:, av:bv]                                              # (L, Dv) bf16

        # intra-chunk scores: one MXU matmul, masked AFTER the matmul
        s = lax.dot_general(qs_b[:, a:b], ks_b[:, a:b],
                            (((1,), (1,)), ((), ())),
                            preferred_element_type=jnp.float32)         # (L, L)
        s = jnp.where(strict, s, 0.0)
        o_intra = jnp.dot(s.astype(bf16), v_h,
                          preferred_element_type=jnp.float32)           # (L, Dv)

        # diagonal (bonus) term
        diag_h = jnp.sum(ru[:, a:b], axis=-1, keepdims=True)            # (L, 1)

        # cross-chunk contribution from the carried state
        h_prev = h_scr[h]                                               # (Dv, Dk) f32
        o_inter = lax.dot_general(qi_b[:, a:b], h_prev.astype(bf16),
                                  (((1,), (1,)), ((), ())),
                                  preferred_element_type=jnp.float32)   # (L, Dv)

        o_h = o_inter + o_intra + diag_h * v_h.astype(jnp.float32)
        o_ref[0, :, av:bv] = o_h.astype(o_ref.dtype)

        # state update (f32 accumulate in VMEM scratch)
        kv = lax.dot_general(v_h, kst_b[:, a:b], (((0,), (0,)), ((), ())),
                             preferred_element_type=jnp.float32)        # (Dv, Dk)
        h_scr[h] = decay_tot[:, a:b] * h_prev + kv

    hT_ref[0] = h_scr[...]


def rwkv6_recurrence(r, k, v, w, u, chunk=_CHUNK):
    # r, k: (B, T, H*Dk) bf16; v: (B, T, H*Dv) bf16; w: (B, T, H*Dk) f32 (log-decay)
    # u (bonus): (H, Dk) f32
    B, T, Kd = r.shape
    Vd = v.shape[-1]
    H, Dk = u.shape
    Dv = Vd // H

    L = min(chunk, T)
    nc = -(-T // L)
    Tp = nc * L
    if Tp != T:
        pad = ((0, 0), (0, Tp - T), (0, 0))
        # pad: k=v=0 and w=0 -> padded steps are exact no-ops for the state
        r, k, v, w = (jnp.pad(a, pad) for a in (r, k, v, w))
    u2 = u.reshape(1, Kd)

    o, hT = pl.pallas_call(
        functools.partial(_rwkv6_chunk_kernel, H=H, Dk=Dk, Dv=Dv),
        out_shape=(jax.ShapeDtypeStruct((B, Tp, Vd), jnp.bfloat16),
                   jax.ShapeDtypeStruct((B, H, Dv, Dk), jnp.float32)),
        grid=(B, nc),
        in_specs=[
            pl.BlockSpec((1, L, Kd), lambda b, c: (b, c, 0)),   # r
            pl.BlockSpec((1, L, Kd), lambda b, c: (b, c, 0)),   # k
            pl.BlockSpec((1, L, Vd), lambda b, c: (b, c, 0)),   # v
            pl.BlockSpec((1, L, Kd), lambda b, c: (b, c, 0)),   # w
            pl.BlockSpec((1, Kd), lambda b, c: (0, 0)),         # u (bonus)
        ],
        out_specs=(
            pl.BlockSpec((1, L, Vd), lambda b, c: (b, c, 0)),            # o (lane-dense)
            pl.BlockSpec((1, H, Dv, Dk), lambda b, c: (b, 0, 0, 0)),     # final state
        ),
        scratch_shapes=[pltpu.VMEM((H, Dv, Dk), jnp.float32)],
        compiler_params=pltpu.CompilerParams(
            dimension_semantics=("parallel", "arbitrary")),
    )(r, k, v, w, u2)
    if Tp != T:
        o = o[:, :T]
    return o, hT                       # hT is (B, H, Dv, Dk)


# ----------------------------------------------------------------------------
# Kernel 5: per-head GroupNorm + swish gate + o_proj, fused
#   per-head stats via one-hot head matmuls (no reshape relayouts, lane-dense output).
# ----------------------------------------------------------------------------
def _gnorm_gate_oproj_kernel(o_ref, g_ref, gw_ref, gb_ref, hm_ref, wo_ref, out_ref,
                             *, head_dim, eps):
    x = o_ref[...].astype(jnp.float32)               # (TM, Vd)
    g = g_ref[...].astype(jnp.float32)
    hm = hm_ref[...]                                 # (Vd, H) one-hot head membership
    inv_d = 1.0 / head_dim

    mean_h = jnp.dot(x, hm, preferred_element_type=jnp.float32) * inv_d          # (TM, H)
    mean_b = lax.dot_general(mean_h, hm, (((1,), (1,)), ((), ())),
                             preferred_element_type=jnp.float32)                 # (TM, Vd)
    xc = x - mean_b
    var_h = jnp.dot(xc * xc, hm, preferred_element_type=jnp.float32) * inv_d
    rstd_h = lax.rsqrt(var_h + eps)
    rstd_b = lax.dot_general(rstd_h, hm, (((1,), (1,)), ((), ())),
                             preferred_element_type=jnp.float32)
    y = xc * rstd_b * gw_ref[...] + gb_ref[...]

    sig = pl.reciprocal(1.0 + jnp.exp(-g), approx=True)
    gated = y * (g * sig)
    out_ref[...] = jnp.dot(gated.astype(jnp.bfloat16), wo_ref[...],
                           preferred_element_type=jnp.float32)


def groupnorm_gate_oproj(o, g, gn_w, gn_b, w_o, num_heads, eps=1e-5):
    # TODO(synk): some fla versions scale the group-norm eps by head_v_dim; 1e-5 kept here.
    m, vd = o.shape
    c = w_o.shape[1]
    dv = vd // num_heads
    tm, nt, mp = _row_tiling(m, _ROW_TILE_MM)
    head_ids = jnp.repeat(jnp.arange(num_heads), dv)
    hm = (head_ids[:, None] == jnp.arange(num_heads)[None, :]).astype(jnp.float32)

    out = pl.pallas_call(
        functools.partial(_gnorm_gate_oproj_kernel, head_dim=float(dv), eps=eps),
        out_shape=jax.ShapeDtypeStruct((mp, c), jnp.float32),
        grid=(nt,),
        in_specs=[pl.BlockSpec((tm, vd), _ROW), pl.BlockSpec((tm, vd), _ROW),
                  pl.BlockSpec((1, vd), _PIN2), pl.BlockSpec((1, vd), _PIN2),
                  pl.BlockSpec((vd, num_heads), _PIN2), pl.BlockSpec((vd, c), _PIN2)],
        out_specs=pl.BlockSpec((tm, c), _ROW),
        compiler_params=pltpu.CompilerParams(dimension_semantics=("parallel",),
                                             vmem_limit_bytes=_VMEM_LIMIT),
    )(_pad_rows(o, mp), _pad_rows(g, mp), gn_w.reshape(1, vd), gn_b.reshape(1, vd),
      hm, w_o.astype(jnp.bfloat16))
    return out[:m]


# ----------------------------------------------------------------------------
# Kernel 6: fused RWKV6 feed-forward (+ final residual add)
#   k = sqrelu((x + d*mu_k) @ Wk); v = k @ Wv; r = (x + d*mu_r) @ Wr
#   out = residual2 + sigmoid(r) * v
# ----------------------------------------------------------------------------
def _ffn_kernel(x_ref, d_ref, res_ref, mk_ref, mr_ref, wk_ref, wv_ref, wr_ref, o_ref):
    x = x_ref[...].astype(jnp.float32)
    d = d_ref[...].astype(jnp.float32)
    bf16 = jnp.bfloat16
    xk = (x + d * mk_ref[...]).astype(bf16)
    xr = (x + d * mr_ref[...]).astype(bf16)
    kk = jnp.dot(xk, wk_ref[...], preferred_element_type=jnp.float32)
    kk = jnp.square(jnp.maximum(kk, 0.0))
    vv = jnp.dot(kk.astype(bf16), wv_ref[...], preferred_element_type=jnp.float32)
    rr = jnp.dot(xr, wr_ref[...], preferred_element_type=jnp.float32)
    sig = pl.reciprocal(1.0 + jnp.exp(-rr), approx=True)
    o_ref[...] = res_ref[...] + vv * sig


def ffn_forward(x, delta, residual2, mu_k, mu_r, wk, wv, wr):
    m, c = x.shape
    i_dim = wk.shape[1]
    tm, nt, mp = _row_tiling(m, _ROW_TILE_MM)
    bf = lambda a: a.astype(jnp.bfloat16)
    out = pl.pallas_call(
        _ffn_kernel,
        out_shape=jax.ShapeDtypeStruct((mp, c), jnp.float32),
        grid=(nt,),
        in_specs=[
            pl.BlockSpec((tm, c), _ROW), pl.BlockSpec((tm, c), _ROW),
            pl.BlockSpec((tm, c), _ROW),
            pl.BlockSpec((1, c), _PIN2), pl.BlockSpec((1, c), _PIN2),
            pl.BlockSpec((c, i_dim), _PIN2), pl.BlockSpec((i_dim, c), _PIN2),
            pl.BlockSpec((c, c), _PIN2),
        ],
        out_specs=pl.BlockSpec((tm, c), _ROW),
        compiler_params=pltpu.CompilerParams(dimension_semantics=("parallel",),
                                             vmem_limit_bytes=_VMEM_LIMIT),
    )(_pad_rows(x, mp), _pad_rows(delta, mp), _pad_rows(residual2, mp),
      mu_k.reshape(1, c), mu_r.reshape(1, c), bf(wk), bf(wv), bf(wr))
    return out[:m]


# ----------------------------------------------------------------------------
# Full RWKV6 layer forward (glue = free reshapes / token-shift / parameter plumbing)
# ----------------------------------------------------------------------------
def rwkv6_layer_forward(params, cfg, x):
    B, T, C = x.shape
    BT = B * T
    H = cfg["num_heads"]
    Kd = cfg["key_dim"]
    Vd = cfg["value_dim"]

    x2 = x.reshape(BT, C).astype(jnp.float32)

    # norm_first + layer_idx == 0  ->  pre_norm; residual stream starts there
    residual, hidden = double_layernorm(
        x2, params["pre_norm_w"], params["pre_norm_b"],
        params["attn_norm_w"], params["attn_norm_b"])

    # ---------------- RWKV6 attention ----------------
    h3 = hidden.reshape(B, T, C)
    delta = (token_shift(h3) - h3).reshape(BT, C)

    r, k, v, g, w = attn_projections(hidden, delta, params)

    # heads stay packed along the feature axis -> no HBM transposes around the recurrence
    o3, hT = rwkv6_recurrence(r.reshape(B, T, Kd), k.reshape(B, T, Kd),
                              v.reshape(B, T, Vd), w.reshape(B, T, Kd),
                              params["bonus"])
    o = o3.reshape(BT, Vd)
    recurrent_state = jnp.swapaxes(hT, -1, -2)            # (B, H, Dk, Dv)

    attn_out = groupnorm_gate_oproj(o, g, params["g_norm_w"], params["g_norm_b"],
                                    params["w_o"], H)

    # fused ffn_norm: residual <- residual + attn_out ; hidden <- LN(residual)
    residual2, ffn_in = add_layernorm(residual, attn_out,
                                      params["ffn_norm_w"], params["ffn_norm_b"])

    # ---------------- RWKV6 feed-forward ----------------
    f3 = ffn_in.reshape(B, T, C)
    delta_f = (token_shift(f3) - f3).reshape(BT, C)
    out2 = ffn_forward(ffn_in, delta_f, residual2, params["ffn_mu_k"], params["ffn_mu_r"],
                       params["ffn_w_k"], params["ffn_w_v"], params["ffn_w_r"])
    out = out2.reshape(B, T, C)

    # layer cache state (== Cache.states[0] contents of the fla implementation)
    cache_state = {
        "recurrent_state": recurrent_state,                # (B, H, Dk, Dv)
        "conv_state": h3[:, -1].astype(jnp.float32),       # attn token-shift state
        "ffn_state": f3[:, -1].astype(jnp.float32),        # ffn token-shift state
        "offset": jnp.int32(T),
    }
    return out, cache_state


# ----------------------------------------------------------------------------
# Deterministic synthetic parameter init (shapes follow the PyTorch module)
# ----------------------------------------------------------------------------
def init_params(key, cfg):
    C = cfg["hidden_size"]
    Kd = cfg["key_dim"]
    Vd = cfg["value_dim"]
    H = cfg["num_heads"]
    Dk = Kd // H
    plr = cfg["proj_low_rank_dim"]
    glr = cfg["gate_low_rank_dim"]
    I = cfg["intermediate_size"]

    keys = iter(jax.random.split(key, 32))

    def w(shape, fan_in):
        return jax.random.normal(next(keys), shape, jnp.float32) / jnp.sqrt(float(fan_in))

    def small(shape, scale=0.1):
        return jax.random.normal(next(keys), shape, jnp.float32) * scale

    return {
        "pre_norm_w": jnp.ones((C,), jnp.float32), "pre_norm_b": jnp.zeros((C,), jnp.float32),
        "attn_norm_w": jnp.ones((C,), jnp.float32), "attn_norm_b": jnp.zeros((C,), jnp.float32),
        "ffn_norm_w": jnp.ones((C,), jnp.float32), "ffn_norm_b": jnp.zeros((C,), jnp.float32),
        # x_proj (LerpLinear -> Tanh -> Linear) + x_bias
        "x_mu": small((C,)),
        "x_w1": w((C, 5 * plr), C),
        "x_w2": w((5, plr, C), plr),
        "x_bias": small((5, C), 0.02),
        # r/w/k/v/g DDLerp projections (w uses a LoRA with bias)
        "w_r": w((C, Kd), C),
        "w_k": w((C, Kd), C),
        "w_v": w((C, Vd), C),
        "w_g": w((C, Vd), C),
        "w_w_a": w((C, glr), C),
        "w_w_b": w((glr, Kd), glr),
        "w_w_bias": small((Kd,), 0.02),
        "bonus": small((H, Dk)),
        # output group-norm + o_proj
        "g_norm_w": jnp.ones((Vd,), jnp.float32), "g_norm_b": jnp.zeros((Vd,), jnp.float32),
        "w_o": w((Vd, C), Vd),
        # feed-forward (LerpLinear key / receptance, plain value)
        "ffn_mu_k": small((C,)),
        "ffn_mu_r": small((C,)),
        "ffn_w_k": w((C, I), C),
        "ffn_w_v": w((I, C), I),
        "ffn_w_r": w((C, C), C),
    }


if __name__ == "__main__":
    # small config consistent with RWKV6Layer(io_size=32, expand_k=0.5, expand_v=1,
    # num_heads=4, intermediate_size=64)
    B, T, C = 2, 8, 32
    cfg = {
        "hidden_size": C,
        "key_dim": int(C * 0.5),       # expand_k = 0.5
        "value_dim": int(C * 1.0),     # expand_v = 1
        "num_heads": 4,
        "intermediate_size": 64,
        "proj_low_rank_dim": 32,
        "gate_low_rank_dim": 64,
    }

    root = jax.random.PRNGKey(0)
    pkey, xkey = jax.random.split(root)
    params = init_params(pkey, cfg)
    x = jax.random.normal(xkey, (B, T, C), jnp.float32)

    fwd = jax.jit(lambda p, xx: rwkv6_layer_forward(p, cfg, xx))
    out, state = fwd(params, x)
    jax.block_until_ready(out)
    jax.block_until_ready(state["recurrent_state"])

    assert out.shape == (B, T, C)
    assert state["recurrent_state"].shape == (B, cfg["num_heads"],
                                              cfg["key_dim"] // cfg["num_heads"],
                                              cfg["value_dim"] // cfg["num_heads"])
    print("KERNEL_OK")
</pallas_src>

<mosaic_0001>
module attributes {stable_mosaic.version = 11 : i64} {
  func.func @_double_ln_kernel(%arg0: i32, %arg1: memref<16x32xf32, #tpu.memory_space<vmem>>, %arg2: memref<1x32xf32, #tpu.memory_space<vmem>>, %arg3: memref<1x32xf32, #tpu.memory_space<vmem>>, %arg4: memref<1x32xf32, #tpu.memory_space<vmem>>, %arg5: memref<1x32xf32, #tpu.memory_space<vmem>>, %arg6: memref<16x32xf32, #tpu.memory_space<vmem>>, %arg7: memref<16x32xbf16, #tpu.memory_space<vmem>>) attributes {dimension_semantics = [#tpu.dimension_semantics<parallel>], iteration_bounds = array<i64: 1>, scalar_prefetch = 0 : i64, scratch_operands = 0 : i64, tpu.core_type = #tpu.core_type<tc>, window_params = [{transform_indices = @transform_0, window_bounds = array<i64: 16, 32>}, {pipeline_mode = #tpu.pipeline_mode<synchronous>, transform_indices = @transform_1, window_bounds = array<i64: 1, 32>}, {pipeline_mode = #tpu.pipeline_mode<synchronous>, transform_indices = @transform_2, window_bounds = array<i64: 1, 32>}, {pipeline_mode = #tpu.pipeline_mode<synchronous>, transform_indices = @transform_3, window_bounds = array<i64: 1, 32>}, {pipeline_mode = #tpu.pipeline_mode<synchronous>, transform_indices = @transform_4, window_bounds = array<i64: 1, 32>}, {transform_indices = @transform_5, window_bounds = array<i64: 16, 32>}, {transform_indices = @transform_6, window_bounds = array<i64: 16, 32>}]} {
    %c0 = arith.constant 0 : index
    %c0_0 = arith.constant 0 : index
    %0 = vector.load %arg1[%c0, %c0_0] : memref<16x32xf32, #tpu.memory_space<vmem>>, vector<16x32xf32>
    %c0_1 = arith.constant 0 : index
    %c0_2 = arith.constant 0 : index
    %1 = vector.load %arg2[%c0_1, %c0_2] : memref<1x32xf32, #tpu.memory_space<vmem>>, vector<1x32xf32>
    %c0_3 = arith.constant 0 : index
    %c0_4 = arith.constant 0 : index
    %2 = vector.load %arg3[%c0_3, %c0_4] : memref<1x32xf32, #tpu.memory_space<vmem>>, vector<1x32xf32>
    %cst = arith.constant dense<0.000000e+00> : vector<16xf32>
    %3 = vector.multi_reduction <add>, %0, %cst [1] : vector<16x32xf32> to vector<16xf32>
    %4 = vector.shape_cast %3 : vector<16xf32> to vector<16x1xf32>
    %cst_5 = arith.constant 3.200000e+01 : f32
    %5 = vector.broadcast %cst_5 : f32 to vector<16x1xf32>
    %6 = arith.divf %4, %5 : vector<16x1xf32>
    %7 = vector.broadcast %6 : vector<16x1xf32> to vector<16x32xf32>
    %8 = arith.subf %0, %7 : vector<16x32xf32>
    %9 = arith.mulf %8, %8 : vector<16x32xf32>
    %cst_6 = arith.constant dense<0.000000e+00> : vector<16xf32>
    %10 = vector.multi_reduction <add>, %9, %cst_6 [1] : vector<16x32xf32> to vector<16xf32>
    %11 = vector.shape_cast %10 : vector<16xf32> to vector<16x1xf32>
    %cst_7 = arith.constant 3.200000e+01 : f32
    %12 = vector.broadcast %cst_7 : f32 to vector<16x1xf32>
    %13 = arith.divf %11, %12 : vector<16x1xf32>
    %cst_8 = arith.constant 9.99999974E-6 : f32
    %14 = vector.broadcast %cst_8 : f32 to vector<16x1xf32>
    %15 = arith.addf %13, %14 : vector<16x1xf32>
    %16 = math.rsqrt %15 : vector<16x1xf32>
    %17 = vector.broadcast %16 : vector<16x1xf32> to vector<16x32xf32>
    %18 = arith.mulf %8, %17 : vector<16x32xf32>
    %19 = vector.broadcast %1 : vector<1x32xf32> to vector<16x32xf32>
    %20 = arith.mulf %18, %19 : vector<16x32xf32>
    %21 = vector.broadcast %2 : vector<1x32xf32> to vector<16x32xf32>
    %22 = arith.addf %20, %21 : vector<16x32xf32>
    %c0_9 = arith.constant 0 : index
    %c0_10 = arith.constant 0 : index
    %23 = vector.load %arg6[%c0_9, %c0_10] : memref<16x32xf32, #tpu.memory_space<vmem>>, vector<16x32xf32>
    tpu.vector_store %arg6[%c0_9, %c0_10], %22 {strides = array<i32>} : memref<16x32xf32, #tpu.memory_space<vmem>>, vector<16x32xf32>,
    %c0_11 = arith.constant 0 : index
    %c0_12 = arith.constant 0 : index
    %24 = vector.load %arg4[%c0_11, %c0_12] : memref<1x32xf32, #tpu.memory_space<vmem>>, vector<1x32xf32>
    %c0_13 = arith.constant 0 : index
    %c0_14 = arith.constant 0 : index
    %25 = vector.load %arg5[%c0_13, %c0_14] : memref<1x32xf32, #tpu.memory_space<vmem>>, vector<1x32xf32>
    %cst_15 = arith.constant dense<0.000000e+00> : vector<16xf32>
    %26 = vector.multi_reduction <add>, %22, %cst_15 [1] : vector<16x32xf32> to vector<16xf32>
    %27 = vector.shape_cast %26 : vector<16xf32> to vector<16x1xf32>
    %cst_16 = arith.constant 3.200000e+01 : f32
    %28 = vector.broadcast %cst_16 : f32 to vector<16x1xf32>
    %29 = arith.divf %27, %28 : vector<16x1xf32>
    %30 = vector.broadcast %29 : vector<16x1xf32> to vector<16x32xf32>
    %31 = arith.subf %22, %30 : vector<16x32xf32>
    %32 = arith.mulf %31, %31 : vector<16x32xf32>
    %cst_17 = arith.constant dense<0.000000e+00> : vector<16xf32>
    %33 = vector.multi_reduction <add>, %32, %cst_17 [1] : vector<16x32xf32> to vector<16xf32>
    %34 = vector.shape_cast %33 : vector<16xf32> to vector<16x1xf32>
    %cst_18 = arith.constant 3.200000e+01 : f32
    %35 = vector.broadcast %cst_18 : f32 to vector<16x1xf32>
    %36 = arith.divf %34, %35 : vector<16x1xf32>
    %cst_19 = arith.constant 9.99999974E-6 : f32
    %37 = vector.broadcast %cst_19 : f32 to vector<16x1xf32>
    %38 = arith.addf %36, %37 : vector<16x1xf32>
    %39 = math.rsqrt %38 : vector<16x1xf32>
    %40 = vector.broadcast %39 : vector<16x1xf32> to vector<16x32xf32>
    %41 = arith.mulf %31, %40 : vector<16x32xf32>
    %42 = vector.broadcast %24 : vector<1x32xf32> to vector<16x32xf32>
    %43 = arith.mulf %41, %42 : vector<16x32xf32>
    %44 = vector.broadcast %25 : vector<1x32xf32> to vector<16x32xf32>
    %45 = arith.addf %43, %44 : vector<16x32xf32>
    %46 = arith.truncf %45 : vector<16x32xf32> to vector<16x32xbf16>
    %c0_20 = arith.constant 0 : index
    %c0_21 = arith.constant 0 : index
    %47 = vector.load %arg7[%c0_20, %c0_21] : memref<16x32xbf16, #tpu.memory_space<vmem>>, vector<16x32xbf16>
    tpu.vector_store %arg7[%c0_20, %c0_21], %46 {strides = array<i32>} : memref<16x32xbf16, #tpu.memory_space<vmem>>, vector<16x32xbf16>,
    return
  }
  func.func @transform_0(%arg0: i32) -> (i32, i32) {
    %c0_i32 = arith.constant 0 : i32
    %c0_i32_0 = arith.constant 0 : i32
    return %arg0, %c0_i32 : i32, i32
  }
  func.func @transform_1(%arg0: i32) -> (i32, i32) {
    %c0_i32 = arith.constant 0 : i32
    %c0_i32_0 = arith.constant 0 : i32
    %c0_i32_1 = arith.constant 0 : i32
    return %c0_i32, %c0_i32_0 : i32, i32
  }
  func.func @transform_2(%arg0: i32) -> (i32, i32) {
    %c0_i32 = arith.constant 0 : i32
    %c0_i32_0 = arith.constant 0 : i32
    %c0_i32_1 = arith.constant 0 : i32
    return %c0_i32, %c0_i32_0 : i32, i32
  }
  func.func @transform_3(%arg0: i32) -> (i32, i32) {
    %c0_i32 = arith.constant 0 : i32
    %c0_i32_0 = arith.constant 0 : i32
    %c0_i32_1 = arith.constant 0 : i32
    return %c0_i32, %c0_i32_0 : i32, i32
  }
  func.func @transform_4(%arg0: i32) -> (i32, i32) {
    %c0_i32 = arith.constant 0 : i32
    %c0_i32_0 = arith.constant 0 : i32
    %c0_i32_1 = arith.constant 0 : i32
    return %c0_i32, %c0_i32_0 : i32, i32
  }
  func.func @transform_5(%arg0: i32) -> (i32, i32) {
    %c0_i32 = arith.constant 0 : i32
    %c0_i32_0 = arith.constant 0 : i32
    return %arg0, %c0_i32 : i32, i32
  }
  func.func @transform_6(%arg0: i32) -> (i32, i32) {
    %c0_i32 = arith.constant 0 : i32
    %c0_i32_0 = arith.constant 0 : i32
    return %arg0, %c0_i32 : i32, i32
  }
}

module attributes {stable_mosaic.version = 11 : i64} {
  func.func @_attn_proj_kernel(%arg0: i32, %arg1: memref<16x32xbf16, #tpu.memory_space<vmem>>, %arg2: memref<16x32xbf16, #tpu.memory_space<vmem>>, %arg3: memref<1x32xf32, #tpu.memory_space<vmem>>, %arg4: memref<32x160xbf16, #tpu.memory_space<vmem>>, %arg5: memref<5x32x32xbf16, #tpu.memory_space<vmem>>, %arg6: memref<5x1x32xf32, #tpu.memory_space<vmem>>, %arg7: memref<32x16xbf16, #tpu.memory_space<vmem>>, %arg8: memref<32x16xbf16, #tpu.memory_space<vmem>>, %arg9: memref<32x32xbf16, #tpu.memory_space<vmem>>, %arg10: memref<32x32xbf16, #tpu.memory_space<vmem>>, %arg11: memref<32x64xbf16, #tpu.memory_space<vmem>>, %arg12: memref<64x16xbf16, #tpu.memory_space<vmem>>, %arg13: memref<1x16xf32, #tpu.memory_space<vmem>>, %arg14: memref<16x16xbf16, #tpu.memory_space<vmem>>, %arg15: memref<16x16xbf16, #tpu.memory_space<vmem>>, %arg16: memref<16x32xbf16, #tpu.memory_space<vmem>>, %arg17: memref<16x32xbf16, #tpu.memory_space<vmem>>, %arg18: memref<16x16xf32, #tpu.memory_space<vmem>>) attributes {dimension_semantics = [#tpu.dimension_semantics<parallel>], iteration_bounds = array<i64: 1>, scalar_prefetch = 0 : i64, scratch_operands = 0 : i64, tpu.core_type = #tpu.core_type<tc>, window_params = [{transform_indices = @transform_0, window_bounds = array<i64: 16, 32>}, {transform_indices = @transform_1, window_bounds = array<i64: 16, 32>}, {pipeline_mode = #tpu.pipeline_mode<synchronous>, transform_indices = @transform_2, window_bounds = array<i64: 1, 32>}, {pipeline_mode = #tpu.pipeline_mode<synchronous>, transform_indices = @transform_3, window_bounds = array<i64: 32, 160>}, {pipeline_mode = #tpu.pipeline_mode<synchronous>, transform_indices = @transform_4, window_bounds = array<i64: 5, 32, 32>}, {pipeline_mode = #tpu.pipeline_mode<synchronous>, transform_indices = @transform_5, window_bounds = array<i64: 5, 1, 32>}, {pipeline_mode = #tpu.pipeline_mode<synchronous>, transform_indices = @transform_6, window_bounds = array<i64: 32, 16>}, {pipeline_mode = #tpu.pipeline_mode<synchronous>, transform_indices = @transform_7, window_bounds = array<i64: 32, 16>}, {pipeline_mode = #tpu.pipeline_mode<synchronous>, transform_indices = @transform_8, window_bounds = array<i64: 32, 32>}, {pipeline_mode = #tpu.pipeline_mode<synchronous>, transform_indices = @transform_9, window_bounds = array<i64: 32, 32>}, {pipeline_mode = #tpu.pipeline_mode<synchronous>, transform_indices = @transform_10, window_bounds = array<i64: 32, 64>}, {pipeline_mode = #tpu.pipeline_mode<synchronous>, transform_indices = @transform_11, window_bounds = array<i64: 64, 16>}, {pipeline_mode = #tpu.pipeline_mode<synchronous>, transform_indices = @transform_12, window_bounds = array<i64: 1, 16>}, {transform_indices = @transform_13, window_bounds = array<i64: 16, 16>}, {transform_indices = @transform_14, window_bounds = array<i64: 16, 16>}, {transform_indices = @transform_15, window_bounds = array<i64: 16, 32>}, {transform_indices = @transform_16, window_bounds = array<i64: 16, 32>}, {transform_indices = @transform_17, window_bounds = array<i64: 16, 16>}]} {
    %c0 = arith.constant 0 : index
    %c0_0 = arith.constant 0 : index
    %0 = vector.load %arg1[%c0, %c0_0] : memref<16x32xbf16, #tpu.memory_space<vmem>>, vector<16x32xbf16>
    %1 = arith.extf %0 : vector<16x32xbf16> to vector<16x32xf32>
    %c0_1 = arith.constant 0 : index
    %c0_2 = arith.constant 0 : index
    %2 = vector.load %arg2[%c0_1, %c0_2] : memref<16x32xbf16, #tpu.memory_space<vmem>>, vector<16x32xbf16>
    %3 = arith.extf %2 : vector<16x32xbf16> to vector<16x32xf32>
    %c0_3 = arith.constant 0 : index
    %c0_4 = arith.constant 0 : index
    %4 = vector.load %arg3[%c0_3, %c0_4] : memref<1x32xf32, #tpu.memory_space<vmem>>, vector<1x32xf32>
    %5 = vector.broadcast %4 : vector<1x32xf32> to vector<16x32xf32>
    %6 = arith.mulf %3, %5 : vector<16x32xf32>
    %7 = arith.addf %1, %6 : vector<16x32xf32>
    %8 = arith.truncf %7 : vector<16x32xf32> to vector<16x32xbf16>
    %c0_5 = arith.constant 0 : index
    %c0_6 = arith.constant 0 : index
    %9 = vector.load %arg4[%c0_5, %c0_6] : memref<32x160xbf16, #tpu.memory_space<vmem>>, vector<32x160xbf16>
    %cst = arith.constant dense<0.000000e+00> : vector<16x160xf32>
    %10 = tpu.matmul %8, %9, %cst {dimension_numbers = #tpu.dot_dimension_numbers<[1], [0], [0], [1], [0, 0, 1, 1], [], []>} : vector<16x32xbf16>, vector<32x160xbf16>, vector<16x160xf32> -> vector<16x160xf32>
    %11 = math.tanh %10 : vector<16x160xf32>
    %12 = vector.extract_strided_slice %11 {offsets = [0, 0], sizes = [16, 32], strides = [1, 1]} : vector<16x160xf32> to vector<16x32xf32>
    %13 = arith.truncf %12 : vector<16x32xf32> to vector<16x32xbf16>
    %c0_7 = arith.constant 0 : index
    %c0_8 = arith.constant 0 : index
    %c0_9 = arith.constant 0 : index
    %14 = vector.load %arg5[%c0_7, %c0_8, %c0_9] : memref<5x32x32xbf16, #tpu.memory_space<vmem>>, vector<1x32x32xbf16>
    %15 = vector.shape_cast %14 : vector<1x32x32xbf16> to vector<32x32xbf16>
    %cst_10 = arith.constant dense<0.000000e+00> : vector<16x32xf32>
    %16 = tpu.matmul %13, %15, %cst_10 {dimension_numbers = #tpu.dot_dimension_numbers<[1], [0], [0], [1], [0, 0, 1, 1], [], []>} : vector<16x32xbf16>, vector<32x32xbf16>, vector<16x32xf32> -> vector<16x32xf32>
    %c0_11 = arith.constant 0 : index
    %c0_12 = arith.constant 0 : index
    %c0_13 = arith.constant 0 : index
    %17 = vector.load %arg6[%c0_11, %c0_12, %c0_13] : memref<5x1x32xf32, #tpu.memory_space<vmem>>, vector<1x1x32xf32>
    %18 = vector.shape_cast %17 : vector<1x1x32xf32> to vector<1x32xf32>
    %19 = vector.broadcast %18 : vector<1x32xf32> to vector<16x32xf32>
    %20 = arith.addf %16, %19 : vector<16x32xf32>
    %21 = vector.extract_strided_slice %11 {offsets = [0, 32], sizes = [16, 32], strides = [1, 1]} : vector<16x160xf32> to vector<16x32xf32>
    %22 = arith.truncf %21 : vector<16x32xf32> to vector<16x32xbf16>
    %c1 = arith.constant 1 : index
    %c0_14 = arith.constant 0 : index
    %c0_15 = arith.constant 0 : index
    %23 = vector.load %arg5[%c1, %c0_14, %c0_15] : memref<5x32x32xbf16, #tpu.memory_space<vmem>>, vector<1x32x32xbf16>
    %24 = vector.shape_cast %23 : vector<1x32x32xbf16> to vector<32x32xbf16>
    %cst_16 = arith.constant dense<0.000000e+00> : vector<16x32xf32>
    %25 = tpu.matmul %22, %24, %cst_16 {dimension_numbers = #tpu.dot_dimension_numbers<[1], [0], [0], [1], [0, 0, 1, 1], [], []>} : vector<16x32xbf16>, vector<32x32xbf16>, vector<16x32xf32> -> vector<16x32xf32>
    %c1_17 = arith.constant 1 : index
    %c0_18 = arith.constant 0 : index
    %c0_19 = arith.constant 0 : index
    %26 = vector.load %arg6[%c1_17, %c0_18, %c0_19] : memref<5x1x32xf32, #tpu.memory_space<vmem>>, vector<1x1x32xf32>
    %27 = vector.shape_cast %26 : vector<1x1x32xf32> to vector<1x32xf32>
    %28 = vector.broadcast %27 : vector<1x32xf32> to vector<16x32xf32>
    %29 = arith.addf %25, %28 : vector<16x32xf32>
    %30 = vector.extract_strided_slice %11 {offsets = [0, 64], sizes = [16, 32], strides = [1, 1]} : vector<16x160xf32> to vector<16x32xf32>
    %31 = arith.truncf %30 : vector<16x32xf32> to vector<16x32xbf16>
    %c2 = arith.constant 2 : index
    %c0_20 = arith.constant 0 : index
    %c0_21 = arith.constant 0 : index
    %32 = vector.load %arg5[%c2, %c0_20, %c0_21] : memref<5x32x32xbf16, #tpu.memory_space<vmem>>, vector<1x32x32xbf16>
    %33 = vector.shape_cast %32 : vector<1x32x32xbf16> to vector<32x32xbf16>
    %cst_22 = arith.constant dense<0.000000e+00> : vector<16x32xf32>
    %34 = tpu.matmul %31, %33, %cst_22 {dimension_numbers = #tpu.dot_dimension_numbers<[1], [0], [0], [1], [0, 0, 1, 1], [], []>} : vector<16x32xbf16>, vector<32x32xbf16>, vector<16x32xf32> -> vector<16x32xf32>
    %c2_23 = arith.constant 2 : index
    %c0_24 = arith.constant 0 : index
    %c0_25 = arith.constant 0 : index
    %35 = vector.load %arg6[%c2_23, %c0_24, %c0_25] : memref<5x1x32xf32, #tpu.memory_space<vmem>>, vector<1x1x32xf32>
    %36 = vector.shape_cast %35 : vector<1x1x32xf32> to vector<1x32xf32>
    %37 = vector.broadcast %36 : vector<1x32xf32> to vector<16x32xf32>
    %38 = arith.addf %34, %37 : vector<16x32xf32>
    %39 = vector.extract_strided_slice %11 {offsets = [0, 96], sizes = [16, 32], strides = [1, 1]} : vector<16x160xf32> to vector<16x32xf32>
    %40 = arith.truncf %39 : vector<16x32xf32> to vector<16x32xbf16>
    %c3 = arith.constant 3 : index
    %c0_26 = arith.constant 0 : index
    %c0_27 = arith.constant 0 : index
    %41 = vector.load %arg5[%c3, %c0_26, %c0_27] : memref<5x32x32xbf16, #tpu.memory_space<vmem>>, vector<1x32x32xbf16>
    %42 = vector.shape_cast %41 : vector<1x32x32xbf16> to vector<32x32xbf16>
    %cst_28 = arith.constant dense<0.000000e+00> : vector<16x32xf32>
    %43 = tpu.matmul %40, %42, %cst_28 {dimension_numbers = #tpu.dot_dimension_numbers<[1], [0], [0], [1], [0, 0, 1, 1], [], []>} : vector<16x32xbf16>, vector<32x32xbf16>, vector<16x32xf32> -> vector<16x32xf32>
    %c3_29 = arith.constant 3 : index
    %c0_30 = arith.constant 0 : index
    %c0_31 = arith.constant 0 : index
    %44 = vector.load %arg6[%c3_29, %c0_30, %c0_31] : memref<5x1x32xf32, #tpu.memory_space<vmem>>, vector<1x1x32xf32>
    %45 = vector.shape_cast %44 : vector<1x1x32xf32> to vector<1x32xf32>
    %46 = vector.broadcast %45 : vector<1x32xf32> to vector<16x32xf32>
    %47 = arith.addf %43, %46 : vector<16x32xf32>
    %48 = vector.extract_strided_slice %11 {offsets = [0, 128], sizes = [16, 32], strides = [1, 1]} : vector<16x160xf32> to vector<16x32xf32>
    %49 = arith.truncf %48 : vector<16x32xf32> to vector<16x32xbf16>
    %c4 = arith.constant 4 : index
    %c0_32 = arith.constant 0 : index
    %c0_33 = arith.constant 0 : index
    %50 = vector.load %arg5[%c4, %c0_32, %c0_33] : memref<5x32x32xbf16, #tpu.memory_space<vmem>>, vector<1x32x32xbf16>
    %51 = vector.shape_cast %50 : vector<1x32x32xbf16> to vector<32x32xbf16>
    %cst_34 = arith.constant dense<0.000000e+00> : vector<16x32xf32>
    %52 = tpu.matmul %49, %51, %cst_34 {dimension_numbers = #tpu.dot_dimension_numbers<[1], [0], [0], [1], [0, 0, 1, 1], [], []>} : vector<16x32xbf16>, vector<32x32xbf16>, vector<16x32xf32> -> vector<16x32xf32>
    %c4_35 = arith.constant 4 : index
    %c0_36 = arith.constant 0 : index
    %c0_37 = arith.constant 0 : index
    %53 = vector.load %arg6[%c4_35, %c0_36, %c0_37] : memref<5x1x32xf32, #tpu.memory_space<vmem>>, vector<1x1x32xf32>
    %54 = vector.shape_cast %53 : vector<1x1x32xf32> to vector<1x32xf32>
    %55 = vector.broadcast %54 : vector<1x32xf32> to vector<16x32xf32>
    %56 = arith.addf %52, %55 : vector<16x32xf32>
    %c0_38 = arith.constant 0 : index
    %c0_39 = arith.constant 0 : index
    %57 = vector.load %arg7[%c0_38, %c0_39] : memref<32x16xbf16, #tpu.memory_space<vmem>>, vector<32x16xbf16>
    %58 = arith.mulf %3, %20 : vector<16x32xf32>
    %59 = arith.addf %1, %58 : vector<16x32xf32>
    %60 = arith.truncf %59 : vector<16x32xf32> to vector<16x32xbf16>
    %cst_40 = arith.constant dense<0.000000e+00> : vector<16x16xf32>
    %61 = tpu.matmul %60, %57, %cst_40 {dimension_numbers = #tpu.dot_dimension_numbers<[1], [0], [0], [1], [0, 0, 1, 1], [], []>} : vector<16x32xbf16>, vector<32x16xbf16>, vector<16x16xf32> -> vector<16x16xf32>
    %62 = arith.truncf %61 : vector<16x16xf32> to vector<16x16xbf16>
    %c0_41 = arith.constant 0 : index
    %c0_42 = arith.constant 0 : index
    %63 = vector.load %arg14[%c0_41, %c0_42] : memref<16x16xbf16, #tpu.memory_space<vmem>>, vector<16x16xbf16>
    tpu.vector_store %arg14[%c0_41, %c0_42], %62 {strides = array<i32>} : memref<16x16xbf16, #tpu.memory_space<vmem>>, vector<16x16xbf16>,
    %c0_43 = arith.constant 0 : index
    %c0_44 = arith.constant 0 : index
    %64 = vector.load %arg8[%c0_43, %c0_44] : memref<32x16xbf16, #tpu.memory_space<vmem>>, vector<32x16xbf16>
    %65 = arith.mulf %3, %38 : vector<16x32xf32>
    %66 = arith.addf %1, %65 : vector<16x32xf32>
    %67 = arith.truncf %66 : vector<16x32xf32> to vector<16x32xbf16>
    %cst_45 = arith.constant dense<0.000000e+00> : vector<16x16xf32>
    %68 = tpu.matmul %67, %64, %cst_45 {dimension_numbers = #tpu.dot_dimension_numbers<[1], [0], [0], [1], [0, 0, 1, 1], [], []>} : vector<16x32xbf16>, vector<32x16xbf16>, vector<16x16xf32> -> vector<16x16xf32>
    %69 = arith.truncf %68 : vector<16x16xf32> to vector<16x16xbf16>
    %c0_46 = arith.constant 0 : index
    %c0_47 = arith.constant 0 : index
    %70 = vector.load %arg15[%c0_46, %c0_47] : memref<16x16xbf16, #tpu.memory_space<vmem>>, vector<16x16xbf16>
    tpu.vector_store %arg15[%c0_46, %c0_47], %69 {strides = array<i32>} : memref<16x16xbf16, #tpu.memory_space<vmem>>, vector<16x16xbf16>,
    %c0_48 = arith.constant 0 : index
    %c0_49 = arith.constant 0 : index
    %71 = vector.load %arg9[%c0_48, %c0_49] : memref<32x32xbf16, #tpu.memory_space<vmem>>, vector<32x32xbf16>
    %72 = arith.mulf %3, %47 : vector<16x32xf32>
    %73 = arith.addf %1, %72 : vector<16x32xf32>
    %74 = arith.truncf %73 : vector<16x32xf32> to vector<16x32xbf16>
    %cst_50 = arith.constant dense<0.000000e+00> : vector<16x32xf32>
    %75 = tpu.matmul %74, %71, %cst_50 {dimension_numbers = #tpu.dot_dimension_numbers<[1], [0], [0], [1], [0, 0, 1, 1], [], []>} : vector<16x32xbf16>, vector<32x32xbf16>, vector<16x32xf32> -> vector<16x32xf32>
    %76 = arith.truncf %75 : vector<16x32xf32> to vector<16x32xbf16>
    %c0_51 = arith.constant 0 : index
    %c0_52 = arith.constant 0 : index
    %77 = vector.load %arg16[%c0_51, %c0_52] : memref<16x32xbf16, #tpu.memory_space<vmem>>, vector<16x32xbf16>
    tpu.vector_store %arg16[%c0_51, %c0_52], %76 {strides = array<i32>} : memref<16x32xbf16, #tpu.memory_space<vmem>>, vector<16x32xbf16>,
    %c0_53 = arith.constant 0 : index
    %c0_54 = arith.constant 0 : index
    %78 = vector.load %arg10[%c0_53, %c0_54] : memref<32x32xbf16, #tpu.memory_space<vmem>>, vector<32x32xbf16>
    %79 = arith.mulf %3, %56 : vector<16x32xf32>
    %80 = arith.addf %1, %79 : vector<16x32xf32>
    %81 = arith.truncf %80 : vector<16x32xf32> to vector<16x32xbf16>
    %cst_55 = arith.constant dense<0.000000e+00> : vector<16x32xf32>
    %82 = tpu.matmul %81, %78, %cst_55 {dimension_numbers = #tpu.dot_dimension_numbers<[1], [0], [0], [1], [0, 0, 1, 1], [], []>} : vector<16x32xbf16>, vector<32x32xbf16>, vector<16x32xf32> -> vector<16x32xf32>
    %83 = arith.truncf %82 : vector<16x32xf32> to vector<16x32xbf16>
    %c0_56 = arith.constant 0 : index
    %c0_57 = arith.constant 0 : index
    %84 = vector.load %arg17[%c0_56, %c0_57] : memref<16x32xbf16, #tpu.memory_space<vmem>>, vector<16x32xbf16>
    tpu.vector_store %arg17[%c0_56, %c0_57], %83 {strides = array<i32>} : memref<16x32xbf16, #tpu.memory_space<vmem>>, vector<16x32xbf16>,
    %c0_58 = arith.constant 0 : index
    %c0_59 = arith.constant 0 : index
    %85 = vector.load %arg11[%c0_58, %c0_59] : memref<32x64xbf16, #tpu.memory_space<vmem>>, vector<32x64xbf16>
    %86 = arith.mulf %3, %29 : vector<16x32xf32>
    %87 = arith.addf %1, %86 : vector<16x32xf32>
    %88 = arith.truncf %87 : vector<16x32xf32> to vector<16x32xbf16>
    %cst_60 = arith.constant dense<0.000000e+00> : vector<16x64xf32>
    %89 = tpu.matmul %88, %85, %cst_60 {dimension_numbers = #tpu.dot_dimension_numbers<[1], [0], [0], [1], [0, 0, 1, 1], [], []>} : vector<16x32xbf16>, vector<32x64xbf16>, vector<16x64xf32> -> vector<16x64xf32>
    %90 = math.tanh %89 : vector<16x64xf32>
    %91 = arith.truncf %90 : vector<16x64xf32> to vector<16x64xbf16>
    %c0_61 = arith.constant 0 : index
    %c0_62 = arith.constant 0 : index
    %92 = vector.load %arg12[%c0_61, %c0_62] : memref<64x16xbf16, #tpu.memory_space<vmem>>, vector<64x16xbf16>
    %cst_63 = arith.constant dense<0.000000e+00> : vector<16x16xf32>
    %93 = tpu.matmul %91, %92, %cst_63 {dimension_numbers = #tpu.dot_dimension_numbers<[1], [0], [0], [1], [0, 0, 1, 1], [], []>} : vector<16x64xbf16>, vector<64x16xbf16>, vector<16x16xf32> -> vector<16x16xf32>
    %c0_64 = arith.constant 0 : index
    %c0_65 = arith.constant 0 : index
    %94 = vector.load %arg13[%c0_64, %c0_65] : memref<1x16xf32, #tpu.memory_space<vmem>>, vector<1x16xf32>
    %95 = vector.broadcast %94 : vector<1x16xf32> to vector<16x16xf32>
    %96 = arith.addf %93, %95 : vector<16x16xf32>
    %97 = math.exp %96 : vector<16x16xf32>
    %cst_66 = arith.constant 0.000000e+00 : f32
    %98 = vector.broadcast %cst_66 : f32 to vector<16x16xf32>
    %99 = arith.subf %98, %97 : vector<16x16xf32>
    %c0_67 = arith.constant 0 : index
    %c0_68 = arith.constant 0 : index
    %100 = vector.load %arg18[%c0_67, %c0_68] : memref<16x16xf32, #tpu.memory_space<vmem>>, vector<16x16xf32>
    tpu.vector_store %arg18[%c0_67, %c0_68], %99 {strides = array<i32>} : memref<16x16xf32, #tpu.memory_space<vmem>>, vector<16x16xf32>,
    return
  }
  func.func @transform_0(%arg0: i32) -> (i32, i32) {
    %c0_i32 = arith.constant 0 : i32
    %c0_i32_0 = arith.constant 0 : i32
    return %arg0, %c0_i32 : i32, i32
  }
  func.func @transform_1(%arg0: i32) -> (i32, i32) {
    %c0_i32 = arith.constant 0 : i32
    %c0_i32_0 = arith.constant 0 : i32
    return %arg0, %c0_i32 : i32, i32
  }
  func.func @transform_2(%arg0: i32) -> (i32, i32) {
    %c0_i32 = arith.constant 0 : i32
    %c0_i32_0 = arith.constant 0 : i32
    %c0_i32_1 = arith.constant 0 : i32
    return %c0_i32, %c0_i32_0 : i32, i32
  }
  func.func @transform_3(%arg0: i32) -> (i32, i32) {
    %c0_i32 = arith.constant 0 : i32
    %c0_i32_0 = arith.constant 0 : i32
    %c0_i32_1 = arith.constant 0 : i32
    return %c0_i32, %c0_i32_0 : i32, i32
  }
  func.func @transform_4(%arg0: i32) -> (i32, i32, i32) {
    %c0_i32 = arith.constant 0 : i32
    %c0_i32_0 = arith.constant 0 : i32
    %c0_i32_1 = arith.constant 0 : i32
    %c0_i32_2 = arith.constant 0 : i32
    return %c0_i32, %c0_i32_0, %c0_i32_1 : i32, i32, i32
  }
  func.func @transform_5(%arg0: i32) -> (i32, i32, i32) {
    %c0_i32 = arith.constant 0 : i32
    %c0_i32_0 = arith.constant 0 : i32
    %c0_i32_1 = arith.constant 0 : i32
    %c0_i32_2 = arith.constant 0 : i32
    return %c0_i32, %c0_i32_0, %c0_i32_1 : i32, i32, i32
  }
  func.func @transform_6(%arg0: i32) -> (i32, i32) {
    %c0_i32 = arith.constant 0 : i32
    %c0_i32_0 = arith.constant 0 : i32
    %c0_i32_1 = arith.constant 0 : i32
    return %c0_i32, %c0_i32_0 : i32, i32
  }
  func.func @transform_7(%arg0: i32) -> (i32, i32) {
    %c0_i32 = arith.constant 0 : i32
    %c0_i32_0 = arith.constant 0 : i32
    %c0_i32_1 = arith.constant 0 : i32
    return %c0_i32, %c0_i32_0 : i32, i32
  }
  func.func @transform_8(%arg0: i32) -> (i32, i32) {
    %c0_i32 = arith.constant 0 : i32
    %c0_i32_0 = arith.constant 0 : i32
    %c0_i32_1 = arith.constant 0 : i32
    return %c0_i32, %c0_i32_0 : i32, i32
  }
  func.func @transform_9(%arg0: i32) -> (i32, i32) {
    %c0_i32 = arith.constant 0 : i32
    %c0_i32_0 = arith.constant 0 : i32
    %c0_i32_1 = arith.constant 0 : i32
    return %c0_i32, %c0_i32_0 : i32, i32
  }
  func.func @transform_10(%arg0: i32) -> (i32, i32) {
    %c0_i32 = arith.constant 0 : i32
    %c0_i32_0 = arith.constant 0 : i32
    %c0_i32_1 = arith.constant 0 : i32
    return %c0_i32, %c0_i32_0 : i32, i32
  }
  func.func @transform_11(%arg0: i32) -> (i32, i32) {
    %c0_i32 = arith.constant 0 : i32
    %c0_i32_0 = arith.constant 0 : i32
    %c0_i32_1 = arith.constant 0 : i32
    return %c0_i32, %c0_i32_0 : i32, i32
  }
  func.func @transform_12(%arg0: i32) -> (i32, i32) {
    %c0_i32 = arith.constant 0 : i32
    %c0_i32_0 = arith.constant 0 : i32
    %c0_i32_1 = arith.constant 0 : i32
    return %c0_i32, %c0_i32_0 : i32, i32
  }
  func.func @transform_13(%arg0: i32) -> (i32, i32) {
    %c0_i32 = arith.constant 0 : i32
    %c0_i32_0 = arith.constant 0 : i32
    return %arg0, %c0_i32 : i32, i32
  }
  func.func @transform_14(%arg0: i32) -> (i32, i32) {
    %c0_i32 = arith.constant 0 : i32
    %c0_i32_0 = arith.constant 0 : i32
    return %arg0, %c0_i32 : i32, i32
  }
  func.func @transform_15(%arg0: i32) -> (i32, i32) {
    %c0_i32 = arith.constant 0 : i32
    %c0_i32_0 = arith.constant 0 : i32
    return %arg0, %c0_i32 : i32, i32
  }
  func.func @transform_16(%arg0: i32) -> (i32, i32) {
    %c0_i32 = arith.constant 0 : i32
    %c0_i32_0 = arith.constant 0 : i32
    return %arg0, %c0_i32 : i32, i32
  }
  func.func @transform_17(%arg0: i32) -> (i32, i32) {
    %c0_i32 = arith.constant 0 : i32
    %c0_i32_0 = arith.constant 0 : i32
    return %arg0, %c0_i32 : i32, i32
  }
}

module attributes {stable_mosaic.version = 11 : i64} {
  func.func @_rwkv6_chunk_kernel(%arg0: i32, %arg1: i32, %arg2: memref<1x8x16xbf16, #tpu.memory_space<vmem>>, %arg3: memref<1x8x16xbf16, #tpu.memory_space<vmem>>, %arg4: memref<1x8x32xbf16, #tpu.memory_space<vmem>>, %arg5: memref<1x8x16xf32, #tpu.memory_space<vmem>>, %arg6: memref<1x16xf32, #tpu.memory_space<vmem>>, %arg7: memref<1x8x32xbf16, #tpu.memory_space<vmem>>, %arg8: memref<1x4x8x4xf32, #tpu.memory_space<vmem>>, %arg9: memref<4x8x4xf32, #tpu.memory_space<vmem>>) attributes {dimension_semantics = [#tpu.dimension_semantics<parallel>, #tpu.dimension_semantics<arbitrary>], iteration_bounds = array<i64: 2, 1>, scalar_prefetch = 0 : i64, scratch_operands = 1 : i64, tpu.core_type = #tpu.core_type<tc>, window_params = [{transform_indices = @transform_0, window_bounds = array<i64: 1, 8, 16>}, {transform_indices = @transform_1, window_bounds = array<i64: 1, 8, 16>}, {transform_indices = @transform_2, window_bounds = array<i64: 1, 8, 32>}, {transform_indices = @transform_3, window_bounds = array<i64: 1, 8, 16>}, {pipeline_mode = #tpu.pipeline_mode<synchronous>, transform_indices = @transform_4, window_bounds = array<i64: 1, 16>}, {transform_indices = @transform_5, window_bounds = array<i64: 1, 8, 32>}, {transform_indices = @transform_6, window_bounds = array<i64: 1, 4, 8, 4>}]} {
    %c0_i32 = arith.constant 0 : i32
    %0 = arith.cmpi eq, %arg1, %c0_i32 : i32
    %1 = arith.extui %0 : i1 to i32
    %c0_i32_0 = arith.constant 0 : i32
    %2 = arith.cmpi ne, %1, %c0_i32_0 : i32
    scf.if %2 {
      %cst_77 = arith.constant 0.000000e+00 : f32
      %187 = vector.broadcast %cst_77 : f32 to vector<4x8x4xf32>
      %c0_78 = arith.constant 0 : index
      %c0_79 = arith.constant 0 : index
      %c0_80 = arith.constant 0 : index
      %188 = vector.load %arg9[%c0_78, %c0_79, %c0_80] : memref<4x8x4xf32, #tpu.memory_space<vmem>>, vector<4x8x4xf32>
      tpu.vector_store %arg9[%c0_78, %c0_79, %c0_80], %187 {strides = array<i32>} : memref<4x8x4xf32, #tpu.memory_space<vmem>>, vector<4x8x4xf32>,
    } else {
    }
    %c0 = arith.constant 0 : index
    %c0_1 = arith.constant 0 : index
    %c0_2 = arith.constant 0 : index
    %3 = vector.load %arg2[%c0, %c0_1, %c0_2] : memref<1x8x16xbf16, #tpu.memory_space<vmem>>, vector<1x8x16xbf16>
    %4 = vector.shape_cast %3 : vector<1x8x16xbf16> to vector<8x16xbf16>
    %5 = arith.extf %4 : vector<8x16xbf16> to vector<8x16xf32>
    %c0_3 = arith.constant 0 : index
    %c0_4 = arith.constant 0 : index
    %c0_5 = arith.constant 0 : index
    %6 = vector.load %arg3[%c0_3, %c0_4, %c0_5] : memref<1x8x16xbf16, #tpu.memory_space<vmem>>, vector<1x8x16xbf16>
    %7 = vector.shape_cast %6 : vector<1x8x16xbf16> to vector<8x16xbf16>
    %8 = arith.extf %7 : vector<8x16xbf16> to vector<8x16xf32>
    %c0_6 = arith.constant 0 : index
    %c0_7 = arith.constant 0 : index
    %c0_8 = arith.constant 0 : index
    %9 = vector.load %arg4[%c0_6, %c0_7, %c0_8] : memref<1x8x32xbf16, #tpu.memory_space<vmem>>, vector<1x8x32xbf16>
    %10 = vector.shape_cast %9 : vector<1x8x32xbf16> to vector<8x32xbf16>
    %c0_9 = arith.constant 0 : index
    %c0_10 = arith.constant 0 : index
    %c0_11 = arith.constant 0 : index
    %11 = vector.load %arg5[%c0_9, %c0_10, %c0_11] : memref<1x8x16xf32, #tpu.memory_space<vmem>>, vector<1x8x16xf32>
    %12 = vector.shape_cast %11 : vector<1x8x16xf32> to vector<8x16xf32>
    %c0_12 = arith.constant 0 : index
    %c0_13 = arith.constant 0 : index
    %13 = vector.load %arg6[%c0_12, %c0_13] : memref<1x16xf32, #tpu.memory_space<vmem>>, vector<1x16xf32>
    %14 = tpu.iota {dimensions = array<i32: 0>} : vector<8x8xi32>
    %15 = tpu.iota {dimensions = array<i32: 1>} : vector<8x8xi32>
    %16 = arith.cmpi sle, %15, %14 : vector<8x8xi32>
    %17 = arith.extui %16 : vector<8x8xi1> to vector<8x8xi32>
    %18 = arith.sitofp %17 : vector<8x8xi32> to vector<8x8xf32>
    %19 = arith.cmpi slt, %15, %14 : vector<8x8xi32>
    %cst = arith.constant dense<0.000000e+00> : vector<8x16xf32>
    %20 = tpu.matmul %18, %12, %cst {dimension_numbers = #tpu.dot_dimension_numbers<[1], [0], [0], [1], [0, 0, 1, 1], [], []>} : vector<8x8xf32>, vector<8x16xf32>, vector<8x16xf32> -> vector<8x16xf32>
    %21 = arith.subf %20, %12 : vector<8x16xf32>
    %cst_14 = arith.constant dense<0.000000e+00> : vector<16xf32>
    %22 = vector.multi_reduction <add>, %12, %cst_14 [0] : vector<8x16xf32> to vector<16xf32>
    %23 = vector.shape_cast %22 : vector<16xf32> to vector<1x16xf32>
    %cst_15 = arith.constant 5.000000e-01 : f32
    %24 = vector.broadcast %cst_15 : f32 to vector<1x16xf32>
    %25 = arith.mulf %24, %23 : vector<1x16xf32>
    %26 = math.exp %25 : vector<1x16xf32>
    %27 = vector.broadcast %25 : vector<1x16xf32> to vector<8x16xf32>
    %28 = arith.subf %21, %27 : vector<8x16xf32>
    %29 = math.exp %28 : vector<8x16xf32>
    %30 = arith.mulf %5, %29 : vector<8x16xf32>
    %31 = vector.broadcast %25 : vector<1x16xf32> to vector<8x16xf32>
    %32 = arith.subf %31, %20 : vector<8x16xf32>
    %33 = math.exp %32 : vector<8x16xf32>
    %34 = arith.mulf %8, %33 : vector<8x16xf32>
    %35 = vector.broadcast %26 : vector<1x16xf32> to vector<8x16xf32>
    %36 = arith.mulf %30, %35 : vector<8x16xf32>
    %37 = vector.broadcast %26 : vector<1x16xf32> to vector<8x16xf32>
    %38 = arith.mulf %34, %37 : vector<8x16xf32>
    %39 = arith.mulf %26, %26 : vector<1x16xf32>
    %40 = vector.broadcast %13 : vector<1x16xf32> to vector<8x16xf32>
    %41 = arith.mulf %5, %40 : vector<8x16xf32>
    %42 = arith.mulf %41, %8 : vector<8x16xf32>
    %43 = arith.truncf %30 : vector<8x16xf32> to vector<8x16xbf16>
    %44 = arith.truncf %34 : vector<8x16xf32> to vector<8x16xbf16>
    %45 = arith.truncf %36 : vector<8x16xf32> to vector<8x16xbf16>
    %46 = arith.truncf %38 : vector<8x16xf32> to vector<8x16xbf16>
    %47 = vector.extract_strided_slice %10 {offsets = [0, 0], sizes = [8, 8], strides = [1, 1]} : vector<8x32xbf16> to vector<8x8xbf16>
    %48 = vector.extract_strided_slice %43 {offsets = [0, 0], sizes = [8, 4], strides = [1, 1]} : vector<8x16xbf16> to vector<8x4xbf16>
    %49 = vector.extract_strided_slice %44 {offsets = [0, 0], sizes = [8, 4], strides = [1, 1]} : vector<8x16xbf16> to vector<8x4xbf16>
    %cst_16 = arith.constant dense<0.000000e+00> : vector<8x8xf32>
    %50 = tpu.matmul %48, %49, %cst_16 {dimension_numbers = #tpu.dot_dimension_numbers<[1], [1], [0], [0], [0, 0, 1, 0], [], []>} : vector<8x4xbf16>, vector<8x4xbf16>, vector<8x8xf32> -> vector<8x8xf32>
    %cst_17 = arith.constant 0.000000e+00 : f32
    %51 = vector.broadcast %cst_17 : f32 to vector<8x8xf32>
    %52 = arith.select %19, %50, %51 : vector<8x8xi1>, vector<8x8xf32>
    %53 = arith.truncf %52 : vector<8x8xf32> to vector<8x8xbf16>
    %cst_18 = arith.constant dense<0.000000e+00> : vector<8x8xf32>
    %54 = tpu.matmul %53, %47, %cst_18 {dimension_numbers = #tpu.dot_dimension_numbers<[1], [0], [0], [1], [0, 0, 1, 1], [], []>} : vector<8x8xbf16>, vector<8x8xbf16>, vector<8x8xf32> -> vector<8x8xf32>
    %55 = vector.extract_strided_slice %42 {offsets = [0, 0], sizes = [8, 4], strides = [1, 1]} : vector<8x16xf32> to vector<8x4xf32>
    %cst_19 = arith.constant dense<0.000000e+00> : vector<8xf32>
    %56 = vector.multi_reduction <add>, %55, %cst_19 [1] : vector<8x4xf32> to vector<8xf32>
    %57 = vector.shape_cast %56 : vector<8xf32> to vector<8x1xf32>
    %c0_20 = arith.constant 0 : index
    %c0_21 = arith.constant 0 : index
    %c0_22 = arith.constant 0 : index
    %58 = vector.load %arg9[%c0_20, %c0_21, %c0_22] : memref<4x8x4xf32, #tpu.memory_space<vmem>>, vector<1x8x4xf32>
    %59 = vector.shape_cast %58 : vector<1x8x4xf32> to vector<8x4xf32>
    %60 = vector.extract_strided_slice %45 {offsets = [0, 0], sizes = [8, 4], strides = [1, 1]} : vector<8x16xbf16> to vector<8x4xbf16>
    %61 = arith.truncf %59 : vector<8x4xf32> to vector<8x4xbf16>
    %cst_23 = arith.constant dense<0.000000e+00> : vector<8x8xf32>
    %62 = tpu.matmul %60, %61, %cst_23 {dimension_numbers = #tpu.dot_dimension_numbers<[1], [1], [0], [0], [0, 0, 1, 0], [], []>} : vector<8x4xbf16>, vector<8x4xbf16>, vector<8x8xf32> -> vector<8x8xf32>
    %63 = arith.addf %62, %54 : vector<8x8xf32>
    %64 = arith.extf %47 : vector<8x8xbf16> to vector<8x8xf32>
    %65 = vector.broadcast %57 : vector<8x1xf32> to vector<8x8xf32>
    %66 = arith.mulf %65, %64 : vector<8x8xf32>
    %67 = arith.addf %63, %66 : vector<8x8xf32>
    %68 = arith.truncf %67 : vector<8x8xf32> to vector<8x8xbf16>
    %c0_24 = arith.constant 0 : index
    %c0_25 = arith.constant 0 : index
    %c0_26 = arith.constant 0 : index
    %69 = vector.load %arg7[%c0_24, %c0_25, %c0_26] : memref<1x8x32xbf16, #tpu.memory_space<vmem>>, vector<1x8x8xbf16>
    %70 = vector.shape_cast %69 : vector<1x8x8xbf16> to vector<8x8xbf16>
    %71 = vector.shape_cast %68 : vector<8x8xbf16> to vector<1x8x8xbf16>
    tpu.vector_store %arg7[%c0_24, %c0_25, %c0_26], %71 {strides = array<i32>} : memref<1x8x32xbf16, #tpu.memory_space<vmem>>, vector<1x8x8xbf16>,
    %72 = vector.extract_strided_slice %46 {offsets = [0, 0], sizes = [8, 4], strides = [1, 1]} : vector<8x16xbf16> to vector<8x4xbf16>
    %cst_27 = arith.constant dense<0.000000e+00> : vector<8x4xf32>
    %73 = tpu.matmul %47, %72, %cst_27 {dimension_numbers = #tpu.dot_dimension_numbers<[0], [0], [1], [1], [0, 1, 1, 1], [], []>} : vector<8x8xbf16>, vector<8x4xbf16>, vector<8x4xf32> -> vector<8x4xf32>
    %74 = vector.extract_strided_slice %39 {offsets = [0, 0], sizes = [1, 4], strides = [1, 1]} : vector<1x16xf32> to vector<1x4xf32>
    %75 = vector.broadcast %74 : vector<1x4xf32> to vector<8x4xf32>
    %76 = arith.mulf %75, %59 : vector<8x4xf32>
    %77 = arith.addf %76, %73 : vector<8x4xf32>
    %c0_28 = arith.constant 0 : index
    %c0_29 = arith.constant 0 : index
    %c0_30 = arith.constant 0 : index
    %78 = vector.load %arg9[%c0_28, %c0_29, %c0_30] : memref<4x8x4xf32, #tpu.memory_space<vmem>>, vector<1x8x4xf32>
    %79 = vector.shape_cast %78 : vector<1x8x4xf32> to vector<8x4xf32>
    %80 = vector.shape_cast %77 : vector<8x4xf32> to vector<1x8x4xf32>
    tpu.vector_store %arg9[%c0_28, %c0_29, %c0_30], %80 {strides = array<i32>} : memref<4x8x4xf32, #tpu.memory_space<vmem>>, vector<1x8x4xf32>,
    %81 = vector.extract_strided_slice %10 {offsets = [0, 8], sizes = [8, 8], strides = [1, 1]} : vector<8x32xbf16> to vector<8x8xbf16>
    %82 = vector.extract_strided_slice %43 {offsets = [0, 4], sizes = [8, 4], strides = [1, 1]} : vector<8x16xbf16> to vector<8x4xbf16>
    %83 = vector.extract_strided_slice %44 {offsets = [0, 4], sizes = [8, 4], strides = [1, 1]} : vector<8x16xbf16> to vector<8x4xbf16>
    %cst_31 = arith.constant dense<0.000000e+00> : vector<8x8xf32>
    %84 = tpu.matmul %82, %83, %cst_31 {dimension_numbers = #tpu.dot_dimension_numbers<[1], [1], [0], [0], [0, 0, 1, 0], [], []>} : vector<8x4xbf16>, vector<8x4xbf16>, vector<8x8xf32> -> vector<8x8xf32>
    %cst_32 = arith.constant 0.000000e+00 : f32
    %85 = vector.broadcast %cst_32 : f32 to vector<8x8xf32>
    %86 = arith.select %19, %84, %85 : vector<8x8xi1>, vector<8x8xf32>
    %87 = arith.truncf %86 : vector<8x8xf32> to vector<8x8xbf16>
    %cst_33 = arith.constant dense<0.000000e+00> : vector<8x8xf32>
    %88 = tpu.matmul %87, %81, %cst_33 {dimension_numbers = #tpu.dot_dimension_numbers<[1], [0], [0], [1], [0, 0, 1, 1], [], []>} : vector<8x8xbf16>, vector<8x8xbf16>, vector<8x8xf32> -> vector<8x8xf32>
    %89 = vector.extract_strided_slice %42 {offsets = [0, 4], sizes = [8, 4], strides = [1, 1]} : vector<8x16xf32> to vector<8x4xf32>
    %cst_34 = arith.constant dense<0.000000e+00> : vector<8xf32>
    %90 = vector.multi_reduction <add>, %89, %cst_34 [1] : vector<8x4xf32> to vector<8xf32>
    %91 = vector.shape_cast %90 : vector<8xf32> to vector<8x1xf32>
    %c1 = arith.constant 1 : index
    %c0_35 = arith.constant 0 : index
    %c0_36 = arith.constant 0 : index
    %92 = vector.load %arg9[%c1, %c0_35, %c0_36] : memref<4x8x4xf32, #tpu.memory_space<vmem>>, vector<1x8x4xf32>
    %93 = vector.shape_cast %92 : vector<1x8x4xf32> to vector<8x4xf32>
    %94 = vector.extract_strided_slice %45 {offsets = [0, 4], sizes = [8, 4], strides = [1, 1]} : vector<8x16xbf16> to vector<8x4xbf16>
    %95 = arith.truncf %93 : vector<8x4xf32> to vector<8x4xbf16>
    %cst_37 = arith.constant dense<0.000000e+00> : vector<8x8xf32>
    %96 = tpu.matmul %94, %95, %cst_37 {dimension_numbers = #tpu.dot_dimension_numbers<[1], [1], [0], [0], [0, 0, 1, 0], [], []>} : vector<8x4xbf16>, vector<8x4xbf16>, vector<8x8xf32> -> vector<8x8xf32>
    %97 = arith.addf %96, %88 : vector<8x8xf32>
    %98 = arith.extf %81 : vector<8x8xbf16> to vector<8x8xf32>
    %99 = vector.broadcast %91 : vector<8x1xf32> to vector<8x8xf32>
    %100 = arith.mulf %99, %98 : vector<8x8xf32>
    %101 = arith.addf %97, %100 : vector<8x8xf32>
    %102 = arith.truncf %101 : vector<8x8xf32> to vector<8x8xbf16>
    %c0_38 = arith.constant 0 : index
    %c0_39 = arith.constant 0 : index
    %c8 = arith.constant 8 : index
    %103 = vector.load %arg7[%c0_38, %c0_39, %c8] : memref<1x8x32xbf16, #tpu.memory_space<vmem>>, vector<1x8x8xbf16>
    %104 = vector.shape_cast %103 : vector<1x8x8xbf16> to vector<8x8xbf16>
    %105 = vector.shape_cast %102 : vector<8x8xbf16> to vector<1x8x8xbf16>
    tpu.vector_store %arg7[%c0_38, %c0_39, %c8], %105 {strides = array<i32>} : memref<1x8x32xbf16, #tpu.memory_space<vmem>>, vector<1x8x8xbf16>,
    %106 = vector.extract_strided_slice %46 {offsets = [0, 4], sizes = [8, 4], strides = [1, 1]} : vector<8x16xbf16> to vector<8x4xbf16>
    %cst_40 = arith.constant dense<0.000000e+00> : vector<8x4xf32>
    %107 = tpu.matmul %81, %106, %cst_40 {dimension_numbers = #tpu.dot_dimension_numbers<[0], [0], [1], [1], [0, 1, 1, 1], [], []>} : vector<8x8xbf16>, vector<8x4xbf16>, vector<8x4xf32> -> vector<8x4xf32>
    %108 = vector.extract_strided_slice %39 {offsets = [0, 4], sizes = [1, 4], strides = [1, 1]} : vector<1x16xf32> to vector<1x4xf32>
    %109 = vector.broadcast %108 : vector<1x4xf32> to vector<8x4xf32>
    %110 = arith.mulf %109, %93 : vector<8x4xf32>
    %111 = arith.addf %110, %107 : vector<8x4xf32>
    %c1_41 = arith.constant 1 : index
    %c0_42 = arith.constant 0 : index
    %c0_43 = arith.constant 0 : index
    %112 = vector.load %arg9[%c1_41, %c0_42, %c0_43] : memref<4x8x4xf32, #tpu.memory_space<vmem>>, vector<1x8x4xf32>
    %113 = vector.shape_cast %112 : vector<1x8x4xf32> to vector<8x4xf32>
    %114 = vector.shape_cast %111 : vector<8x4xf32> to vector<1x8x4xf32>
    tpu.vector_store %arg9[%c1_41, %c0_42, %c0_43], %114 {strides = array<i32>} : memref<4x8x4xf32, #tpu.memory_space<vmem>>, vector<1x8x4xf32>,
    %115 = vector.extract_strided_slice %10 {offsets = [0, 16], sizes = [8, 8], strides = [1, 1]} : vector<8x32xbf16> to vector<8x8xbf16>
    %116 = vector.extract_strided_slice %43 {offsets = [0, 8], sizes = [8, 4], strides = [1, 1]} : vector<8x16xbf16> to vector<8x4xbf16>
    %117 = vector.extract_strided_slice %44 {offsets = [0, 8], sizes = [8, 4], strides = [1, 1]} : vector<8x16xbf16> to vector<8x4xbf16>
    %cst_44 = arith.constant dense<0.000000e+00> : vector<8x8xf32>
    %118 = tpu.matmul %116, %117, %cst_44 {dimension_numbers = #tpu.dot_dimension_numbers<[1], [1], [0], [0], [0, 0, 1, 0], [], []>} : vector<8x4xbf16>, vector<8x4xbf16>, vector<8x8xf32> -> vector<8x8xf32>
    %cst_45 = arith.constant 0.000000e+00 : f32
    %119 = vector.broadcast %cst_45 : f32 to vector<8x8xf32>
    %120 = arith.select %19, %118, %119 : vector<8x8xi1>, vector<8x8xf32>
    %121 = arith.truncf %120 : vector<8x8xf32> to vector<8x8xbf16>
    %cst_46 = arith.constant dense<0.000000e+00> : vector<8x8xf32>
    %122 = tpu.matmul %121, %115, %cst_46 {dimension_numbers = #tpu.dot_dimension_numbers<[1], [0], [0], [1], [0, 0, 1, 1], [], []>} : vector<8x8xbf16>, vector<8x8xbf16>, vector<8x8xf32> -> vector<8x8xf32>
    %123 = vector.extract_strided_slice %42 {offsets = [0, 8], sizes = [8, 4], strides = [1, 1]} : vector<8x16xf32> to vector<8x4xf32>
    %cst_47 = arith.constant dense<0.000000e+00> : vector<8xf32>
    %124 = vector.multi_reduction <add>, %123, %cst_47 [1] : vector<8x4xf32> to vector<8xf32>
    %125 = vector.shape_cast %124 : vector<8xf32> to vector<8x1xf32>
    %c2 = arith.constant 2 : index
    %c0_48 = arith.constant 0 : index
    %c0_49 = arith.constant 0 : index
    %126 = vector.load %arg9[%c2, %c0_48, %c0_49] : memref<4x8x4xf32, #tpu.memory_space<vmem>>, vector<1x8x4xf32>
    %127 = vector.shape_cast %126 : vector<1x8x4xf32> to vector<8x4xf32>
    %128 = vector.extract_strided_slice %45 {offsets = [0, 8], sizes = [8, 4], strides = [1, 1]} : vector<8x16xbf16> to vector<8x4xbf16>
    %129 = arith.truncf %127 : vector<8x4xf32> to vector<8x4xbf16>
    %cst_50 = arith.constant dense<0.000000e+00> : vector<8x8xf32>
    %130 = tpu.matmul %128, %129, %cst_50 {dimension_numbers = #tpu.dot_dimension_numbers<[1], [1], [0], [0], [0, 0, 1, 0], [], []>} : vector<8x4xbf16>, vector<8x4xbf16>, vector<8x8xf32> -> vector<8x8xf32>
    %131 = arith.addf %130, %122 : vector<8x8xf32>
    %132 = arith.extf %115 : vector<8x8xbf16> to vector<8x8xf32>
    %133 = vector.broadcast %125 : vector<8x1xf32> to vector<8x8xf32>
    %134 = arith.mulf %133, %132 : vector<8x8xf32>
    %135 = arith.addf %131, %134 : vector<8x8xf32>
    %136 = arith.truncf %135 : vector<8x8xf32> to vector<8x8xbf16>
    %c0_51 = arith.constant 0 : index
    %c0_52 = arith.constant 0 : index
    %c16 = arith.constant 16 : index
    %137 = vector.load %arg7[%c0_51, %c0_52, %c16] : memref<1x8x32xbf16, #tpu.memory_space<vmem>>, vector<1x8x8xbf16>
    %138 = vector.shape_cast %137 : vector<1x8x8xbf16> to vector<8x8xbf16>
    %139 = vector.shape_cast %136 : vector<8x8xbf16> to vector<1x8x8xbf16>
    tpu.vector_store %arg7[%c0_51, %c0_52, %c16], %139 {strides = array<i32>} : memref<1x8x32xbf16, #tpu.memory_space<vmem>>, vector<1x8x8xbf16>,
    %140 = vector.extract_strided_slice %46 {offsets = [0, 8], sizes = [8, 4], strides = [1, 1]} : vector<8x16xbf16> to vector<8x4xbf16>
    %cst_53 = arith.constant dense<0.000000e+00> : vector<8x4xf32>
    %141 = tpu.matmul %115, %140, %cst_53 {dimension_numbers = #tpu.dot_dimension_numbers<[0], [0], [1], [1], [0, 1, 1, 1], [], []>} : vector<8x8xbf16>, vector<8x4xbf16>, vector<8x4xf32> -> vector<8x4xf32>
    %142 = vector.extract_strided_slice %39 {offsets = [0, 8], sizes = [1, 4], strides = [1, 1]} : vector<1x16xf32> to vector<1x4xf32>
    %143 = vector.broadcast %142 : vector<1x4xf32> to vector<8x4xf32>
    %144 = arith.mulf %143, %127 : vector<8x4xf32>
    %145 = arith.addf %144, %141 : vector<8x4xf32>
    %c2_54 = arith.constant 2 : index
    %c0_55 = arith.constant 0 : index
    %c0_56 = arith.constant 0 : index
    %146 = vector.load %arg9[%c2_54, %c0_55, %c0_56] : memref<4x8x4xf32, #tpu.memory_space<vmem>>, vector<1x8x4xf32>
    %147 = vector.shape_cast %146 : vector<1x8x4xf32> to vector<8x4xf32>
    %148 = vector.shape_cast %145 : vector<8x4xf32> to vector<1x8x4xf32>
    tpu.vector_store %arg9[%c2_54, %c0_55, %c0_56], %148 {strides = array<i32>} : memref<4x8x4xf32, #tpu.memory_space<vmem>>, vector<1x8x4xf32>,
    %149 = vector.extract_strided_slice %10 {offsets = [0, 24], sizes = [8, 8], strides = [1, 1]} : vector<8x32xbf16> to vector<8x8xbf16>
    %150 = vector.extract_strided_slice %43 {offsets = [0, 12], sizes = [8, 4], strides = [1, 1]} : vector<8x16xbf16> to vector<8x4xbf16>
    %151 = vector.extract_strided_slice %44 {offsets = [0, 12], sizes = [8, 4], strides = [1, 1]} : vector<8x16xbf16> to vector<8x4xbf16>
    %cst_57 = arith.constant dense<0.000000e+00> : vector<8x8xf32>
    %152 = tpu.matmul %150, %151, %cst_57 {dimension_numbers = #tpu.dot_dimension_numbers<[1], [1], [0], [0], [0, 0, 1, 0], [], []>} : vector<8x4xbf16>, vector<8x4xbf16>, vector<8x8xf32> -> vector<8x8xf32>
    %cst_58 = arith.constant 0.000000e+00 : f32
    %153 = vector.broadcast %cst_58 : f32 to vector<8x8xf32>
    %154 = arith.select %19, %152, %153 : vector<8x8xi1>, vector<8x8xf32>
    %155 = arith.truncf %154 : vector<8x8xf32> to vector<8x8xbf16>
    %cst_59 = arith.constant dense<0.000000e+00> : vector<8x8xf32>
    %156 = tpu.matmul %155, %149, %cst_59 {dimension_numbers = #tpu.dot_dimension_numbers<[1], [0], [0], [1], [0, 0, 1, 1], [], []>} : vector<8x8xbf16>, vector<8x8xbf16>, vector<8x8xf32> -> vector<8x8xf32>
    %157 = vector.extract_strided_slice %42 {offsets = [0, 12], sizes = [8, 4], strides = [1, 1]} : vector<8x16xf32> to vector<8x4xf32>
    %cst_60 = arith.constant dense<0.000000e+00> : vector<8xf32>
    %158 = vector.multi_reduction <add>, %157, %cst_60 [1] : vector<8x4xf32> to vector<8xf32>
    %159 = vector.shape_cast %158 : vector<8xf32> to vector<8x1xf32>
    %c3 = arith.constant 3 : index
    %c0_61 = arith.constant 0 : index
    %c0_62 = arith.constant 0 : index
    %160 = vector.load %arg9[%c3, %c0_61, %c0_62] : memref<4x8x4xf32, #tpu.memory_space<vmem>>, vector<1x8x4xf32>
    %161 = vector.shape_cast %160 : vector<1x8x4xf32> to vector<8x4xf32>
    %162 = vector.extract_strided_slice %45 {offsets = [0, 12], sizes = [8, 4], strides = [1, 1]} : vector<8x16xbf16> to vector<8x4xbf16>
    %163 = arith.truncf %161 : vector<8x4xf32> to vector<8x4xbf16>
    %cst_63 = arith.constant dense<0.000000e+00> : vector<8x8xf32>
    %164 = tpu.matmul %162, %163, %cst_63 {dimension_numbers = #tpu.dot_dimension_numbers<[1], [1], [0], [0], [0, 0, 1, 0], [], []>} : vector<8x4xbf16>, vector<8x4xbf16>, vector<8x8xf32> -> vector<8x8xf32>
    %165 = arith.addf %164, %156 : vector<8x8xf32>
    %166 = arith.extf %149 : vector<8x8xbf16> to vector<8x8xf32>
    %167 = vector.broadcast %159 : vector<8x1xf32> to vector<8x8xf32>
    %168 = arith.mulf %167, %166 : vector<8x8xf32>
    %169 = arith.addf %165, %168 : vector<8x8xf32>
    %170 = arith.truncf %169 : vector<8x8xf32> to vector<8x8xbf16>
    %c0_64 = arith.constant 0 : index
    %c0_65 = arith.constant 0 : index
    %c24 = arith.constant 24 : index
    %171 = vector.load %arg7[%c0_64, %c0_65, %c24] : memref<1x8x32xbf16, #tpu.memory_space<vmem>>, vector<1x8x8xbf16>
    %172 = vector.shape_cast %171 : vector<1x8x8xbf16> to vector<8x8xbf16>
    %173 = vector.shape_cast %170 : vector<8x8xbf16> to vector<1x8x8xbf16>
    tpu.vector_store %arg7[%c0_64, %c0_65, %c24], %173 {strides = array<i32>} : memref<1x8x32xbf16, #tpu.memory_space<vmem>>, vector<1x8x8xbf16>,
    %174 = vector.extract_strided_slice %46 {offsets = [0, 12], sizes = [8, 4], strides = [1, 1]} : vector<8x16xbf16> to vector<8x4xbf16>
    %cst_66 = arith.constant dense<0.000000e+00> : vector<8x4xf32>
    %175 = tpu.matmul %149, %174, %cst_66 {dimension_numbers = #tpu.dot_dimension_numbers<[0], [0], [1], [1], [0, 1, 1, 1], [], []>} : vector<8x8xbf16>, vector<8x4xbf16>, vector<8x4xf32> -> vector<8x4xf32>
    %176 = vector.extract_strided_slice %39 {offsets = [0, 12], sizes = [1, 4], strides = [1, 1]} : vector<1x16xf32> to vector<1x4xf32>
    %177 = vector.broadcast %176 : vector<1x4xf32> to vector<8x4xf32>
    %178 = arith.mulf %177, %161 : vector<8x4xf32>
    %179 = arith.addf %178, %175 : vector<8x4xf32>
    %c3_67 = arith.constant 3 : index
    %c0_68 = arith.constant 0 : index
    %c0_69 = arith.constant 0 : index
    %180 = vector.load %arg9[%c3_67, %c0_68, %c0_69] : memref<4x8x4xf32, #tpu.memory_space<vmem>>, vector<1x8x4xf32>
    %181 = vector.shape_cast %180 : vector<1x8x4xf32> to vector<8x4xf32>
    %182 = vector.shape_cast %179 : vector<8x4xf32> to vector<1x8x4xf32>
    tpu.vector_store %arg9[%c3_67, %c0_68, %c0_69], %182 {strides = array<i32>} : memref<4x8x4xf32, #tpu.memory_space<vmem>>, vector<1x8x4xf32>,
    %c0_70 = arith.constant 0 : index
    %c0_71 = arith.constant 0 : index
    %c0_72 = arith.constant 0 : index
    %183 = vector.load %arg9[%c0_70, %c0_71, %c0_72] : memref<4x8x4xf32, #tpu.memory_space<vmem>>, vector<4x8x4xf32>
    %c0_73 = arith.constant 0 : index
    %c0_74 = arith.constant 0 : index
    %c0_75 = arith.constant 0 : index
    %c0_76 = arith.constant 0 : index
    %184 = vector.load %arg8[%c0_73, %c0_74, %c0_75, %c0_76] : memref<1x4x8x4xf32, #tpu.memory_space<vmem>>, vector<1x4x8x4xf32>
    %185 = vector.shape_cast %184 : vector<1x4x8x4xf32> to vector<4x8x4xf32>
    %186 = vector.shape_cast %183 : vector<4x8x4xf32> to vector<1x4x8x4xf32>
    tpu.vector_store %arg8[%c0_73, %c0_74, %c0_75, %c0_76], %186 {strides = array<i32>} : memref<1x4x8x4xf32, #tpu.memory_space<vmem>>, vector<1x4x8x4xf32>,
    return
  }
  func.func @transform_0(%arg0: i32, %arg1: i32) -> (i32, i32, i32) {
    %c0_i32 = arith.constant 0 : i32
    %c0_i32_0 = arith.constant 0 : i32
    return %arg0, %arg1, %c0_i32 : i32, i32, i32
  }
  func.func @transform_1(%arg0: i32, %arg1: i32) -> (i32, i32, i32) {
    %c0_i32 = arith.constant 0 : i32
    %c0_i32_0 = arith.constant 0 : i32
    return %arg0, %arg1, %c0_i32 : i32, i32, i32
  }
  func.func @transform_2(%arg0: i32, %arg1: i32) -> (i32, i32, i32) {
    %c0_i32 = arith.constant 0 : i32
    %c0_i32_0 = arith.constant 0 : i32
    return %arg0, %arg1, %c0_i32 : i32, i32, i32
  }
  func.func @transform_3(%arg0: i32, %arg1: i32) -> (i32, i32, i32) {
    %c0_i32 = arith.constant 0 : i32
    %c0_i32_0 = arith.constant 0 : i32
    return %arg0, %arg1, %c0_i32 : i32, i32, i32
  }
  func.func @transform_4(%arg0: i32, %arg1: i32) -> (i32, i32) {
    %c0_i32 = arith.constant 0 : i32
    %c0_i32_0 = arith.constant 0 : i32
    %c0_i32_1 = arith.constant 0 : i32
    return %c0_i32, %c0_i32_0 : i32, i32
  }
  func.func @transform_5(%arg0: i32, %arg1: i32) -> (i32, i32, i32) {
    %c0_i32 = arith.constant 0 : i32
    %c0_i32_0 = arith.constant 0 : i32
    return %arg0, %arg1, %c0_i32 : i32, i32, i32
  }
  func.func @transform_6(%arg0: i32, %arg1: i32) -> (i32, i32, i32, i32) {
    %c0_i32 = arith.constant 0 : i32
    %c0_i32_0 = arith.constant 0 : i32
    %c0_i32_1 = arith.constant 0 : i32
    %c0_i32_2 = arith.constant 0 : i32
    return %arg0, %c0_i32, %c0_i32_0, %c0_i32_1 : i32, i32, i32, i32
  }
}

module attributes {stable_mosaic.version = 11 : i64} {
  func.func @_gnorm_gate_oproj_kernel(%arg0: i32, %arg1: memref<16x32xbf16, #tpu.memory_space<vmem>>, %arg2: memref<16x32xbf16, #tpu.memory_space<vmem>>, %arg3: memref<1x32xf32, #tpu.memory_space<vmem>>, %arg4: memref<1x32xf32, #tpu.memory_space<vmem>>, %arg5: memref<32x4xf32, #tpu.memory_space<vmem>>, %arg6: memref<32x32xbf16, #tpu.memory_space<vmem>>, %arg7: memref<16x32xf32, #tpu.memory_space<vmem>>) attributes {dimension_semantics = [#tpu.dimension_semantics<parallel>], iteration_bounds = array<i64: 1>, scalar_prefetch = 0 : i64, scratch_operands = 0 : i64, tpu.core_type = #tpu.core_type<tc>, window_params = [{transform_indices = @transform_0, window_bounds = array<i64: 16, 32>}, {transform_indices = @transform_1, window_bounds = array<i64: 16, 32>}, {pipeline_mode = #tpu.pipeline_mode<synchronous>, transform_indices = @transform_2, window_bounds = array<i64: 1, 32>}, {pipeline_mode = #tpu.pipeline_mode<synchronous>, transform_indices = @transform_3, window_bounds = array<i64: 1, 32>}, {pipeline_mode = #tpu.pipeline_mode<synchronous>, transform_indices = @transform_4, window_bounds = array<i64: 32, 4>}, {pipeline_mode = #tpu.pipeline_mode<synchronous>, transform_indices = @transform_5, window_bounds = array<i64: 32, 32>}, {transform_indices = @transform_6, window_bounds = array<i64: 16, 32>}]} {
    %c0 = arith.constant 0 : index
    %c0_0 = arith.constant 0 : index
    %0 = vector.load %arg1[%c0, %c0_0] : memref<16x32xbf16, #tpu.memory_space<vmem>>, vector<16x32xbf16>
    %1 = arith.extf %0 : vector<16x32xbf16> to vector<16x32xf32>
    %c0_1 = arith.constant 0 : index
    %c0_2 = arith.constant 0 : index
    %2 = vector.load %arg2[%c0_1, %c0_2] : memref<16x32xbf16, #tpu.memory_space<vmem>>, vector<16x32xbf16>
    %3 = arith.extf %2 : vector<16x32xbf16> to vector<16x32xf32>
    %c0_3 = arith.constant 0 : index
    %c0_4 = arith.constant 0 : index
    %4 = vector.load %arg5[%c0_3, %c0_4] : memref<32x4xf32, #tpu.memory_space<vmem>>, vector<32x4xf32>
    %cst = arith.constant dense<0.000000e+00> : vector<16x4xf32>
    %5 = tpu.matmul %1, %4, %cst {dimension_numbers = #tpu.dot_dimension_numbers<[1], [0], [0], [1], [0, 0, 1, 1], [], []>} : vector<16x32xf32>, vector<32x4xf32>, vector<16x4xf32> -> vector<16x4xf32>
    %cst_5 = arith.constant 1.250000e-01 : f32
    %6 = vector.broadcast %cst_5 : f32 to vector<16x4xf32>
    %7 = arith.mulf %5, %6 : vector<16x4xf32>
    %cst_6 = arith.constant dense<0.000000e+00> : vector<16x32xf32>
    %8 = tpu.matmul %7, %4, %cst_6 {dimension_numbers = #tpu.dot_dimension_numbers<[1], [1], [0], [0], [0, 0, 1, 0], [], []>} : vector<16x4xf32>, vector<32x4xf32>, vector<16x32xf32> -> vector<16x32xf32>
    %9 = arith.subf %1, %8 : vector<16x32xf32>
    %10 = arith.mulf %9, %9 : vector<16x32xf32>
    %cst_7 = arith.constant dense<0.000000e+00> : vector<16x4xf32>
    %11 = tpu.matmul %10, %4, %cst_7 {dimension_numbers = #tpu.dot_dimension_numbers<[1], [0], [0], [1], [0, 0, 1, 1], [], []>} : vector<16x32xf32>, vector<32x4xf32>, vector<16x4xf32> -> vector<16x4xf32>
    %cst_8 = arith.constant 1.250000e-01 : f32
    %12 = vector.broadcast %cst_8 : f32 to vector<16x4xf32>
    %13 = arith.mulf %11, %12 : vector<16x4xf32>
    %cst_9 = arith.constant 9.99999974E-6 : f32
    %14 = vector.broadcast %cst_9 : f32 to vector<16x4xf32>
    %15 = arith.addf %13, %14 : vector<16x4xf32>
    %16 = math.rsqrt %15 : vector<16x4xf32>
    %cst_10 = arith.constant dense<0.000000e+00> : vector<16x32xf32>
    %17 = tpu.matmul %16, %4, %cst_10 {dimension_numbers = #tpu.dot_dimension_numbers<[1], [1], [0], [0], [0, 0, 1, 0], [], []>} : vector<16x4xf32>, vector<32x4xf32>, vector<16x32xf32> -> vector<16x32xf32>
    %18 = arith.mulf %9, %17 : vector<16x32xf32>
    %c0_11 = arith.constant 0 : index
    %c0_12 = arith.constant 0 : index
    %19 = vector.load %arg3[%c0_11, %c0_12] : memref<1x32xf32, #tpu.memory_space<vmem>>, vector<1x32xf32>
    %20 = vector.broadcast %19 : vector<1x32xf32> to vector<16x32xf32>
    %21 = arith.mulf %18, %20 : vector<16x32xf32>
    %c0_13 = arith.constant 0 : index
    %c0_14 = arith.constant 0 : index
    %22 = vector.load %arg4[%c0_13, %c0_14] : memref<1x32xf32, #tpu.memory_space<vmem>>, vector<1x32xf32>
    %23 = vector.broadcast %22 : vector<1x32xf32> to vector<16x32xf32>
    %24 = arith.addf %21, %23 : vector<16x32xf32>
    %cst_15 = arith.constant 0.000000e+00 : f32
    %25 = vector.broadcast %cst_15 : f32 to vector<16x32xf32>
    %26 = arith.subf %25, %3 : vector<16x32xf32>
    %27 = math.exp %26 : vector<16x32xf32>
    %cst_16 = arith.constant 1.000000e+00 : f32
    %28 = vector.broadcast %cst_16 : f32 to vector<16x32xf32>
    %29 = arith.addf %28, %27 : vector<16x32xf32>
    %30 = tpu.reciprocal %29 {approx = true} : vector<16x32xf32> -> vector<16x32xf32>
    %31 = arith.mulf %3, %30 : vector<16x32xf32>
    %32 = arith.mulf %24, %31 : vector<16x32xf32>
    %33 = arith.truncf %32 : vector<16x32xf32> to vector<16x32xbf16>
    %c0_17 = arith.constant 0 : index
    %c0_18 = arith.constant 0 : index
    %34 = vector.load %arg6[%c0_17, %c0_18] : memref<32x32xbf16, #tpu.memory_space<vmem>>, vector<32x32xbf16>
    %cst_19 = arith.constant dense<0.000000e+00> : vector<16x32xf32>
    %35 = tpu.matmul %33, %34, %cst_19 {dimension_numbers = #tpu.dot_dimension_numbers<[1], [0], [0], [1], [0, 0, 1, 1], [], []>} : vector<16x32xbf16>, vector<32x32xbf16>, vector<16x32xf32> -> vector<16x32xf32>
    %c0_20 = arith.constant 0 : index
    %c0_21 = arith.constant 0 : index
    %36 = vector.load %arg7[%c0_20, %c0_21] : memref<16x32xf32, #tpu.memory_space<vmem>>, vector<16x32xf32>
    tpu.vector_store %arg7[%c0_20, %c0_21], %35 {strides = array<i32>} : memref<16x32xf32, #tpu.memory_space<vmem>>, vector<16x32xf32>,
    return
  }
  func.func @transform_0(%arg0: i32) -> (i32, i32) {
    %c0_i32 = arith.constant 0 : i32
    %c0_i32_0 = arith.constant 0 : i32
    return %arg0, %c0_i32 : i32, i32
  }
  func.func @transform_1(%arg0: i32) -> (i32, i32) {
    %c0_i32 = arith.constant 0 : i32
    %c0_i32_0 = arith.constant 0 : i32
    return %arg0, %c0_i32 : i32, i32
  }
  func.func @transform_2(%arg0: i32) -> (i32, i32) {
    %c0_i32 = arith.constant 0 : i32
    %c0_i32_0 = arith.constant 0 : i32
    %c0_i32_1 = arith.constant 0 : i32
    return %c0_i32, %c0_i32_0 : i32, i32
  }
  func.func @transform_3(%arg0: i32) -> (i32, i32) {
    %c0_i32 = arith.constant 0 : i32
    %c0_i32_0 = arith.constant 0 : i32
    %c0_i32_1 = arith.constant 0 : i32
    return %c0_i32, %c0_i32_0 : i32, i32
  }
  func.func @transform_4(%arg0: i32) -> (i32, i32) {
    %c0_i32 = arith.constant 0 : i32
    %c0_i32_0 = arith.constant 0 : i32
    %c0_i32_1 = arith.constant 0 : i32
    return %c0_i32, %c0_i32_0 : i32, i32
  }
  func.func @transform_5(%arg0: i32) -> (i32, i32) {
    %c0_i32 = arith.constant 0 : i32
    %c0_i32_0 = arith.constant 0 : i32
    %c0_i32_1 = arith.constant 0 : i32
    return %c0_i32, %c0_i32_0 : i32, i32
  }
  func.func @transform_6(%arg0: i32) -> (i32, i32) {
    %c0_i32 = arith.constant 0 : i32
    %c0_i32_0 = arith.constant 0 : i32
    return %arg0, %c0_i32 : i32, i32
  }
}

module attributes {stable_mosaic.version = 11 : i64} {
  func.func @_add_ln_kernel(%arg0: i32, %arg1: memref<16x32xf32, #tpu.memory_space<vmem>>, %arg2: memref<16x32xf32, #tpu.memory_space<vmem>>, %arg3: memref<1x32xf32, #tpu.memory_space<vmem>>, %arg4: memref<1x32xf32, #tpu.memory_space<vmem>>, %arg5: memref<16x32xf32, #tpu.memory_space<vmem>>, %arg6: memref<16x32xbf16, #tpu.memory_space<vmem>>) attributes {dimension_semantics = [#tpu.dimension_semantics<parallel>], iteration_bounds = array<i64: 1>, scalar_prefetch = 0 : i64, scratch_operands = 0 : i64, tpu.core_type = #tpu.core_type<tc>, window_params = [{transform_indices = @transform_0, window_bounds = array<i64: 16, 32>}, {transform_indices = @transform_1, window_bounds = array<i64: 16, 32>}, {pipeline_mode = #tpu.pipeline_mode<synchronous>, transform_indices = @transform_2, window_bounds = array<i64: 1, 32>}, {pipeline_mode = #tpu.pipeline_mode<synchronous>, transform_indices = @transform_3, window_bounds = array<i64: 1, 32>}, {transform_indices = @transform_4, window_bounds = array<i64: 16, 32>}, {transform_indices = @transform_5, window_bounds = array<i64: 16, 32>}]} {
    %c0 = arith.constant 0 : index
    %c0_0 = arith.constant 0 : index
    %0 = vector.load %arg1[%c0, %c0_0] : memref<16x32xf32, #tpu.memory_space<vmem>>, vector<16x32xf32>
    %c0_1 = arith.constant 0 : index
    %c0_2 = arith.constant 0 : index
    %1 = vector.load %arg2[%c0_1, %c0_2] : memref<16x32xf32, #tpu.memory_space<vmem>>, vector<16x32xf32>
    %2 = arith.addf %0, %1 : vector<16x32xf32>
    %c0_3 = arith.constant 0 : index
    %c0_4 = arith.constant 0 : index
    %3 = vector.load %arg5[%c0_3, %c0_4] : memref<16x32xf32, #tpu.memory_space<vmem>>, vector<16x32xf32>
    tpu.vector_store %arg5[%c0_3, %c0_4], %2 {strides = array<i32>} : memref<16x32xf32, #tpu.memory_space<vmem>>, vector<16x32xf32>,
    %c0_5 = arith.constant 0 : index
    %c0_6 = arith.constant 0 : index
    %4 = vector.load %arg3[%c0_5, %c0_6] : memref<1x32xf32, #tpu.memory_space<vmem>>, vector<1x32xf32>
    %c0_7 = arith.constant 0 : index
    %c0_8 = arith.constant 0 : index
    %5 = vector.load %arg4[%c0_7, %c0_8] : memref<1x32xf32, #tpu.memory_space<vmem>>, vector<1x32xf32>
    %cst = arith.constant dense<0.000000e+00> : vector<16xf32>
    %6 = vector.multi_reduction <add>, %2, %cst [1] : vector<16x32xf32> to vector<16xf32>
    %7 = vector.shape_cast %6 : vector<16xf32> to vector<16x1xf32>
    %cst_9 = arith.constant 3.200000e+01 : f32
    %8 = vector.broadcast %cst_9 : f32 to vector<16x1xf32>
    %9 = arith.divf %7, %8 : vector<16x1xf32>
    %10 = vector.broadcast %9 : vector<16x1xf32> to vector<16x32xf32>
    %11 = arith.subf %2, %10 : vector<16x32xf32>
    %12 = arith.mulf %11, %11 : vector<16x32xf32>
    %cst_10 = arith.constant dense<0.000000e+00> : vector<16xf32>
    %13 = vector.multi_reduction <add>, %12, %cst_10 [1] : vector<16x32xf32> to vector<16xf32>
    %14 = vector.shape_cast %13 : vector<16xf32> to vector<16x1xf32>
    %cst_11 = arith.constant 3.200000e+01 : f32
    %15 = vector.broadcast %cst_11 : f32 to vector<16x1xf32>
    %16 = arith.divf %14, %15 : vector<16x1xf32>
    %cst_12 = arith.constant 9.99999974E-6 : f32
    %17 = vector.broadcast %cst_12 : f32 to vector<16x1xf32>
    %18 = arith.addf %16, %17 : vector<16x1xf32>
    %19 = math.rsqrt %18 : vector<16x1xf32>
    %20 = vector.broadcast %19 : vector<16x1xf32> to vector<16x32xf32>
    %21 = arith.mulf %11, %20 : vector<16x32xf32>
    %22 = vector.broadcast %4 : vector<1x32xf32> to vector<16x32xf32>
    %23 = arith.mulf %21, %22 : vector<16x32xf32>
    %24 = vector.broadcast %5 : vector<1x32xf32> to vector<16x32xf32>
    %25 = arith.addf %23, %24 : vector<16x32xf32>
    %26 = arith.truncf %25 : vector<16x32xf32> to vector<16x32xbf16>
    %c0_13 = arith.constant 0 : index
    %c0_14 = arith.constant 0 : index
    %27 = vector.load %arg6[%c0_13, %c0_14] : memref<16x32xbf16, #tpu.memory_space<vmem>>, vector<16x32xbf16>
    tpu.vector_store %arg6[%c0_13, %c0_14], %26 {strides = array<i32>} : memref<16x32xbf16, #tpu.memory_space<vmem>>, vector<16x32xbf16>,
    return
  }
  func.func @transform_0(%arg0: i32) -> (i32, i32) {
    %c0_i32 = arith.constant 0 : i32
    %c0_i32_0 = arith.constant 0 : i32
    return %arg0, %c0_i32 : i32, i32
  }
  func.func @transform_1(%arg0: i32) -> (i32, i32) {
    %c0_i32 = arith.constant 0 : i32
    %c0_i32_0 = arith.constant 0 : i32
    return %arg0, %c0_i32 : i32, i32
  }
  func.func @transform_2(%arg0: i32) -> (i32, i32) {
    %c0_i32 = arith.constant 0 : i32
    %c0_i32_0 = arith.constant 0 : i32
    %c0_i32_1 = arith.constant 0 : i32
    return %c0_i32, %c0_i32_0 : i32, i32
  }
  func.func @transform_3(%arg0: i32) -> (i32, i32) {
    %c0_i32 = arith.constant 0 : i32
    %c0_i32_0 = arith.constant 0 : i32
    %c0_i32_1 = arith.constant 0 : i32
    return %c0_i32, %c0_i32_0 : i32, i32
  }
  func.func @transform_4(%arg0: i32) -> (i32, i32) {
    %c0_i32 = arith.constant 0 : i32
    %c0_i32_0 = arith.constant 0 : i32
    return %arg0, %c0_i32 : i32, i32
  }
  func.func @transform_5(%arg0: i32) -> (i32, i32) {
    %c0_i32 = arith.constant 0 : i32
    %c0_i32_0 = arith.constant 0 : i32
    return %arg0, %c0_i32 : i32, i32
  }
}

module attributes {stable_mosaic.version = 11 : i64} {
  func.func @_ffn_kernel(%arg0: i32, %arg1: memref<16x32xbf16, #tpu.memory_space<vmem>>, %arg2: memref<16x32xbf16, #tpu.memory_space<vmem>>, %arg3: memref<16x32xf32, #tpu.memory_space<vmem>>, %arg4: memref<1x32xf32, #tpu.memory_space<vmem>>, %arg5: memref<1x32xf32, #tpu.memory_space<vmem>>, %arg6: memref<32x64xbf16, #tpu.memory_space<vmem>>, %arg7: memref<64x32xbf16, #tpu.memory_space<vmem>>, %arg8: memref<32x32xbf16, #tpu.memory_space<vmem>>, %arg9: memref<16x32xf32, #tpu.memory_space<vmem>>) attributes {dimension_semantics = [#tpu.dimension_semantics<parallel>], iteration_bounds = array<i64: 1>, scalar_prefetch = 0 : i64, scratch_operands = 0 : i64, tpu.core_type = #tpu.core_type<tc>, window_params = [{transform_indices = @transform_0, window_bounds = array<i64: 16, 32>}, {transform_indices = @transform_1, window_bounds = array<i64: 16, 32>}, {transform_indices = @transform_2, window_bounds = array<i64: 16, 32>}, {pipeline_mode = #tpu.pipeline_mode<synchronous>, transform_indices = @transform_3, window_bounds = array<i64: 1, 32>}, {pipeline_mode = #tpu.pipeline_mode<synchronous>, transform_indices = @transform_4, window_bounds = array<i64: 1, 32>}, {pipeline_mode = #tpu.pipeline_mode<synchronous>, transform_indices = @transform_5, window_bounds = array<i64: 32, 64>}, {pipeline_mode = #tpu.pipeline_mode<synchronous>, transform_indices = @transform_6, window_bounds = array<i64: 64, 32>}, {pipeline_mode = #tpu.pipeline_mode<synchronous>, transform_indices = @transform_7, window_bounds = array<i64: 32, 32>}, {transform_indices = @transform_8, window_bounds = array<i64: 16, 32>}]} {
    %c0 = arith.constant 0 : index
    %c0_0 = arith.constant 0 : index
    %0 = vector.load %arg1[%c0, %c0_0] : memref<16x32xbf16, #tpu.memory_space<vmem>>, vector<16x32xbf16>
    %1 = arith.extf %0 : vector<16x32xbf16> to vector<16x32xf32>
    %c0_1 = arith.constant 0 : index
    %c0_2 = arith.constant 0 : index
    %2 = vector.load %arg2[%c0_1, %c0_2] : memref<16x32xbf16, #tpu.memory_space<vmem>>, vector<16x32xbf16>
    %3 = arith.extf %2 : vector<16x32xbf16> to vector<16x32xf32>
    %c0_3 = arith.constant 0 : index
    %c0_4 = arith.constant 0 : index
    %4 = vector.load %arg4[%c0_3, %c0_4] : memref<1x32xf32, #tpu.memory_space<vmem>>, vector<1x32xf32>
    %5 = vector.broadcast %4 : vector<1x32xf32> to vector<16x32xf32>
    %6 = arith.mulf %3, %5 : vector<16x32xf32>
    %7 = arith.addf %1, %6 : vector<16x32xf32>
    %8 = arith.truncf %7 : vector<16x32xf32> to vector<16x32xbf16>
    %c0_5 = arith.constant 0 : index
    %c0_6 = arith.constant 0 : index
    %9 = vector.load %arg5[%c0_5, %c0_6] : memref<1x32xf32, #tpu.memory_space<vmem>>, vector<1x32xf32>
    %10 = vector.broadcast %9 : vector<1x32xf32> to vector<16x32xf32>
    %11 = arith.mulf %3, %10 : vector<16x32xf32>
    %12 = arith.addf %1, %11 : vector<16x32xf32>
    %13 = arith.truncf %12 : vector<16x32xf32> to vector<16x32xbf16>
    %c0_7 = arith.constant 0 : index
    %c0_8 = arith.constant 0 : index
    %14 = vector.load %arg6[%c0_7, %c0_8] : memref<32x64xbf16, #tpu.memory_space<vmem>>, vector<32x64xbf16>
    %cst = arith.constant dense<0.000000e+00> : vector<16x64xf32>
    %15 = tpu.matmul %8, %14, %cst {dimension_numbers = #tpu.dot_dimension_numbers<[1], [0], [0], [1], [0, 0, 1, 1], [], []>} : vector<16x32xbf16>, vector<32x64xbf16>, vector<16x64xf32> -> vector<16x64xf32>
    %cst_9 = arith.constant 0.000000e+00 : f32
    %16 = vector.broadcast %cst_9 : f32 to vector<16x64xf32>
    %17 = arith.maximumf %15, %16 : vector<16x64xf32>
    %18 = arith.mulf %17, %17 : vector<16x64xf32>
    %19 = arith.truncf %18 : vector<16x64xf32> to vector<16x64xbf16>
    %c0_10 = arith.constant 0 : index
    %c0_11 = arith.constant 0 : index
    %20 = vector.load %arg7[%c0_10, %c0_11] : memref<64x32xbf16, #tpu.memory_space<vmem>>, vector<64x32xbf16>
    %cst_12 = arith.constant dense<0.000000e+00> : vector<16x32xf32>
    %21 = tpu.matmul %19, %20, %cst_12 {dimension_numbers = #tpu.dot_dimension_numbers<[1], [0], [0], [1], [0, 0, 1, 1], [], []>} : vector<16x64xbf16>, vector<64x32xbf16>, vector<16x32xf32> -> vector<16x32xf32>
    %c0_13 = arith.constant 0 : index
    %c0_14 = arith.constant 0 : index
    %22 = vector.load %arg8[%c0_13, %c0_14] : memref<32x32xbf16, #tpu.memory_space<vmem>>, vector<32x32xbf16>
    %cst_15 = arith.constant dense<0.000000e+00> : vector<16x32xf32>
    %23 = tpu.matmul %13, %22, %cst_15 {dimension_numbers = #tpu.dot_dimension_numbers<[1], [0], [0], [1], [0, 0, 1, 1], [], []>} : vector<16x32xbf16>, vector<32x32xbf16>, vector<16x32xf32> -> vector<16x32xf32>
    %cst_16 = arith.constant 0.000000e+00 : f32
    %24 = vector.broadcast %cst_16 : f32 to vector<16x32xf32>
    %25 = arith.subf %24, %23 : vector<16x32xf32>
    %26 = math.exp %25 : vector<16x32xf32>
    %cst_17 = arith.constant 1.000000e+00 : f32
    %27 = vector.broadcast %cst_17 : f32 to vector<16x32xf32>
    %28 = arith.addf %27, %26 : vector<16x32xf32>
    %29 = tpu.reciprocal %28 {approx = true} : vector<16x32xf32> -> vector<16x32xf32>
    %c0_18 = arith.constant 0 : index
    %c0_19 = arith.constant 0 : index
    %30 = vector.load %arg3[%c0_18, %c0_19] : memref<16x32xf32, #tpu.memory_space<vmem>>, vector<16x32xf32>
    %31 = arith.mulf %21, %29 : vector<16x32xf32>
    %32 = arith.addf %30, %31 : vector<16x32xf32>
    %c0_20 = arith.constant 0 : index
    %c0_21 = arith.constant 0 : index
    %33 = vector.load %arg9[%c0_20, %c0_21] : memref<16x32xf32, #tpu.memory_space<vmem>>, vector<16x32xf32>
    tpu.vector_store %arg9[%c0_20, %c0_21], %32 {strides = array<i32>} : memref<16x32xf32, #tpu.memory_space<vmem>>, vector<16x32xf32>,
    return
  }
  func.func @transform_0(%arg0: i32) -> (i32, i32) {
    %c0_i32 = arith.constant 0 : i32
    %c0_i32_0 = arith.constant 0 : i32
    return %arg0, %c0_i32 : i32, i32
  }
  func.func @transform_1(%arg0: i32) -> (i32, i32) {
    %c0_i32 = arith.constant 0 : i32
    %c0_i32_0 = arith.constant 0 : i32
    return %arg0, %c0_i32 : i32, i32
  }
  func.func @transform_2(%arg0: i32) -> (i32, i32) {
    %c0_i32 = arith.constant 0 : i32
    %c0_i32_0 = arith.constant 0 : i32
    return %arg0, %c0_i32 : i32, i32
  }
  func.func @transform_3(%arg0: i32) -> (i32, i32) {
    %c0_i32 = arith.constant 0 : i32
    %c0_i32_0 = arith.constant 0 : i32
    %c0_i32_1 = arith.constant 0 : i32
    return %c0_i32, %c0_i32_0 : i32, i32
  }
  func.func @transform_4(%arg0: i32) -> (i32, i32) {
    %c0_i32 = arith.constant 0 : i32
    %c0_i32_0 = arith.constant 0 : i32
    %c0_i32_1 = arith.constant 0 : i32
    return %c0_i32, %c0_i32_0 : i32, i32
  }
  func.func @transform_5(%arg0: i32) -> (i32, i32) {
    %c0_i32 = arith.constant 0 : i32
    %c0_i32_0 = arith.constant 0 : i32
    %c0_i32_1 = arith.constant 0 : i32
    return %c0_i32, %c0_i32_0 : i32, i32
  }
  func.func @transform_6(%arg0: i32) -> (i32, i32) {
    %c0_i32 = arith.constant 0 : i32
    %c0_i32_0 = arith.constant 0 : i32
    %c0_i32_1 = arith.constant 0 : i32
    return %c0_i32, %c0_i32_0 : i32, i32
  }
  func.func @transform_7(%arg0: i32) -> (i32, i32) {
    %c0_i32 = arith.constant 0 : i32
    %c0_i32_0 = arith.constant 0 : i32
    %c0_i32_1 = arith.constant 0 : i32
    return %c0_i32, %c0_i32_0 : i32, i32
  }
  func.func @transform_8(%arg0: i32) -> (i32, i32) {
    %c0_i32 = arith.constant 0 : i32
    %c0_i32_0 = arith.constant 0 : i32
    return %arg0, %c0_i32 : i32, i32
  }
}

</mosaic_0001>

<llo_original>
// kernel: eq.8
$region0: #{eq.8}
  %s0 = inlined_call_operand.vmem [shape: s32[4,8], index: 0, kind: input, shape index: {}]
  %s1 = inlined_call_operand.vmem [shape: s32[32], index: 1, kind: output, shape index: {}]
  $region1: #{eq.8} parent=0
    #allocation0 [shape = 'u8[4096]{0}', space=vmem, size = 0x1000, scoped, tag = 'scoped mem for output reshape']
    #allocation1 [shape = 'u8[4096]{0}', space=vmem, size = 0x1000, scoped, tag = 'scoped mem for input reshape']
    %s3 = sshll.u32 1, 4
    %s4 = ssub.s32 %s3, 1
    %v5 = vld [vmem:[%s0] sm:%s4]
    %6 = vst [vmem:[#allocation1] sm:%s4] %v5
    %v7 = vld [vmem:[#allocation1] sm:$0x1]
    %vm8 = vcmask 64512
    %9 = vst.msk [vmem:[#allocation0] sm:$0x1] %vm8, %v7
    %s10 = scalar_lea.vmem [#allocation1], 3
    %v11 = vld [vmem:[%s10] sm:$0x1]
    %12 = vrot.lane.b32.xlu0 %v11, 24
    %v13 = vpop.permute.xlu0 %12
    %vm14 = vcmask 261312
    %15 = vst.msk [vmem:[#allocation0] sm:$0x1] %vm14, %v13
    %s16 = scalar_lea.vmem [#allocation1], 2
    %v17 = vld [vmem:[%s16] sm:$0x1]
    %18 = vrot.lane.b32.xlu0 %v17, 16
    %v19 = vpop.permute.xlu0 %18
    %vm20 = vcmask 195712
    %21 = vst.msk [vmem:[#allocation0] sm:$0x1] %vm20, %v19
    %s22 = scalar_lea.vmem [#allocation1], 1
    %v23 = vld [vmem:[%s22] sm:$0x1]
    %24 = vrot.lane.b32.xlu0 %v23, 8
    %v25 = vpop.permute.xlu0 %24
    %vm26 = vcmask 130112
    %27 = vst.msk [vmem:[#allocation0] sm:$0x1] %vm26, %v25
    %s29 = sshll.u32 1, 1
    %s30 = ssub.s32 %s29, 1
    %v32 = vld [vmem:[#allocation0] sm:%s30]
    %s33 = sshll.u32 1, 1
    %s34 = ssub.s32 %s33, 1
    %35 = vst [vmem:[%s1] sm:%s34] %v32

// kernel: _lambda_.6
$region0: #{_lambda_.6}
  #allocation0 [shape = 'u32[]', space=smem, size = 0x4, offset = 0x4, fixed_abs, tag = 'smem constant byte address 0x4 - core index']
  #allocation1 [shape = 'u32[144,128]{1,0:T(1,128)}', space=vmem, size = 0x12000, scoped, tag = 'internal scratch']
  %s0 = inlined_call_operand.vmem [shape: f32[16,32], index: 0, kind: input, shape index: {}]
  %s1 = inlined_call_operand.vmem [shape: f32[1,32], index: 1, kind: input, shape index: {}]
  %s2 = inlined_call_operand.vmem [shape: f32[1,32], index: 2, kind: input, shape index: {}]
  %s3 = inlined_call_operand.vmem [shape: f32[1,32], index: 3, kind: input, shape index: {}]
  %s4 = inlined_call_operand.vmem [shape: f32[1,32], index: 4, kind: input, shape index: {}]
  %s5 = inlined_call_operand.vmem [shape: f32[16,32], index: 5, kind: output, shape index: {0}]
  %s6 = inlined_call_operand.vmem [shape: bf16[16,32], index: 6, kind: output, shape index: {1}]
  %7 = xla_tuple %s5, %s6
  %s8 = sld [smem:[#allocation0]]
  $region38: #{_lambda_.6} parent=0
    _
  %s10 = ssub.s32 1, %s8
  %s11 = scalar_select 0, %s10, %s8
  // Predicated region
  $region2: #{_lambda_.6} parent=0 // pred_check
    _
  $region3: #{_lambda_.6} parent=0 // pred_check_branch
    %13 = sbr.rel (0) target = $region5
  $region4: #{_lambda_.6} parent=0 // pred_region
    _
  $region5: #{_lambda_.6} parent=0 // pred_fallthru
    _
  // Predicated region
  $region6: #{_lambda_.6} parent=0 // pred_check
    _
  $region7: #{_lambda_.6} parent=0 // pred_check_branch
    %15 = sbr.rel (0) target = $region9
  $region8: #{_lambda_.6} parent=0 // pred_region
    _
  $region9: #{_lambda_.6} parent=0 // pred_fallthru
    _
  // Predicated region
  $region10: #{_lambda_.6} parent=0 // pred_check
    _
  $region11: #{_lambda_.6} parent=0 // pred_check_branch
    %17 = sbr.rel (0) target = $region13
  $region12: #{_lambda_.6} parent=0 // pred_region
    _
  $region13: #{_lambda_.6} parent=0 // pred_fallthru
    _
  // Predicated region
  $region14: #{_lambda_.6} parent=0 // pred_check
    _
  $region15: #{_lambda_.6} parent=0 // pred_check_branch
    %19 = sbr.rel (0) target = $region17
  $region16: #{_lambda_.6} parent=0 // pred_region
    _
  $region17: #{_lambda_.6} parent=0 // pred_fallthru
    _
  // Predicated region
  $region18: #{_lambda_.6} parent=0 // pred_check
    _
  $region19: #{_lambda_.6} parent=0 // pred_check_branch
    %21 = sbr.rel (0) target = $region21
  $region20: #{_lambda_.6} parent=0 // pred_region
    _
  $region21: #{_lambda_.6} parent=0 // pred_fallthru
    _
  %v22 = vld [vmem:[%s0] sm:$0xff]
  %v23 = vld [vmem:[%s0 + $0x8] sm:$0xff]
  %v24 = vld [vmem:[%s1] sm:$0x1]
  %v25 = vld [vmem:[%s2] sm:$0x1]
  %vm26 = vcmask 261120
  %v27 = vsel %vm26, %v22, 0.0
  %28 = vadd.xlane.f32.xlu0 %v27
  %v29 = vpop.xlane.xlu0 %28
  %v30 = vsel %vm26, %v23, 0.0
  %31 = vadd.xlane.f32.xlu0 %v30
  %v32 = vpop.xlane.xlu0 %31
  %v33 = vrcp.pop 32.0
  %v34 = vmul.f32 %v29, %v33
  %v35 = vmul.f32 %v32, %v33
  %v36 = vsub.f32 %v22, %v34
  %v37 = vsub.f32 %v23, %v35
  %v38 = vmul.f32 %v36, %v36
  %v39 = vmul.f32 %v37, %v37
  %v40 = vsel %vm26, %v38, 0.0
  %41 = vadd.xlane.f32.xlu0 %v40
  %v42 = vpop.xlane.xlu0 %41
  %v43 = vsel %vm26, %v39, 0.0
  %44 = vadd.xlane.f32.xlu0 %v43
  %v45 = vpop.xlane.xlu0 %44
  %v46 = vmul.f32 %v42, %v33
  %v47 = vmul.f32 %v45, %v33
  %v48 = vadd.f32 %v46, 1e-05
  %v49 = vadd.f32 %v47, 1e-05
  %v50 = vrsqrt.pop %v48
  %v51 = vrsqrt.pop %v49
  %v52 = vmul.f32 %v36, %v50
  %v53 = vmul.f32 %v37, %v51
  %v55 = vlaneseq
  %v56 = vshrl.u32 %v55, 7
  %v57 = vsub.s32 0, %v56
  %v58 = vrot.slane %v24, %v57
  %v60 = vmul.f32 %v52, %v58
  %v61 = vmul.f32 %v53, %v58
  %v63 = vlaneseq
  %v64 = vshrl.u32 %v63, 7
  %v65 = vsub.s32 0, %v64
  %v66 = vrot.slane %v25, %v65
  %v68 = vadd.f32 %v60, %v66
  %v69 = vadd.f32 %v61, %v66
  %70 = vst.msk [vmem:[%s5] sm:$0xff] %vm26, %v68
  %71 = vst.msk [vmem:[%s5 + $0x8] sm:$0xff] %vm26, %v69
  %v72 = vld [vmem:[%s3] sm:$0x1]
  %v73 = vld [vmem:[%s4] sm:$0x1]
  %v74 = vsel %vm26, %v68, 0.0
  %75 = vadd.xlane.f32.xlu0 %v74
  %v76 = vpop.xlane.xlu0 %75
  %v77 = vsel %vm26, %v69, 0.0
  %78 = vadd.xlane.f32.xlu0 %v77
  %v79 = vpop.xlane.xlu0 %78
  %v80 = vmul.f32 %v76, %v33
  %v81 = vmul.f32 %v79, %v33
  %v82 = vsub.f32 %v68, %v80
  %v83 = vsub.f32 %v69, %v81
  %v84 = vmul.f32 %v82, %v82
  %v85 = vmul.f32 %v83, %v83
  %v86 = vsel %vm26, %v84, 0.0
  %87 = vadd.xlane.f32.xlu0 %v86
  %v88 = vpop.xlane.xlu0 %87
  %v89 = vsel %vm26, %v85, 0.0
  %90 = vadd.xlane.f32.xlu0 %v89
  %v91 = vpop.xlane.xlu0 %90
  %v92 = vmul.f32 %v88, %v33
  %v93 = vmul.f32 %v91, %v33
  %v94 = vadd.f32 %v92, 1e-05
  %v95 = vadd.f32 %v93, 1e-05
  %v96 = vrsqrt.pop %v94
  %v97 = vrsqrt.pop %v95
  %v98 = vmul.f32 %v82, %v96
  %v99 = vmul.f32 %v83, %v97
  %v101 = vlaneseq
  %v102 = vshrl.u32 %v101, 7
  %v103 = vsub.s32 0, %v102
  %v104 = vrot.slane %v72, %v103
  %v106 = vmul.f32 %v98, %v104
  %v107 = vmul.f32 %v99, %v104
  %v109 = vlaneseq
  %v110 = vshrl.u32 %v109, 7
  %v111 = vsub.s32 0, %v110
  %v112 = vrot.slane %v73, %v111
  %v114 = vadd.f32 %v106, %v112
  %v115 = vadd.f32 %v107, %v112
  %v116 = vpack.c.bf16 %v115, %v114
  %v118 = vunpack.c.l.b16 %v116
  %v119 = vunpack.c.h.b16 %v116
  %v120 = vpack.c.b16 %v118, %v118
  %v121 = vpack.c.b16 %v119, %v119
  %vm124 = vcmask 257024
  %125 = vst.msk [vmem:[%s6] sm:$0xf] %vm124, %v120
  %126 = vst.msk [vmem:[%s6 + $0x4] sm:$0xf] %vm124, %v121
  // Predicated region
  $region22: #{_lambda_.6} parent=0 // pred_check
    _
  $region23: #{_lambda_.6} parent=0 // pred_check_branch
    %128 = sbr.rel (0) target = $region25
  $region24: #{_lambda_.6} parent=0 // pred_region
    _
  $region25: #{_lambda_.6} parent=0 // pred_fallthru
    _
  // Predicated region
  $region26: #{_lambda_.6} parent=0 // pred_check
    _
  $region27: #{_lambda_.6} parent=0 // pred_check_branch
    %130 = sbr.rel (0) target = $region29
  $region28: #{_lambda_.6} parent=0 // pred_region
    _
  $region29: #{_lambda_.6} parent=0 // pred_fallthru
    _
  // Predicated region
  $region30: #{_lambda_.6} parent=0 // pred_check
    _
  $region31: #{_lambda_.6} parent=0 // pred_check_branch
    %132 = sbr.rel (0) target = $region33
  $region32: #{_lambda_.6} parent=0 // pred_region
    _
  $region33: #{_lambda_.6} parent=0 // pred_fallthru
    _
  // Predicated region
  $region34: #{_lambda_.6} parent=0 // pred_check
    _
  $region35: #{_lambda_.6} parent=0 // pred_check_branch
    %134 = sbr.rel (0) target = $region37
  $region36: #{_lambda_.6} parent=0 // pred_region
    _
  $region37: #{_lambda_.6} parent=0 // pred_fallthru
    _

// kernel: _lambda_.9
$region0: #{_lambda_.9}
  #allocation0 [shape = 'u32[]', space=smem, size = 0x4, offset = 0x4, fixed_abs, tag = 'smem constant byte address 0x4 - core index']
  #allocation1 [shape = 'u32[144,128]{1,0:T(1,128)}', space=vmem, size = 0x12000, scoped, tag = 'internal scratch']
  %s0 = inlined_call_operand.vmem [shape: bf16[16,32], index: 0, kind: input, shape index: {}]
  %s1 = inlined_call_operand.vmem [shape: bf16[16,32], index: 1, kind: input, shape index: {}]
  %s2 = inlined_call_operand.vmem [shape: f32[1,32], index: 2, kind: input, shape index: {}]
  %s3 = inlined_call_operand.vmem [shape: f32[1,32], index: 3, kind: input, shape index: {}]
  %s4 = inlined_call_operand.vmem [shape: f32[32,4], index: 4, kind: input, shape index: {}]
  %s5 = inlined_call_operand.vmem [shape: bf16[32,32], index: 5, kind: input, shape index: {}]
  %s6 = inlined_call_operand.vmem [shape: f32[16,32], index: 6, kind: output, shape index: {}]
  %s7 = sld [smem:[#allocation0]]
  $region34: #{_lambda_.9} parent=0
    _
  %s9 = ssub.s32 1, %s7
  %s10 = scalar_select 0, %s9, %s7
  // Predicated region
  $region2: #{_lambda_.9} parent=0 // pred_check
    _
  $region3: #{_lambda_.9} parent=0 // pred_check_branch
    %12 = sbr.rel (0) target = $region5
  $region4: #{_lambda_.9} parent=0 // pred_region
    _
  $region5: #{_lambda_.9} parent=0 // pred_fallthru
    _
  // Predicated region
  $region6: #{_lambda_.9} parent=0 // pred_check
    _
  $region7: #{_lambda_.9} parent=0 // pred_check_branch
    %14 = sbr.rel (0) target = $region9
  $region8: #{_lambda_.9} parent=0 // pred_region
    _
  $region9: #{_lambda_.9} parent=0 // pred_fallthru
    _
  // Predicated region
  $region10: #{_lambda_.9} parent=0 // pred_check
    _
  $region11: #{_lambda_.9} parent=0 // pred_check_branch
    %16 = sbr.rel (0) target = $region13
  $region12: #{_lambda_.9} parent=0 // pred_region
    _
  $region13: #{_lambda_.9} parent=0 // pred_fallthru
    _
  // Predicated region
  $region14: #{_lambda_.9} parent=0 // pred_check
    _
  $region15: #{_lambda_.9} parent=0 // pred_check_branch
    %18 = sbr.rel (0) target = $region17
  $region16: #{_lambda_.9} parent=0 // pred_region
    _
  $region17: #{_lambda_.9} parent=0 // pred_fallthru
    _
  // Predicated region
  $region18: #{_lambda_.9} parent=0 // pred_check
    _
  $region19: #{_lambda_.9} parent=0 // pred_check_branch
    %20 = sbr.rel (0) target = $region21
  $region20: #{_lambda_.9} parent=0 // pred_region
    _
  $region21: #{_lambda_.9} parent=0 // pred_fallthru
    _
  // Predicated region
  $region22: #{_lambda_.9} parent=0 // pred_check
    _
  $region23: #{_lambda_.9} parent=0 // pred_check_branch
    %22 = sbr.rel (0) target = $region25
  $region24: #{_lambda_.9} parent=0 // pred_region
    _
  $region25: #{_lambda_.9} parent=0 // pred_fallthru
    _
  %v24 = vld [vmem:[%s0] sm:$0xf]
  %v25 = vld [vmem:[%s0 + $0x4] sm:$0xf]
  %v26 = vunpack.c.l.bf16 %v24
  %v27 = vunpack.c.l.bf16 %v25
  %v28 = vld [vmem:[%s1] sm:$0xf]
  %v29 = vld [vmem:[%s1 + $0x4] sm:$0xf]
  %v30 = vunpack.c.l.bf16 %v28
  %v31 = vunpack.c.l.bf16 %v29
  %v32 = vld [vmem:[%s4] sm:$0xff]
  %v33 = vld [vmem:[%s4 + $0x8] sm:$0xff]
  %v34 = vld [vmem:[%s4 + $0x10] sm:$0xff]
  %v35 = vld [vmem:[%s4 + $0x18] sm:$0xff]
  %vm36 = vcmask 261120
  %v38 = vsel %vm36, %v26, 0
  %v41 = vsel %vm36, %v27, 0
  %43 = vmatprep.subr.mxu0 0.0
  %44 = vmatpush1.msra.mxu0 0.0
  %45 = vmatprep.subr.mxu0 0.0
  %46 = vmatpush1.msra.mxu0 0.0
  %47 = vmatprep.subr.mxu0 0.0
  %48 = vmatpush1.msra.mxu0 0.0
  %49 = vmatprep.subr.mxu0 0.0
  %50 = vmatpush1.msra.mxu0 0.0
  %51 = vmatprep.subr.mxu0 0.0
  %52 = vmatpush1.msra.mxu0 0.0
  %53 = vmatprep.subr.mxu0 0.0
  %54 = vmatpush1.msra.mxu0 0.0
  %55 = vmatprep.subr.mxu0 0.0
  %56 = vmatpush1.msra.mxu0 0.0
  %57 = vmatprep.subr.mxu0 0.0
  %58 = vmatpush1.msra.mxu0 0.0
  %59 = vmatprep.subr.mxu0 0.0
  %60 = vmatpush1.msra.mxu0 0.0
  %61 = vmatprep.subr.mxu0 0.0
  %62 = vmatpush1.msra.mxu0 0.0
  %63 = vmatprep.subr.mxu0 0.0
  %64 = vmatpush1.msra.mxu0 0.0
  %65 = vmatprep.subr.mxu0 0.0
  %66 = vmatpush1.msra.mxu0 0.0
  %67 = vmatprep.subr.mxu0 0.0
  %68 = vmatpush1.msra.mxu0 %v35
  %69 = vmatprep.subr.mxu0 0.0
  %70 = vmatpush1.msra.mxu0 %v34
  %71 = vmatprep.subr.mxu0 0.0
  %72 = vmatpush1.msra.mxu0 %v33
  %73 = vmatprep.subr.mxu0 0.0
  %74 = vmatpush1.msra.mxu0 %v32
  %75 = vmatprep.subr.mxu0 0.0
  %76 = vmatpush2.msra.mxu0 0.0
  %77 = vmatprep.subr.mxu0 0.0
  %78 = vmatpush2.msra.mxu0 0.0
  %79 = vmatprep.subr.mxu0 0.0
  %80 = vmatpush2.msra.mxu0 0.0
  %81 = vmatprep.subr.mxu0 0.0
  %82 = vmatpush2.msra.mxu0 0.0
  %83 = vmatprep.subr.mxu0 0.0
  %84 = vmatpush2.msra.mxu0 0.0
  %85 = vmatprep.subr.mxu0 0.0
  %86 = vmatpush2.msra.mxu0 0.0
  %87 = vmatprep.subr.mxu0 0.0
  %88 = vmatpush2.msra.mxu0 0.0
  %89 = vmatprep.subr.mxu0 0.0
  %90 = vmatpush2.msra.mxu0 0.0
  %91 = vmatprep.subr.mxu0 0.0
  %92 = vmatpush2.msra.mxu0 0.0
  %93 = vmatprep.subr.mxu0 0.0
  %94 = vmatpush2.msra.mxu0 0.0
  %95 = vmatprep.subr.mxu0 0.0
  %96 = vmatpush2.msra.mxu0 0.0
  %97 = vmatprep.subr.mxu0 0.0
  %98 = vmatpush2.msra.mxu0 0.0
  %99 = vmatprep.subr.mxu0 0.0
  %100 = vmatpush2.msra.mxu0 0.0
  %101 = vmatprep.subr.mxu0 0.0
  %102 = vmatpush2.msra.mxu0 0.0
  %103 = vmatprep.subr.mxu0 0.0
  %104 = vmatpush2.msra.mxu0 0.0
  %105 = vmatprep.subr.mxu0 0.0
  %106 = vmatpush2.msra.mxu0 0.0
  %107 = vmatprep.mubr.f32.mxu0 0.0
  %108 = vmatmul.mubr.f32.gmra.mxu0 %v38
  %v109 = vpop.f32.mrf.mxu0
  %v110 = vadd.f32 0.0, %v109
  %v111 = vpop.f32.mrf.mxu0
  %112 = vmatprep.mubr.f32.mxu0 0.0
  %113 = vmatmul.mubr.f32.gmra.mxu0 %v41
  %v114 = vpop.f32.mrf.mxu0
  %v115 = vadd.f32 0.0, %v114
  %v116 = vpop.f32.mrf.mxu0
  %117 = vdwg.mxu0
  %v118 = vmul.f32 %v110, 0.125
  %v119 = vmul.f32 %v115, 0.125
  %vm120 = vcmask 31744
  %v122 = vsel %vm120, %v118, 0
  %v125 = vsel %vm120, %v119, 0
  %v128 = vsel %vm120, %v32, 0
  %v131 = vsel %vm120, %v33, 0
  %v134 = vsel %vm120, %v34, 0
  %v137 = vsel %vm120, %v35, 0
  %139 = vmatprep.subr.mxu0 0.0
  %140 = vmatpush1.xpose.msra.mxu0 0.0
  %141 = vmatprep.subr.mxu0 0.0
  %142 = vmatpush1.xpose.msra.mxu0 0.0
  %143 = vmatprep.subr.mxu0 0.0
  %144 = vmatpush1.xpose.msra.mxu0 0.0
  %145 = vmatprep.subr.mxu0 0.0
  %146 = vmatpush1.xpose.msra.mxu0 0.0
  %147 = vmatprep.subr.mxu0 0.0
  %148 = vmatpush1.xpose.msra.mxu0 0.0
  %149 = vmatprep.subr.mxu0 0.0
  %150 = vmatpush1.xpose.msra.mxu0 0.0
  %151 = vmatprep.subr.mxu0 0.0
  %152 = vmatpush1.xpose.msra.mxu0 0.0
  %153 = vmatprep.subr.mxu0 0.0
  %154 = vmatpush1.xpose.msra.mxu0 0.0
  %155 = vmatprep.subr.mxu0 0.0
  %156 = vmatpush1.xpose.msra.mxu0 0.0
  %157 = vmatprep.subr.mxu0 0.0
  %158 = vmatpush1.xpose.msra.mxu0 0.0
  %159 = vmatprep.subr.mxu0 0.0
  %160 = vmatpush1.xpose.msra.mxu0 0.0
  %161 = vmatprep.subr.mxu0 0.0
  %162 = vmatpush1.xpose.msra.mxu0 0.0
  %163 = vmatprep.subr.mxu0 0.0
  %164 = vmatpush1.xpose.msra.mxu0 %v137
  %165 = vmatprep.subr.mxu0 0.0
  %166 = vmatpush1.xpose.msra.mxu0 %v134
  %167 = vmatprep.subr.mxu0 0.0
  %168 = vmatpush1.xpose.msra.mxu0 %v131
  %169 = vmatprep.subr.mxu0 0.0
  %170 = vmatpush1.xpose.msra.mxu0 %v128
  %171 = vmatprep.subr.mxu0 0.0
  %172 = vmatpush2.xpose.msra.mxu0 0.0
  %173 = vmatprep.subr.mxu0 0.0
  %174 = vmatpush2.xpose.msra.mxu0 0.0
  %175 = vmatprep.subr.mxu0 0.0
  %176 = vmatpush2.xpose.msra.mxu0 0.0
  %177 = vmatprep.subr.mxu0 0.0
  %178 = vmatpush2.xpose.msra.mxu0 0.0
  %179 = vmatprep.subr.mxu0 0.0
  %180 = vmatpush2.xpose.msra.mxu0 0.0
  %181 = vmatprep.subr.mxu0 0.0
  %182 = vmatpush2.xpose.msra.mxu0 0.0
  %183 = vmatprep.subr.mxu0 0.0
  %184 = vmatpush2.xpose.msra.mxu0 0.0
  %185 = vmatprep.subr.mxu0 0.0
  %186 = vmatpush2.xpose.msra.mxu0 0.0
  %187 = vmatprep.subr.mxu0 0.0
  %188 = vmatpush2.xpose.msra.mxu0 0.0
  %189 = vmatprep.subr.mxu0 0.0
  %190 = vmatpush2.xpose.msra.mxu0 0.0
  %191 = vmatprep.subr.mxu0 0.0
  %192 = vmatpush2.xpose.msra.mxu0 0.0
  %193 = vmatprep.subr.mxu0 0.0
  %194 = vmatpush2.xpose.msra.mxu0 0.0
  %195 = vmatprep.subr.mxu0 0.0
  %196 = vmatpush2.xpose.msra.mxu0 0.0
  %197 = vmatprep.subr.mxu0 0.0
  %198 = vmatpush2.xpose.msra.mxu0 0.0
  %199 = vmatprep.subr.mxu0 0.0
  %200 = vmatpush2.xpose.msra.mxu0 0.0
  %201 = vmatprep.subr.mxu0 0.0
  %202 = vmatpush2.xpose.msra.mxu0 0.0
  %203 = vmatprep.mubr.f32.mxu0 0.0
  %204 = vmatmul.mubr.f32.gmra.mxu0 %v122
  %v205 = vpop.f32.mrf.mxu0
  %v206 = vadd.f32 0.0, %v205
  %v207 = vpop.f32.mrf.mxu0
  %208 = vmatprep.mubr.f32.mxu0 0.0
  %209 = vmatmul.mubr.f32.gmra.mxu0 %v125
  %v210 = vpop.f32.mrf.mxu0
  %v211 = vadd.f32 0.0, %v210
  %v212 = vpop.f32.mrf.mxu0
  %213 = vdwg.mxu0
  %v214 = vsub.f32 %v26, %v206
  %v215 = vsub.f32 %v27, %v211
  %v216 = vmul.f32 %v214, %v214
  %v217 = vmul.f32 %v215, %v215
  %v219 = vsel %vm36, %v216, 0
  %v222 = vsel %vm36, %v217, 0
  %224 = vmatprep.subr.mxu0 0.0
  %225 = vmatpush1.msra.mxu0 0.0
  %226 = vmatprep.subr.mxu0 0.0
  %227 = vmatpush1.msra.mxu0 0.0
  %228 = vmatprep.subr.mxu0 0.0
  %229 = vmatpush1.msra.mxu0 0.0
  %230 = vmatprep.subr.mxu0 0.0
  %231 = vmatpush1.msra.mxu0 0.0
  %232 = vmatprep.subr.mxu0 0.0
  %233 = vmatpush1.msra.mxu0 0.0
  %234 = vmatprep.subr.mxu0 0.0
  %235 = vmatpush1.msra.mxu0 0.0
  %236 = vmatprep.subr.mxu0 0.0
  %237 = vmatpush1.msra.mxu0 0.0
  %238 = vmatprep.subr.mxu0 0.0
  %239 = vmatpush1.msra.mxu0 0.0
  %240 = vmatprep.subr.mxu0 0.0
  %241 = vmatpush1.msra.mxu0 0.0
  %242 = vmatprep.subr.mxu0 0.0
  %243 = vmatpush1.msra.mxu0 0.0
  %244 = vmatprep.subr.mxu0 0.0
  %245 = vmatpush1.msra.mxu0 0.0
  %246 = vmatprep.subr.mxu0 0.0
  %247 = vmatpush1.msra.mxu0 0.0
  %248 = vmatprep.subr.mxu0 0.0
  %249 = vmatpush1.msra.mxu0 %v35
  %250 = vmatprep.subr.mxu0 0.0
  %251 = vmatpush1.msra.mxu0 %v34
  %252 = vmatprep.subr.mxu0 0.0
  %253 = vmatpush1.msra.mxu0 %v33
  %254 = vmatprep.subr.mxu0 0.0
  %255 = vmatpush1.msra.mxu0 %v32
  %256 = vmatprep.subr.mxu0 0.0
  %257 = vmatpush2.msra.mxu0 0.0
  %258 = vmatprep.subr.mxu0 0.0
  %259 = vmatpush2.msra.mxu0 0.0
  %260 = vmatprep.subr.mxu0 0.0
  %261 = vmatpush2.msra.mxu0 0.0
  %262 = vmatprep.subr.mxu0 0.0
  %263 = vmatpush2.msra.mxu0 0.0
  %264 = vmatprep.subr.mxu0 0.0
  %265 = vmatpush2.msra.mxu0 0.0
  %266 = vmatprep.subr.mxu0 0.0
  %267 = vmatpush2.msra.mxu0 0.0
  %268 = vmatprep.subr.mxu0 0.0
  %269 = vmatpush2.msra.mxu0 0.0
  %270 = vmatprep.subr.mxu0 0.0
  %271 = vmatpush2.msra.mxu0 0.0
  %272 = vmatprep.subr.mxu0 0.0
  %273 = vmatpush2.msra.mxu0 0.0
  %274 = vmatprep.subr.mxu0 0.0
  %275 = vmatpush2.msra.mxu0 0.0
  %276 = vmatprep.subr.mxu0 0.0
  %277 = vmatpush2.msra.mxu0 0.0
  %278 = vmatprep.subr.mxu0 0.0
  %279 = vmatpush2.msra.mxu0 0.0
  %280 = vmatprep.subr.mxu0 0.0
  %281 = vmatpush2.msra.mxu0 0.0
  %282 = vmatprep.subr.mxu0 0.0
  %283 = vmatpush2.msra.mxu0 0.0
  %284 = vmatprep.subr.mxu0 0.0
  %285 = vmatpush2.msra.mxu0 0.0
  %286 = vmatprep.subr.mxu0 0.0
  %287 = vmatpush2.msra.mxu0 0.0
  %288 = vmatprep.mubr.f32.mxu0 0.0
  %289 = vmatmul.mubr.f32.gmra.mxu0 %v219
  %v290 = vpop.f32.mrf.mxu0
  %v291 = vadd.f32 0.0, %v290
  %v292 = vpop.f32.mrf.mxu0
  %293 = vmatprep.mubr.f32.mxu0 0.0
  %294 = vmatmul.mubr.f32.gmra.mxu0 %v222
  %v295 = vpop.f32.mrf.mxu0
  %v296 = vadd.f32 0.0, %v295
  %v297 = vpop.f32.mrf.mxu0
  %298 = vdwg.mxu0
  %v299 = vmul.f32 %v291, 0.125
  %v300 = vmul.f32 %v296, 0.125
  %v301 = vadd.f32 %v299, 1e-05
  %v302 = vadd.f32 %v300, 1e-05
  %v303 = vrsqrt.pop %v301
  %v304 = vrsqrt.pop %v302
  %v306 = vsel %vm120, %v303, 0
  %v309 = vsel %vm120, %v304, 0
  %311 = vmatprep.subr.mxu0 0.0
  %312 = vmatpush1.xpose.msra.mxu0 0.0
  %313 = vmatprep.subr.mxu0 0.0
  %314 = vmatpush1.xpose.msra.mxu0 0.0
  %315 = vmatprep.subr.mxu0 0.0
  %316 = vmatpush1.xpose.msra.mxu0 0.0
  %317 = vmatprep.subr.mxu0 0.0
  %318 = vmatpush1.xpose.msra.mxu0 0.0
  %319 = vmatprep.subr.mxu0 0.0
  %320 = vmatpush1.xpose.msra.mxu0 0.0
  %321 = vmatprep.subr.mxu0 0.0
  %322 = vmatpush1.xpose.msra.mxu0 0.0
  %323 = vmatprep.subr.mxu0 0.0
  %324 = vmatpush1.xpose.msra.mxu0 0.0
  %325 = vmatprep.subr.mxu0 0.0
  %326 = vmatpush1.xpose.msra.mxu0 0.0
  %327 = vmatprep.subr.mxu0 0.0
  %328 = vmatpush1.xpose.msra.mxu0 0.0
  %329 = vmatprep.subr.mxu0 0.0
  %330 = vmatpush1.xpose.msra.mxu0 0.0
  %331 = vmatprep.subr.mxu0 0.0
  %332 = vmatpush1.xpose.msra.mxu0 0.0
  %333 = vmatprep.subr.mxu0 0.0
  %334 = vmatpush1.xpose.msra.mxu0 0.0
  %335 = vmatprep.subr.mxu0 0.0
  %336 = vmatpush1.xpose.msra.mxu0 %v137
  %337 = vmatprep.subr.mxu0 0.0
  %338 = vmatpush1.xpose.msra.mxu0 %v134
  %339 = vmatprep.subr.mxu0 0.0
  %340 = vmatpush1.xpose.msra.mxu0 %v131
  %341 = vmatprep.subr.mxu0 0.0
  %342 = vmatpush1.xpose.msra.mxu0 %v128
  %343 = vmatprep.subr.mxu0 0.0
  %344 = vmatpush2.xpose.msra.mxu0 0.0
  %345 = vmatprep.subr.mxu0 0.0
  %346 = vmatpush2.xpose.msra.mxu0 0.0
  %347 = vmatprep.subr.mxu0 0.0
  %348 = vmatpush2.xpose.msra.mxu0 0.0
  %349 = vmatprep.subr.mxu0 0.0
  %350 = vmatpush2.xpose.msra.mxu0 0.0
  %351 = vmatprep.subr.mxu0 0.0
  %352 = vmatpush2.xpose.msra.mxu0 0.0
  %353 = vmatprep.subr.mxu0 0.0
  %354 = vmatpush2.xpose.msra.mxu0 0.0
  %355 = vmatprep.subr.mxu0 0.0
  %356 = vmatpush2.xpose.msra.mxu0 0.0
  %357 = vmatprep.subr.mxu0 0.0
  %358 = vmatpush2.xpose.msra.mxu0 0.0
  %359 = vmatprep.subr.mxu0 0.0
  %360 = vmatpush2.xpose.msra.mxu0 0.0
  %361 = vmatprep.subr.mxu0 0.0
  %362 = vmatpush2.xpose.msra.mxu0 0.0
  %363 = vmatprep.subr.mxu0 0.0
  %364 = vmatpush2.xpose.msra.mxu0 0.0
  %365 = vmatprep.subr.mxu0 0.0
  %366 = vmatpush2.xpose.msra.mxu0 0.0
  %367 = vmatprep.subr.mxu0 0.0
  %368 = vmatpush2.xpose.msra.mxu0 0.0
  %369 = vmatprep.subr.mxu0 0.0
  %370 = vmatpush2.xpose.msra.mxu0 0.0
  %371 = vmatprep.subr.mxu0 0.0
  %372 = vmatpush2.xpose.msra.mxu0 0.0
  %373 = vmatprep.subr.mxu0 0.0
  %374 = vmatpush2.xpose.msra.mxu0 0.0
  %375 = vmatprep.mubr.f32.mxu0 0.0
  %376 = vmatmul.mubr.f32.gmra.mxu0 %v306
  %v377 = vpop.f32.mrf.mxu0
  %v378 = vadd.f32 0.0, %v377
  %v379 = vpop.f32.mrf.mxu0
  %380 = vmatprep.mubr.f32.mxu0 0.0
  %381 = vmatmul.mubr.f32.gmra.mxu0 %v309
  %v382 = vpop.f32.mrf.mxu0
  %v383 = vadd.f32 0.0, %v382
  %v384 = vpop.f32.mrf.mxu0
  %385 = vdwg.mxu0
  %v386 = vmul.f32 %v214, %v378
  %v387 = vmul.f32 %v215, %v383
  %v388 = vld [vmem:[%s2] sm:$0x1]
  %v390 = vlaneseq
  %v391 = vshrl.u32 %v390, 7
  %v392 = vsub.s32 0, %v391
  %v393 = vrot.slane %v388, %v392
  %v395 = vmul.f32 %v386, %v393
  %v396 = vmul.f32 %v387, %v393
  %v397 = vld [vmem:[%s3] sm:$0x1]
  %v399 = vlaneseq
  %v400 = vshrl.u32 %v399, 7
  %v401 = vsub.s32 0, %v400
  %v402 = vrot.slane %v397, %v401
  %v404 = vadd.f32 %v395, %v402
  %v405 = vadd.f32 %v396, %v402
  %v406 = vsub.f32 0.0, %v30
  %v407 = vsub.f32 0.0, %v31
  %v408 = vmul.f32 %v406, 1.442695
  %v409 = vpow.pop %v408
  %v410 = vmul.f32 %v407, 1.442695
  %v411 = vpow.pop %v410
  %v412 = vadd.f32 %v409, 1.0
  %v413 = vadd.f32 %v411, 1.0
  %v414 = vrcp.pop %v412
  %v415 = vrcp.pop %v413
  %v416 = vmul.f32 %v30, %v414
  %v417 = vmul.f32 %v31, %v415
  %v418 = vmul.f32 %v404, %v416
  %v419 = vmul.f32 %v405, %v417
  %v420 = vpack.c.bf16 %v419, %v418
  %v421 = vld [vmem:[%s5] sm:$0xf]
  %v422 = vld [vmem:[%s5 + $0x4] sm:$0xf]
  %v423 = vld [vmem:[%s5 + $0x8] sm:$0xf]
  %v424 = vld [vmem:[%s5 + $0xc] sm:$0xf]
  %v429 = vunpack.c.l.b16 %v421
  %v430 = vunpack.c.l.b16 %v422
  %v431 = vunpack.c.l.b16 %v423
  %v432 = vunpack.c.l.b16 %v424
  %v433 = vpack.c.b16 %v430, %v429
  %v434 = vpack.c.b16 %v432, %v431
  %v438 = vsel %vm36, %v420, 0
  %440 = vmatprep.subr.bf16.mxu0 0
  %441 = vmatpush1.bf16.msra.mxu0 0
  %442 = vmatprep.subr.bf16.mxu0 0
  %443 = vmatpush1.bf16.msra.mxu0 0
  %444 = vmatprep.subr.bf16.mxu0 0
  %445 = vmatpush1.bf16.msra.mxu0 0
  %446 = vmatprep.subr.bf16.mxu0 0
  %447 = vmatpush1.bf16.msra.mxu0 0
  %448 = vmatprep.subr.bf16.mxu0 0
  %449 = vmatpush1.bf16.msra.mxu0 0
  %450 = vmatprep.subr.bf16.mxu0 0
  %451 = vmatpush1.bf16.msra.mxu0 0
  %452 = vmatprep.subr.bf16.mxu0 0
  %453 = vmatpush1.bf16.msra.mxu0 %v434
  %454 = vmatprep.subr.bf16.mxu0 0
  %455 = vmatpush1.bf16.msra.mxu0 %v433
  %456 = vmatprep.subr.bf16.mxu0 0
  %457 = vmatpush2.bf16.msra.mxu0 0
  %458 = vmatprep.subr.bf16.mxu0 0
  %459 = vmatpush2.bf16.msra.mxu0 0
  %460 = vmatprep.subr.bf16.mxu0 0
  %461 = vmatpush2.bf16.msra.mxu0 0
  %462 = vmatprep.subr.bf16.mxu0 0
  %463 = vmatpush2.bf16.msra.mxu0 0
  %464 = vmatprep.subr.bf16.mxu0 0
  %465 = vmatpush2.bf16.msra.mxu0 0
  %466 = vmatprep.subr.bf16.mxu0 0
  %467 = vmatpush2.bf16.msra.mxu0 0
  %468 = vmatprep.subr.bf16.mxu0 0
  %469 = vmatpush2.bf16.msra.mxu0 0
  %470 = vmatprep.subr.bf16.mxu0 0
  %471 = vmatpush2.bf16.msra.mxu0 0
  %472 = vmatprep.mubr.bf16.mxu0 0
  %473 = vmatmul.mubr.bf16.gmra.mxu0 %v438
  %v474 = vpop.f32.mrf.mxu0
  %v475 = vadd.f32 0.0, %v474
  %v476 = vpop.f32.mrf.mxu0
  %v477 = vpop.f32.mrf.mxu0
  %v478 = vadd.f32 0.0, %v477
  %v479 = vpop.f32.mrf.mxu0
  %480 = vdwg.mxu0
  %481 = vst.msk [vmem:[%s6] sm:$0xff] %vm36, %v475
  %482 = vst.msk [vmem:[%s6 + $0x8] sm:$0xff] %vm36, %v478
  // Predicated region
  $region26: #{_lambda_.9} parent=0 // pred_check
    _
  $region27: #{_lambda_.9} parent=0 // pred_check_branch
    %484 = sbr.rel (0) target = $region29
  $region28: #{_lambda_.9} parent=0 // pred_region
    _
  $region29: #{_lambda_.9} parent=0 // pred_fallthru
    _
  // Predicated region
  $region30: #{_lambda_.9} parent=0 // pred_check
    _
  $region31: #{_lambda_.9} parent=0 // pred_check_branch
    %486 = sbr.rel (0) target = $region33
  $region32: #{_lambda_.9} parent=0 // pred_region
    _
  $region33: #{_lambda_.9} parent=0 // pred_fallthru
    _

// kernel: _lambda_.7
$region0: #{_lambda_.7}
  #allocation0 [shape = 'u32[]', space=smem, size = 0x4, offset = 0x4, fixed_abs, tag = 'smem constant byte address 0x4 - core index']
  #allocation1 [shape = 'u32[144,128]{1,0:T(1,128)}', space=vmem, size = 0x12000, scoped, tag = 'internal scratch']
  %s0 = inlined_call_operand.vmem [shape: bf16[16,32], index: 0, kind: input, shape index: {}]
  %s1 = inlined_call_operand.vmem [shape: bf16[16,32], index: 1, kind: input, shape index: {}]
  %s2 = inlined_call_operand.vmem [shape: f32[1,32], index: 2, kind: input, shape index: {}]
  %s3 = inlined_call_operand.vmem [shape: bf16[32,160], index: 3, kind: input, shape index: {}]
  %s4 = inlined_call_operand.vmem [shape: bf16[5,32,32], index: 4, kind: input, shape index: {}]
  %s5 = inlined_call_operand.vmem [shape: f32[5,1,32], index: 5, kind: input, shape index: {}]
  %s6 = inlined_call_operand.vmem [shape: bf16[32,16], index: 6, kind: input, shape index: {}]
  %s7 = inlined_call_operand.vmem [shape: bf16[32,16], index: 7, kind: input, shape index: {}]
  %s8 = inlined_call_operand.vmem [shape: bf16[32,32], index: 8, kind: input, shape index: {}]
  %s9 = inlined_call_operand.vmem [shape: bf16[32,32], index: 9, kind: input, shape index: {}]
  %s10 = inlined_call_operand.vmem [shape: bf16[32,64], index: 10, kind: input, shape index: {}]
  %s11 = inlined_call_operand.vmem [shape: bf16[64,16], index: 11, kind: input, shape index: {}]
  %s12 = inlined_call_operand.vmem [shape: f32[1,16], index: 12, kind: input, shape index: {}]
  %s13 = inlined_call_operand.vmem [shape: bf16[16,16], index: 13, kind: output, shape index: {0}]
  %s14 = inlined_call_operand.vmem [shape: bf16[16,16], index: 14, kind: output, shape index: {1}]
  %s15 = inlined_call_operand.vmem [shape: bf16[16,32], index: 15, kind: output, shape index: {2}]
  %s16 = inlined_call_operand.vmem [shape: bf16[16,32], index: 16, kind: output, shape index: {3}]
  %s17 = inlined_call_operand.vmem [shape: f32[16,16], index: 17, kind: output, shape index: {4}]
  %18 = xla_tuple %s13, %s14, %s15, %s16, %s17
  %s19 = sld [smem:[#allocation0]]
  $region94: #{_lambda_.7} parent=0
    _
  %s21 = ssub.s32 1, %s19
  %s22 = scalar_select 0, %s21, %s19
  // Predicated region
  $region2: #{_lambda_.7} parent=0 // pred_check
    _
  $region3: #{_lambda_.7} parent=0 // pred_check_branch
    %24 = sbr.rel (0) target = $region5
  $region4: #{_lambda_.7} parent=0 // pred_region
    _
  $region5: #{_lambda_.7} parent=0 // pred_fallthru
    _
  // Predicated region
  $region6: #{_lambda_.7} parent=0 // pred_check
    _
  $region7: #{_lambda_.7} parent=0 // pred_check_branch
    %26 = sbr.rel (0) target = $region9
  $region8: #{_lambda_.7} parent=0 // pred_region
    _
  $region9: #{_lambda_.7} parent=0 // pred_fallthru
    _
  // Predicated region
  $region10: #{_lambda_.7} parent=0 // pred_check
    _
  $region11: #{_lambda_.7} parent=0 // pred_check_branch
    %28 = sbr.rel (0) target = $region13
  $region12: #{_lambda_.7} parent=0 // pred_region
    _
  $region13: #{_lambda_.7} parent=0 // pred_fallthru
    _
  // Predicated region
  $region14: #{_lambda_.7} parent=0 // pred_check
    _
  $region15: #{_lambda_.7} parent=0 // pred_check_branch
    %30 = sbr.rel (0) target = $region17
  $region16: #{_lambda_.7} parent=0 // pred_region
    _
  $region17: #{_lambda_.7} parent=0 // pred_fallthru
    _
  // Predicated region
  $region18: #{_lambda_.7} parent=0 // pred_check
    _
  $region19: #{_lambda_.7} parent=0 // pred_check_branch
    %32 = sbr.rel (0) target = $region21
  $region20: #{_lambda_.7} parent=0 // pred_region
    _
  $region21: #{_lambda_.7} parent=0 // pred_fallthru
    _
  // Predicated region
  $region22: #{_lambda_.7} parent=0 // pred_check
    _
  $region23: #{_lambda_.7} parent=0 // pred_check_branch
    %34 = sbr.rel (0) target = $region25
  $region24: #{_lambda_.7} parent=0 // pred_region
    _
  $region25: #{_lambda_.7} parent=0 // pred_fallthru
    _
  // Predicated region
  $region26: #{_lambda_.7} parent=0 // pred_check
    _
  $region27: #{_lambda_.7} parent=0 // pred_check_branch
    %36 = sbr.rel (0) target = $region29
  $region28: #{_lambda_.7} parent=0 // pred_region
    _
  $region29: #{_lambda_.7} parent=0 // pred_fallthru
    _
  // Predicated region
  $region30: #{_lambda_.7} parent=0 // pred_check
    _
  $region31: #{_lambda_.7} parent=0 // pred_check_branch
    %38 = sbr.rel (0) target = $region33
  $region32: #{_lambda_.7} parent=0 // pred_region
    _
  $region33: #{_lambda_.7} parent=0 // pred_fallthru
    _
  // Predicated region
  $region34: #{_lambda_.7} parent=0 // pred_check
    _
  $region35: #{_lambda_.7} parent=0 // pred_check_branch
    %40 = sbr.rel (0) target = $region37
  $region36: #{_lambda_.7} parent=0 // pred_region
    _
  $region37: #{_lambda_.7} parent=0 // pred_fallthru
    _
  // Predicated region
  $region38: #{_lambda_.7} parent=0 // pred_check
    _
  $region39: #{_lambda_.7} parent=0 // pred_check_branch
    %42 = sbr.rel (0) target = $region41
  $region40: #{_lambda_.7} parent=0 // pred_region
    _
  $region41: #{_lambda_.7} parent=0 // pred_fallthru
    _
  // Predicated region
  $region42: #{_lambda_.7} parent=0 // pred_check
    _
  $region43: #{_lambda_.7} parent=0 // pred_check_branch
    %44 = sbr.rel (0) target = $region45
  $region44: #{_lambda_.7} parent=0 // pred_region
    _
  $region45: #{_lambda_.7} parent=0 // pred_fallthru
    _
  // Predicated region
  $region46: #{_lambda_.7} parent=0 // pred_check
    _
  $region47: #{_lambda_.7} parent=0 // pred_check_branch
    %46 = sbr.rel (0) target = $region49
  $region48: #{_lambda_.7} parent=0 // pred_region
    _
  $region49: #{_lambda_.7} parent=0 // pred_fallthru
    _
  // Predicated region
  $region50: #{_lambda_.7} parent=0 // pred_check
    _
  $region51: #{_lambda_.7} parent=0 // pred_check_branch
    %48 = sbr.rel (0) target = $region53
  $region52: #{_lambda_.7} parent=0 // pred_region
    _
  $region53: #{_lambda_.7} parent=0 // pred_fallthru
    _
  %v50 = vld [vmem:[%s0] sm:$0xf]
  %v51 = vld [vmem:[%s0 + $0x4] sm:$0xf]
  %v52 = vunpack.c.l.bf16 %v50
  %v53 = vunpack.c.l.bf16 %v51
  %v54 = vld [vmem:[%s1] sm:$0xf]
  %v55 = vld [vmem:[%s1 + $0x4] sm:$0xf]
  %v56 = vunpack.c.l.bf16 %v54
  %v57 = vunpack.c.l.bf16 %v55
  %v58 = vld [vmem:[%s2] sm:$0x1]
  %v60 = vlaneseq
  %v61 = vshrl.u32 %v60, 7
  %v62 = vsub.s32 0, %v61
  %v63 = vrot.slane %v58, %v62
  %v65 = vmul.f32 %v56, %v63
  %v66 = vmul.f32 %v57, %v63
  %v67 = vadd.f32 %v52, %v65
  %v68 = vadd.f32 %v53, %v66
  %v69 = vpack.c.bf16 %v68, %v67
  %v70 = vld [vmem:[%s3] sm:$0xff]
  %v71 = vld [vmem:[%s3 + $0x8] sm:$0xff]
  %v72 = vld [vmem:[%s3 + $0x10] sm:$0xff]
  %v73 = vld [vmem:[%s3 + $0x18] sm:$0xff]
  %v78 = vunpack.c.l.b16 %v70
  %v79 = vunpack.c.h.b16 %v70
  %v80 = vunpack.c.l.b16 %v71
  %v81 = vunpack.c.h.b16 %v71
  %v82 = vunpack.c.l.b16 %v72
  %v83 = vunpack.c.h.b16 %v72
  %v84 = vunpack.c.l.b16 %v73
  %v85 = vunpack.c.h.b16 %v73
  %v86 = vpack.c.b16 %v80, %v78
  %v87 = vpack.c.b16 %v81, %v79
  %v88 = vpack.c.b16 %v84, %v82
  %v89 = vpack.c.b16 %v85, %v83
  %vm94 = vcmask 261120
  %v96 = vsel %vm94, %v69, 0
  %98 = vmatprep.subr.bf16.mxu0 0
  %99 = vmatpush1.bf16.msra.mxu0 0
  %100 = vmatprep.subr.bf16.mxu0 0
  %101 = vmatpush1.bf16.msra.mxu0 0
  %102 = vmatprep.subr.bf16.mxu0 0
  %103 = vmatpush1.bf16.msra.mxu0 0
  %104 = vmatprep.subr.bf16.mxu0 0
  %105 = vmatpush1.bf16.msra.mxu0 0
  %106 = vmatprep.subr.bf16.mxu0 0
  %107 = vmatpush1.bf16.msra.mxu0 0
  %108 = vmatprep.subr.bf16.mxu0 0
  %109 = vmatpush1.bf16.msra.mxu0 0
  %110 = vmatprep.subr.bf16.mxu0 %v89
  %111 = vmatpush1.bf16.msra.mxu0 %v88
  %112 = vmatprep.subr.bf16.mxu0 %v87
  %113 = vmatpush1.bf16.msra.mxu0 %v86
  %114 = vmatprep.subr.bf16.mxu0 0
  %115 = vmatpush2.bf16.msra.mxu0 0
  %116 = vmatprep.subr.bf16.mxu0 0
  %117 = vmatpush2.bf16.msra.mxu0 0
  %118 = vmatprep.subr.bf16.mxu0 0
  %119 = vmatpush2.bf16.msra.mxu0 0
  %120 = vmatprep.subr.bf16.mxu0 0
  %121 = vmatpush2.bf16.msra.mxu0 0
  %122 = vmatprep.subr.bf16.mxu0 0
  %123 = vmatpush2.bf16.msra.mxu0 0
  %124 = vmatprep.subr.bf16.mxu0 0
  %125 = vmatpush2.bf16.msra.mxu0 0
  %126 = vmatprep.subr.bf16.mxu0 0
  %127 = vmatpush2.bf16.msra.mxu0 0
  %128 = vmatprep.subr.bf16.mxu0 0
  %129 = vmatpush2.bf16.msra.mxu0 0
  %130 = vmatprep.mubr.bf16.mxu0 0
  %131 = vmatmul.mubr.bf16.gmra.mxu0 %v96
  %v132 = vpop.f32.mrf.mxu0
  %v133 = vadd.f32 0.0, %v132
  %v134 = vpop.f32.mrf.mxu0
  %v135 = vadd.f32 0.0, %v134
  %v136 = vpop.f32.mrf.mxu0
  %v137 = vadd.f32 0.0, %v136
  %v138 = vpop.f32.mrf.mxu0
  %v139 = vadd.f32 0.0, %v138
  %140 = vdwg.mxu0
  %v141 = vtanh.pop %v133
  %v142 = vtanh.pop %v135
  %v143 = vtanh.pop %v137
  %v144 = vtanh.pop %v139
  %v145 = vpack.c.bf16 %v143, %v141
  %v146 = vld [vmem:[%s4] sm:$0xf]
  %v147 = vld [vmem:[%s4 + $0x4] sm:$0xf]
  %v148 = vld [vmem:[%s4 + $0x8] sm:$0xf]
  %v149 = vld [vmem:[%s4 + $0xc] sm:$0xf]
  %v150 = vld [vmem:[%s5] sm:$0x1]
  %v152 = vlaneseq
  %v153 = vshrl.u32 %v152, 7
  %v154 = vsub.s32 0, %v153
  %v155 = vrot.slane %v150, %v154
  %v161 = vunpack.c.l.b16 %v146
  %v162 = vunpack.c.l.b16 %v147
  %v163 = vunpack.c.l.b16 %v148
  %v164 = vunpack.c.l.b16 %v149
  %v165 = vpack.c.b16 %v162, %v161
  %v166 = vpack.c.b16 %v164, %v163
  %v170 = vsel %vm94, %v145, 0
  %172 = vmatprep.subr.bf16.mxu0 0
  %173 = vmatpush1.bf16.msra.mxu0 0
  %174 = vmatprep.subr.bf16.mxu0 0
  %175 = vmatpush1.bf16.msra.mxu0 0
  %176 = vmatprep.subr.bf16.mxu0 0
  %177 = vmatpush1.bf16.msra.mxu0 0
  %178 = vmatprep.subr.bf16.mxu0 0
  %179 = vmatpush1.bf16.msra.mxu0 0
  %180 = vmatprep.subr.bf16.mxu0 0
  %181 = vmatpush1.bf16.msra.mxu0 0
  %182 = vmatprep.subr.bf16.mxu0 0
  %183 = vmatpush1.bf16.msra.mxu0 0
  %184 = vmatprep.subr.bf16.mxu0 0
  %185 = vmatpush1.bf16.msra.mxu0 %v166
  %186 = vmatprep.subr.bf16.mxu0 0
  %187 = vmatpush1.bf16.msra.mxu0 %v165
  %188 = vmatprep.subr.bf16.mxu0 0
  %189 = vmatpush2.bf16.msra.mxu0 0
  %190 = vmatprep.subr.bf16.mxu0 0
  %191 = vmatpush2.bf16.msra.mxu0 0
  %192 = vmatprep.subr.bf16.mxu0 0
  %193 = vmatpush2.bf16.msra.mxu0 0
  %194 = vmatprep.subr.bf16.mxu0 0
  %195 = vmatpush2.bf16.msra.mxu0 0
  %196 = vmatprep.subr.bf16.mxu0 0
  %197 = vmatpush2.bf16.msra.mxu0 0
  %198 = vmatprep.subr.bf16.mxu0 0
  %199 = vmatpush2.bf16.msra.mxu0 0
  %200 = vmatprep.subr.bf16.mxu0 0
  %201 = vmatpush2.bf16.msra.mxu0 0
  %202 = vmatprep.subr.bf16.mxu0 0
  %203 = vmatpush2.bf16.msra.mxu0 0
  %204 = vmatprep.mubr.bf16.mxu0 0
  %205 = vmatmul.mubr.bf16.gmra.mxu0 %v170
  %v206 = vpop.f32.mrf.mxu0
  %v207 = vadd.f32 %v155, %v206
  %v208 = vpop.f32.mrf.mxu0
  %v209 = vpop.f32.mrf.mxu0
  %v210 = vadd.f32 %v155, %v209
  %v211 = vpop.f32.mrf.mxu0
  %212 = vdwg.mxu0
  %s213 = scalar_lea.vmem %s4, 16
  %v214 = vld [vmem:[%s213] sm:$0xf]
  %v215 = vld [vmem:[%s213 + $0x4] sm:$0xf]
  %v216 = vld [vmem:[%s213 + $0x8] sm:$0xf]
  %v217 = vld [vmem:[%s213 + $0xc] sm:$0xf]
  %s218 = scalar_lea.vmem %s5, 1
  %v219 = vld [vmem:[%s218] sm:$0x1]
  %v221 = vlaneseq
  %v222 = vshrl.u32 %v221, 7
  %v223 = vsub.s32 0, %v222
  %v224 = vrot.slane %v219, %v223
  %227 = vrot.lane.b32.xlu0 %v145, 96
  %v228 = vpop.permute.xlu0 %227
  %v233 = vunpack.c.l.b16 %v214
  %v234 = vunpack.c.l.b16 %v215
  %v235 = vunpack.c.l.b16 %v216
  %v236 = vunpack.c.l.b16 %v217
  %v237 = vpack.c.b16 %v234, %v233
  %v238 = vpack.c.b16 %v236, %v235
  %v242 = vsel %vm94, %v228, 0
  %244 = vmatprep.subr.bf16.mxu0 0
  %245 = vmatpush1.bf16.msra.mxu0 0
  %246 = vmatprep.subr.bf16.mxu0 0
  %247 = vmatpush1.bf16.msra.mxu0 0
  %248 = vmatprep.subr.bf16.mxu0 0
  %249 = vmatpush1.bf16.msra.mxu0 0
  %250 = vmatprep.subr.bf16.mxu0 0
  %251 = vmatpush1.bf16.msra.mxu0 0
  %252 = vmatprep.subr.bf16.mxu0 0
  %253 = vmatpush1.bf16.msra.mxu0 0
  %254 = vmatprep.subr.bf16.mxu0 0
  %255 = vmatpush1.bf16.msra.mxu0 0
  %256 = vmatprep.subr.bf16.mxu0 0
  %257 = vmatpush1.bf16.msra.mxu0 %v238
  %258 = vmatprep.subr.bf16.mxu0 0
  %259 = vmatpush1.bf16.msra.mxu0 %v237
  %260 = vmatprep.subr.bf16.mxu0 0
  %261 = vmatpush2.bf16.msra.mxu0 0
  %262 = vmatprep.subr.bf16.mxu0 0
  %263 = vmatpush2.bf16.msra.mxu0 0
  %264 = vmatprep.subr.bf16.mxu0 0
  %265 = vmatpush2.bf16.msra.mxu0 0
  %266 = vmatprep.subr.bf16.mxu0 0
  %267 = vmatpush2.bf16.msra.mxu0 0
  %268 = vmatprep.subr.bf16.mxu0 0
  %269 = vmatpush2.bf16.msra.mxu0 0
  %270 = vmatprep.subr.bf16.mxu0 0
  %271 = vmatpush2.bf16.msra.mxu0 0
  %272 = vmatprep.subr.bf16.mxu0 0
  %273 = vmatpush2.bf16.msra.mxu0 0
  %274 = vmatprep.subr.bf16.mxu0 0
  %275 = vmatpush2.bf16.msra.mxu0 0
  %276 = vmatprep.mubr.bf16.mxu0 0
  %277 = vmatmul.mubr.bf16.gmra.mxu0 %v242
  %v278 = vpop.f32.mrf.mxu0
  %v279 = vadd.f32 %v224, %v278
  %v280 = vpop.f32.mrf.mxu0
  %v281 = vpop.f32.mrf.mxu0
  %v282 = vadd.f32 %v224, %v281
  %v283 = vpop.f32.mrf.mxu0
  %284 = vdwg.mxu0
  %s285 = scalar_lea.vmem %s4, 32
  %v286 = vld [vmem:[%s285] sm:$0xf]
  %v287 = vld [vmem:[%s285 + $0x4] sm:$0xf]
  %v288 = vld [vmem:[%s285 + $0x8] sm:$0xf]
  %v289 = vld [vmem:[%s285 + $0xc] sm:$0xf]
  %s290 = scalar_lea.vmem %s5, 2
  %v291 = vld [vmem:[%s290] sm:$0x1]
  %v293 = vlaneseq
  %v294 = vshrl.u32 %v293, 7
  %v295 = vsub.s32 0, %v294
  %v296 = vrot.slane %v291, %v295
  %298 = vrot.lane.b32.xlu0 %v145, 64
  %v299 = vpop.permute.xlu0 %298
  %v304 = vunpack.c.l.b16 %v286
  %v305 = vunpack.c.l.b16 %v287
  %v306 = vunpack.c.l.b16 %v288
  %v307 = vunpack.c.l.b16 %v289
  %v308 = vpack.c.b16 %v305, %v304
  %v309 = vpack.c.b16 %v307, %v306
  %v313 = vsel %vm94, %v299, 0
  %315 = vmatprep.subr.bf16.mxu0 0
  %316 = vmatpush1.bf16.msra.mxu0 0
  %317 = vmatprep.subr.bf16.mxu0 0
  %318 = vmatpush1.bf16.msra.mxu0 0
  %319 = vmatprep.subr.bf16.mxu0 0
  %320 = vmatpush1.bf16.msra.mxu0 0
  %321 = vmatprep.subr.bf16.mxu0 0
  %322 = vmatpush1.bf16.msra.mxu0 0
  %323 = vmatprep.subr.bf16.mxu0 0
  %324 = vmatpush1.bf16.msra.mxu0 0
  %325 = vmatprep.subr.bf16.mxu0 0
  %326 = vmatpush1.bf16.msra.mxu0 0
  %327 = vmatprep.subr.bf16.mxu0 0
  %328 = vmatpush1.bf16.msra.mxu0 %v309
  %329 = vmatprep.subr.bf16.mxu0 0
  %330 = vmatpush1.bf16.msra.mxu0 %v308
  %331 = vmatprep.subr.bf16.mxu0 0
  %332 = vmatpush2.bf16.msra.mxu0 0
  %333 = vmatprep.subr.bf16.mxu0 0
  %334 = vmatpush2.bf16.msra.mxu0 0
  %335 = vmatprep.subr.bf16.mxu0 0
  %336 = vmatpush2.bf16.msra.mxu0 0
  %337 = vmatprep.subr.bf16.mxu0 0
  %338 = vmatpush2.bf16.msra.mxu0 0
  %339 = vmatprep.subr.bf16.mxu0 0
  %340 = vmatpush2.bf16.msra.mxu0 0
  %341 = vmatprep.subr.bf16.mxu0 0
  %342 = vmatpush2.bf16.msra.mxu0 0
  %343 = vmatprep.subr.bf16.mxu0 0
  %344 = vmatpush2.bf16.msra.mxu0 0
  %345 = vmatprep.subr.bf16.mxu0 0
  %346 = vmatpush2.bf16.msra.mxu0 0
  %347 = vmatprep.mubr.bf16.mxu0 0
  %348 = vmatmul.mubr.bf16.gmra.mxu0 %v313
  %v349 = vpop.f32.mrf.mxu0
  %v350 = vadd.f32 %v296, %v349
  %v351 = vpop.f32.mrf.mxu0
  %v352 = vpop.f32.mrf.mxu0
  %v353 = vadd.f32 %v296, %v352
  %v354 = vpop.f32.mrf.mxu0
  %355 = vdwg.mxu0
  %s356 = scalar_lea.vmem %s4, 48
  %v357 = vld [vmem:[%s356] sm:$0xf]
  %v358 = vld [vmem:[%s356 + $0x4] sm:$0xf]
  %v359 = vld [vmem:[%s356 + $0x8] sm:$0xf]
  %v360 = vld [vmem:[%s356 + $0xc] sm:$0xf]
  %s361 = scalar_lea.vmem %s5, 3
  %v362 = vld [vmem:[%s361] sm:$0x1]
  %v364 = vlaneseq
  %v365 = vshrl.u32 %v364, 7
  %v366 = vsub.s32 0, %v365
  %v367 = vrot.slane %v362, %v366
  %369 = vrot.lane.b32.xlu0 %v145, 32
  %v370 = vpop.permute.xlu0 %369
  %v375 = vunpack.c.l.b16 %v357
  %v376 = vunpack.c.l.b16 %v358
  %v377 = vunpack.c.l.b16 %v359
  %v378 = vunpack.c.l.b16 %v360
  %v379 = vpack.c.b16 %v376, %v375
  %v380 = vpack.c.b16 %v378, %v377
  %v384 = vsel %vm94, %v370, 0
  %386 = vmatprep.subr.bf16.mxu0 0
  %387 = vmatpush1.bf16.msra.mxu0 0
  %388 = vmatprep.subr.bf16.mxu0 0
  %389 = vmatpush1.bf16.msra.mxu0 0
  %390 = vmatprep.subr.bf16.mxu0 0
  %391 = vmatpush1.bf16.msra.mxu0 0
  %392 = vmatprep.subr.bf16.mxu0 0
  %393 = vmatpush1.bf16.msra.mxu0 0
  %394 = vmatprep.subr.bf16.mxu0 0
  %395 = vmatpush1.bf16.msra.mxu0 0
  %396 = vmatprep.subr.bf16.mxu0 0
  %397 = vmatpush1.bf16.msra.mxu0 0
  %398 = vmatprep.subr.bf16.mxu0 0
  %399 = vmatpush1.bf16.msra.mxu0 %v380
  %400 = vmatprep.subr.bf16.mxu0 0
  %401 = vmatpush1.bf16.msra.mxu0 %v379
  %402 = vmatprep.subr.bf16.mxu0 0
  %403 = vmatpush2.bf16.msra.mxu0 0
  %404 = vmatprep.subr.bf16.mxu0 0
  %405 = vmatpush2.bf16.msra.mxu0 0
  %406 = vmatprep.subr.bf16.mxu0 0
  %407 = vmatpush2.bf16.msra.mxu0 0
  %408 = vmatprep.subr.bf16.mxu0 0
  %409 = vmatpush2.bf16.msra.mxu0 0
  %410 = vmatprep.subr.bf16.mxu0 0
  %411 = vmatpush2.bf16.msra.mxu0 0
  %412 = vmatprep.subr.bf16.mxu0 0
  %413 = vmatpush2.bf16.msra.mxu0 0
  %414 = vmatprep.subr.bf16.mxu0 0
  %415 = vmatpush2.bf16.msra.mxu0 0
  %416 = vmatprep.subr.bf16.mxu0 0
  %417 = vmatpush2.bf16.msra.mxu0 0
  %418 = vmatprep.mubr.bf16.mxu0 0
  %419 = vmatmul.mubr.bf16.gmra.mxu0 %v384
  %v420 = vpop.f32.mrf.mxu0
  %v421 = vadd.f32 %v367, %v420
  %v422 = vpop.f32.mrf.mxu0
  %v423 = vpop.f32.mrf.mxu0
  %v424 = vadd.f32 %v367, %v423
  %v425 = vpop.f32.mrf.mxu0
  %426 = vdwg.mxu0
  %v427 = vpack.c.bf16 %v144, %v142
  %s428 = scalar_lea.vmem %s4, 64
  %v429 = vld [vmem:[%s428] sm:$0xf]
  %v430 = vld [vmem:[%s428 + $0x4] sm:$0xf]
  %v431 = vld [vmem:[%s428 + $0x8] sm:$0xf]
  %v432 = vld [vmem:[%s428 + $0xc] sm:$0xf]
  %s433 = scalar_lea.vmem %s5, 4
  %v434 = vld [vmem:[%s433] sm:$0x1]
  %v436 = vlaneseq
  %v437 = vshrl.u32 %v436, 7
  %v438 = vsub.s32 0, %v437
  %v439 = vrot.slane %v434, %v438
  %v445 = vunpack.c.l.b16 %v429
  %v446 = vunpack.c.l.b16 %v430
  %v447 = vunpack.c.l.b16 %v431
  %v448 = vunpack.c.l.b16 %v432
  %v449 = vpack.c.b16 %v446, %v445
  %v450 = vpack.c.b16 %v448, %v447
  %v454 = vsel %vm94, %v427, 0
  %456 = vmatprep.subr.bf16.mxu0 0
  %457 = vmatpush1.bf16.msra.mxu0 0
  %458 = vmatprep.subr.bf16.mxu0 0
  %459 = vmatpush1.bf16.msra.mxu0 0
  %460 = vmatprep.subr.bf16.mxu0 0
  %461 = vmatpush1.bf16.msra.mxu0 0
  %462 = vmatprep.subr.bf16.mxu0 0
  %463 = vmatpush1.bf16.msra.mxu0 0
  %464 = vmatprep.subr.bf16.mxu0 0
  %465 = vmatpush1.bf16.msra.mxu0 0
  %466 = vmatprep.subr.bf16.mxu0 0
  %467 = vmatpush1.bf16.msra.mxu0 0
  %468 = vmatprep.subr.bf16.mxu0 0
  %469 = vmatpush1.bf16.msra.mxu0 %v450
  %470 = vmatprep.subr.bf16.mxu0 0
  %471 = vmatpush1.bf16.msra.mxu0 %v449
  %472 = vmatprep.subr.bf16.mxu0 0
  %473 = vmatpush2.bf16.msra.mxu0 0
  %474 = vmatprep.subr.bf16.mxu0 0
  %475 = vmatpush2.bf16.msra.mxu0 0
  %476 = vmatprep.subr.bf16.mxu0 0
  %477 = vmatpush2.bf16.msra.mxu0 0
  %478 = vmatprep.subr.bf16.mxu0 0
  %479 = vmatpush2.bf16.msra.mxu0 0
  %480 = vmatprep.subr.bf16.mxu0 0
  %481 = vmatpush2.bf16.msra.mxu0 0
  %482 = vmatprep.subr.bf16.mxu0 0
  %483 = vmatpush2.bf16.msra.mxu0 0
  %484 = vmatprep.subr.bf16.mxu0 0
  %485 = vmatpush2.bf16.msra.mxu0 0
  %486 = vmatprep.subr.bf16.mxu0 0
  %487 = vmatpush2.bf16.msra.mxu0 0
  %488 = vmatprep.mubr.bf16.mxu0 0
  %489 = vmatmul.mubr.bf16.gmra.mxu0 %v454
  %v490 = vpop.f32.mrf.mxu0
  %v491 = vadd.f32 %v439, %v490
  %v492 = vpop.f32.mrf.mxu0
  %v493 = vpop.f32.mrf.mxu0
  %v494 = vadd.f32 %v439, %v493
  %v495 = vpop.f32.mrf.mxu0
  %496 = vdwg.mxu0
  %v497 = vld [vmem:[%s6] sm:$0xf]
  %v498 = vld [vmem:[%s6 + $0x4] sm:$0xf]
  %v499 = vld [vmem:[%s6 + $0x8] sm:$0xf]
  %v500 = vld [vmem:[%s6 + $0xc] sm:$0xf]
  %v501 = vmul.f32 %v56, %v207
  %v502 = vmul.f32 %v57, %v210
  %v503 = vadd.f32 %v52, %v501
  %v504 = vadd.f32 %v53, %v502
  %v505 = vpack.c.bf16 %v504, %v503
  %v510 = vunpack.c.l.b16 %v497
  %v511 = vunpack.c.l.b16 %v498
  %v512 = vunpack.c.l.b16 %v499
  %v513 = vunpack.c.l.b16 %v500
  %v514 = vpack.c.b16 %v511, %v510
  %v515 = vpack.c.b16 %v513, %v512
  %v519 = vsel %vm94, %v505, 0
  %521 = vmatprep.subr.bf16.mxu0 0
  %522 = vmatpush1.bf16.msra.mxu0 0
  %523 = vmatprep.subr.bf16.mxu0 0
  %524 = vmatpush1.bf16.msra.mxu0 0
  %525 = vmatprep.subr.bf16.mxu0 0
  %526 = vmatpush1.bf16.msra.mxu0 0
  %527 = vmatprep.subr.bf16.mxu0 0
  %528 = vmatpush1.bf16.msra.mxu0 0
  %529 = vmatprep.subr.bf16.mxu0 0
  %530 = vmatpush1.bf16.msra.mxu0 0
  %531 = vmatprep.subr.bf16.mxu0 0
  %532 = vmatpush1.bf16.msra.mxu0 0
  %533 = vmatprep.subr.bf16.mxu0 0
  %534 = vmatpush1.bf16.msra.mxu0 %v515
  %535 = vmatprep.subr.bf16.mxu0 0
  %536 = vmatpush1.bf16.msra.mxu0 %v514
  %537 = vmatprep.subr.bf16.mxu0 0
  %538 = vmatpush2.bf16.msra.mxu0 0
  %539 = vmatprep.subr.bf16.mxu0 0
  %540 = vmatpush2.bf16.msra.mxu0 0
  %541 = vmatprep.subr.bf16.mxu0 0
  %542 = vmatpush2.bf16.msra.mxu0 0
  %543 = vmatprep.subr.bf16.mxu0 0
  %544 = vmatpush2.bf16.msra.mxu0 0
  %545 = vmatprep.subr.bf16.mxu0 0
  %546 = vmatpush2.bf16.msra.mxu0 0
  %547 = vmatprep.subr.bf16.mxu0 0
  %548 = vmatpush2.bf16.msra.mxu0 0
  %549 = vmatprep.subr.bf16.mxu0 0
  %550 = vmatpush2.bf16.msra.mxu0 0
  %551 = vmatprep.subr.bf16.mxu0 0
  %552 = vmatpush2.bf16.msra.mxu0 0
  %553 = vmatprep.mubr.bf16.mxu0 0
  %554 = vmatmul.mubr.bf16.gmra.mxu0 %v519
  %v555 = vpop.f32.mrf.mxu0
  %v556 = vadd.f32 0.0, %v555
  %v557 = vpop.f32.mrf.mxu0
  %v558 = vpop.f32.mrf.mxu0
  %v559 = vadd.f32 0.0, %v558
  %v560 = vpop.f32.mrf.mxu0
  %561 = vdwg.mxu0
  %v562 = vpack.c.bf16 %v559, %v556
  %v564 = vunpack.c.l.b16 %v562
  %v565 = vunpack.c.h.b16 %v562
  %v566 = vpack.c.b16 %v564, %v564
  %v567 = vpack.c.b16 %v565, %v565
  %vm570 = vcmask 125952
  %571 = vst.msk [vmem:[%s13] sm:$0xf] %vm570, %v566
  %572 = vst.msk [vmem:[%s13 + $0x4] sm:$0xf] %vm570, %v567
  %v573 = vld [vmem:[%s7] sm:$0xf]
  %v574 = vld [vmem:[%s7 + $0x4] sm:$0xf]
  %v575 = vld [vmem:[%s7 + $0x8] sm:$0xf]
  %v576 = vld [vmem:[%s7 + $0xc] sm:$0xf]
  %v577 = vmul.f32 %v56, %v350
  %v578 = vmul.f32 %v57, %v353
  %v579 = vadd.f32 %v52, %v577
  %v580 = vadd.f32 %v53, %v578
  %v581 = vpack.c.bf16 %v580, %v579
  %v586 = vunpack.c.l.b16 %v573
  %v587 = vunpack.c.l.b16 %v574
  %v588 = vunpack.c.l.b16 %v575
  %v589 = vunpack.c.l.b16 %v576
  %v590 = vpack.c.b16 %v587, %v586
  %v591 = vpack.c.b16 %v589, %v588
  %v595 = vsel %vm94, %v581, 0
  %597 = vmatprep.subr.bf16.mxu0 0
  %598 = vmatpush1.bf16.msra.mxu0 0
  %599 = vmatprep.subr.bf16.mxu0 0
  %600 = vmatpush1.bf16.msra.mxu0 0
  %601 = vmatprep.subr.bf16.mxu0 0
  %602 = vmatpush1.bf16.msra.mxu0 0
  %603 = vmatprep.subr.bf16.mxu0 0
  %604 = vmatpush1.bf16.msra.mxu0 0
  %605 = vmatprep.subr.bf16.mxu0 0
  %606 = vmatpush1.bf16.msra.mxu0 0
  %607 = vmatprep.subr.bf16.mxu0 0
  %608 = vmatpush1.bf16.msra.mxu0 0
  %609 = vmatprep.subr.bf16.mxu0 0
  %610 = vmatpush1.bf16.msra.mxu0 %v591
  %611 = vmatprep.subr.bf16.mxu0 0
  %612 = vmatpush1.bf16.msra.mxu0 %v590
  %613 = vmatprep.subr.bf16.mxu0 0
  %614 = vmatpush2.bf16.msra.mxu0 0
  %615 = vmatprep.subr.bf16.mxu0 0
  %616 = vmatpush2.bf16.msra.mxu0 0
  %617 = vmatprep.subr.bf16.mxu0 0
  %618 = vmatpush2.bf16.msra.mxu0 0
  %619 = vmatprep.subr.bf16.mxu0 0
  %620 = vmatpush2.bf16.msra.mxu0 0
  %621 = vmatprep.subr.bf16.mxu0 0
  %622 = vmatpush2.bf16.msra.mxu0 0
  %623 = vmatprep.subr.bf16.mxu0 0
  %624 = vmatpush2.bf16.msra.mxu0 0
  %625 = vmatprep.subr.bf16.mxu0 0
  %626 = vmatpush2.bf16.msra.mxu0 0
  %627 = vmatprep.subr.bf16.mxu0 0
  %628 = vmatpush2.bf16.msra.mxu0 0
  %629 = vmatprep.mubr.bf16.mxu0 0
  %630 = vmatmul.mubr.bf16.gmra.mxu0 %v595
  %v631 = vpop.f32.mrf.mxu0
  %v632 = vadd.f32 0.0, %v631
  %v633 = vpop.f32.mrf.mxu0
  %v634 = vpop.f32.mrf.mxu0
  %v635 = vadd.f32 0.0, %v634
  %v636 = vpop.f32.mrf.mxu0
  %637 = vdwg.mxu0
  %v638 = vpack.c.bf16 %v635, %v632
  %v640 = vunpack.c.l.b16 %v638
  %v641 = vunpack.c.h.b16 %v638
  %v642 = vpack.c.b16 %v640, %v640
  %v643 = vpack.c.b16 %v641, %v641
  %646 = vst.msk [vmem:[%s14] sm:$0xf] %vm570, %v642
  %647 = vst.msk [vmem:[%s14 + $0x4] sm:$0xf] %vm570, %v643
  %v648 = vld [vmem:[%s8] sm:$0xf]
  %v649 = vld [vmem:[%s8 + $0x4] sm:$0xf]
  %v650 = vld [vmem:[%s8 + $0x8] sm:$0xf]
  %v651 = vld [vmem:[%s8 + $0xc] sm:$0xf]
  %v652 = vmul.f32 %v56, %v421
  %v653 = vmul.f32 %v57, %v424
  %v654 = vadd.f32 %v52, %v652
  %v655 = vadd.f32 %v53, %v653
  %v656 = vpack.c.bf16 %v655, %v654
  %v661 = vunpack.c.l.b16 %v648
  %v662 = vunpack.c.l.b16 %v649
  %v663 = vunpack.c.l.b16 %v650
  %v664 = vunpack.c.l.b16 %v651
  %v665 = vpack.c.b16 %v662, %v661
  %v666 = vpack.c.b16 %v664, %v663
  %v670 = vsel %vm94, %v656, 0
  %672 = vmatprep.subr.bf16.mxu0 0
  %673 = vmatpush1.bf16.msra.mxu0 0
  %674 = vmatprep.subr.bf16.mxu0 0
  %675 = vmatpush1.bf16.msra.mxu0 0
  %676 = vmatprep.subr.bf16.mxu0 0
  %677 = vmatpush1.bf16.msra.mxu0 0
  %678 = vmatprep.subr.bf16.mxu0 0
  %679 = vmatpush1.bf16.msra.mxu0 0
  %680 = vmatprep.subr.bf16.mxu0 0
  %681 = vmatpush1.bf16.msra.mxu0 0
  %682 = vmatprep.subr.bf16.mxu0 0
  %683 = vmatpush1.bf16.msra.mxu0 0
  %684 = vmatprep.subr.bf16.mxu0 0
  %685 = vmatpush1.bf16.msra.mxu0 %v666
  %686 = vmatprep.subr.bf16.mxu0 0
  %687 = vmatpush1.bf16.msra.mxu0 %v665
  %688 = vmatprep.subr.bf16.mxu0 0
  %689 = vmatpush2.bf16.msra.mxu0 0
  %690 = vmatprep.subr.bf16.mxu0 0
  %691 = vmatpush2.bf16.msra.mxu0 0
  %692 = vmatprep.subr.bf16.mxu0 0
  %693 = vmatpush2.bf16.msra.mxu0 0
  %694 = vmatprep.subr.bf16.mxu0 0
  %695 = vmatpush2.bf16.msra.mxu0 0
  %696 = vmatprep.subr.bf16.mxu0 0
  %697 = vmatpush2.bf16.msra.mxu0 0
  %698 = vmatprep.subr.bf16.mxu0 0
  %699 = vmatpush2.bf16.msra.mxu0 0
  %700 = vmatprep.subr.bf16.mxu0 0
  %701 = vmatpush2.bf16.msra.mxu0 0
  %702 = vmatprep.subr.bf16.mxu0 0
  %703 = vmatpush2.bf16.msra.mxu0 0
  %704 = vmatprep.mubr.bf16.mxu0 0
  %705 = vmatmul.mubr.bf16.gmra.mxu0 %v670
  %v706 = vpop.f32.mrf.mxu0
  %v707 = vadd.f32 0.0, %v706
  %v708 = vpop.f32.mrf.mxu0
  %v709 = vpop.f32.mrf.mxu0
  %v710 = vadd.f32 0.0, %v709
  %v711 = vpop.f32.mrf.mxu0
  %712 = vdwg.mxu0
  %v713 = vpack.c.bf16 %v710, %v707
  %v715 = vunpack.c.l.b16 %v713
  %v716 = vunpack.c.h.b16 %v713
  %v717 = vpack.c.b16 %v715, %v715
  %v718 = vpack.c.b16 %v716, %v716
  %vm721 = vcmask 257024
  %722 = vst.msk [vmem:[%s15] sm:$0xf] %vm721, %v717
  %723 = vst.msk [vmem:[%s15 + $0x4] sm:$0xf] %vm721, %v718
  %v724 = vld [vmem:[%s9] sm:$0xf]
  %v725 = vld [vmem:[%s9 + $0x4] sm:$0xf]
  %v726 = vld [vmem:[%s9 + $0x8] sm:$0xf]
  %v727 = vld [vmem:[%s9 + $0xc] sm:$0xf]
  %v728 = vmul.f32 %v56, %v491
  %v729 = vmul.f32 %v57, %v494
  %v730 = vadd.f32 %v52, %v728
  %v731 = vadd.f32 %v53, %v729
  %v732 = vpack.c.bf16 %v731, %v730
  %v737 = vunpack.c.l.b16 %v724
  %v738 = vunpack.c.l.b16 %v725
  %v739 = vunpack.c.l.b16 %v726
  %v740 = vunpack.c.l.b16 %v727
  %v741 = vpack.c.b16 %v738, %v737
  %v742 = vpack.c.b16 %v740, %v739
  %v746 = vsel %vm94, %v732, 0
  %748 = vmatprep.subr.bf16.mxu0 0
  %749 = vmatpush1.bf16.msra.mxu0 0
  %750 = vmatprep.subr.bf16.mxu0 0
  %751 = vmatpush1.bf16.msra.mxu0 0
  %752 = vmatprep.subr.bf16.mxu0 0
  %753 = vmatpush1.bf16.msra.mxu0 0
  %754 = vmatprep.subr.bf16.mxu0 0
  %755 = vmatpush1.bf16.msra.mxu0 0
  %756 = vmatprep.subr.bf16.mxu0 0
  %757 = vmatpush1.bf16.msra.mxu0 0
  %758 = vmatprep.subr.bf16.mxu0 0
  %759 = vmatpush1.bf16.msra.mxu0 0
  %760 = vmatprep.subr.bf16.mxu0 0
  %761 = vmatpush1.bf16.msra.mxu0 %v742
  %762 = vmatprep.subr.bf16.mxu0 0
  %763 = vmatpush1.bf16.msra.mxu0 %v741
  %764 = vmatprep.subr.bf16.mxu0 0
  %765 = vmatpush2.bf16.msra.mxu0 0
  %766 = vmatprep.subr.bf16.mxu0 0
  %767 = vmatpush2.bf16.msra.mxu0 0
  %768 = vmatprep.subr.bf16.mxu0 0
  %769 = vmatpush2.bf16.msra.mxu0 0
  %770 = vmatprep.subr.bf16.mxu0 0
  %771 = vmatpush2.bf16.msra.mxu0 0
  %772 = vmatprep.subr.bf16.mxu0 0
  %773 = vmatpush2.bf16.msra.mxu0 0
  %774 = vmatprep.subr.bf16.mxu0 0
  %775 = vmatpush2.bf16.msra.mxu0 0
  %776 = vmatprep.subr.bf16.mxu0 0
  %777 = vmatpush2.bf16.msra.mxu0 0
  %778 = vmatprep.subr.bf16.mxu0 0
  %779 = vmatpush2.bf16.msra.mxu0 0
  %780 = vmatprep.mubr.bf16.mxu0 0
  %781 = vmatmul.mubr.bf16.gmra.mxu0 %v746
  %v782 = vpop.f32.mrf.mxu0
  %v783 = vadd.f32 0.0, %v782
  %v784 = vpop.f32.mrf.mxu0
  %v785 = vpop.f32.mrf.mxu0
  %v786 = vadd.f32 0.0, %v785
  %v787 = vpop.f32.mrf.mxu0
  %788 = vdwg.mxu0
  %v789 = vpack.c.bf16 %v786, %v783
  %v791 = vunpack.c.l.b16 %v789
  %v792 = vunpack.c.h.b16 %v789
  %v793 = vpack.c.b16 %v791, %v791
  %v794 = vpack.c.b16 %v792, %v792
  %797 = vst.msk [vmem:[%s16] sm:$0xf] %vm721, %v793
  %798 = vst.msk [vmem:[%s16 + $0x4] sm:$0xf] %vm721, %v794
  %v799 = vld [vmem:[%s10] sm:$0xf]
  %v800 = vld [vmem:[%s10 + $0x4] sm:$0xf]
  %v801 = vld [vmem:[%s10 + $0x8] sm:$0xf]
  %v802 = vld [vmem:[%s10 + $0xc] sm:$0xf]
  %v803 = vmul.f32 %v56, %v279
  %v804 = vmul.f32 %v57, %v282
  %v805 = vadd.f32 %v52, %v803
  %v806 = vadd.f32 %v53, %v804
  %v807 = vpack.c.bf16 %v806, %v805
  %v812 = vunpack.c.l.b16 %v799
  %v813 = vunpack.c.l.b16 %v800
  %v814 = vunpack.c.l.b16 %v801
  %v815 = vunpack.c.l.b16 %v802
  %v816 = vpack.c.b16 %v813, %v812
  %v817 = vpack.c.b16 %v815, %v814
  %v821 = vsel %vm94, %v807, 0
  %823 = vmatprep.subr.bf16.mxu0 0
  %824 = vmatpush1.bf16.msra.mxu0 0
  %825 = vmatprep.subr.bf16.mxu0 0
  %826 = vmatpush1.bf16.msra.mxu0 0
  %827 = vmatprep.subr.bf16.mxu0 0
  %828 = vmatpush1.bf16.msra.mxu0 0
  %829 = vmatprep.subr.bf16.mxu0 0
  %830 = vmatpush1.bf16.msra.mxu0 0
  %831 = vmatprep.subr.bf16.mxu0 0
  %832 = vmatpush1.bf16.msra.mxu0 0
  %833 = vmatprep.subr.bf16.mxu0 0
  %834 = vmatpush1.bf16.msra.mxu0 0
  %835 = vmatprep.subr.bf16.mxu0 0
  %836 = vmatpush1.bf16.msra.mxu0 %v817
  %837 = vmatprep.subr.bf16.mxu0 0
  %838 = vmatpush1.bf16.msra.mxu0 %v816
  %839 = vmatprep.subr.bf16.mxu0 0
  %840 = vmatpush2.bf16.msra.mxu0 0
  %841 = vmatprep.subr.bf16.mxu0 0
  %842 = vmatpush2.bf16.msra.mxu0 0
  %843 = vmatprep.subr.bf16.mxu0 0
  %844 = vmatpush2.bf16.msra.mxu0 0
  %845 = vmatprep.subr.bf16.mxu0 0
  %846 = vmatpush2.bf16.msra.mxu0 0
  %847 = vmatprep.subr.bf16.mxu0 0
  %848 = vmatpush2.bf16.msra.mxu0 0
  %849 = vmatprep.subr.bf16.mxu0 0
  %850 = vmatpush2.bf16.msra.mxu0 0
  %851 = vmatprep.subr.bf16.mxu0 0
  %852 = vmatpush2.bf16.msra.mxu0 0
  %853 = vmatprep.subr.bf16.mxu0 0
  %854 = vmatpush2.bf16.msra.mxu0 0
  %855 = vmatprep.mubr.bf16.mxu0 0
  %856 = vmatmul.mubr.bf16.gmra.mxu0 %v821
  %v857 = vpop.f32.mrf.mxu0
  %v858 = vadd.f32 0.0, %v857
  %v859 = vpop.f32.mrf.mxu0
  %v860 = vpop.f32.mrf.mxu0
  %v861 = vadd.f32 0.0, %v860
  %v862 = vpop.f32.mrf.mxu0
  %863 = vdwg.mxu0
  %v864 = vtanh.pop %v858
  %v865 = vtanh.pop %v861
  %v866 = vpack.c.bf16 %v865, %v864
  %v867 = vld [vmem:[%s11] sm:$0xf]
  %v868 = vld [vmem:[%s11 + $0x4] sm:$0xf]
  %v869 = vld [vmem:[%s11 + $0x8] sm:$0xf]
  %v870 = vld [vmem:[%s11 + $0xc] sm:$0xf]
  %v871 = vld [vmem:[%s11 + $0x10] sm:$0xf]
  %v872 = vld [vmem:[%s11 + $0x14] sm:$0xf]
  %v873 = vld [vmem:[%s11 + $0x18] sm:$0xf]
  %v874 = vld [vmem:[%s11 + $0x1c] sm:$0xf]
  %v875 = vld [vmem:[%s12] sm:$0x1]
  %v877 = vlaneseq
  %v878 = vshrl.u32 %v877, 7
  %v879 = vsub.s32 0, %v878
  %v880 = vrot.slane %v875, %v879
  %v890 = vunpack.c.l.b16 %v867
  %v891 = vunpack.c.l.b16 %v868
  %v892 = vunpack.c.l.b16 %v869
  %v893 = vunpack.c.l.b16 %v870
  %v894 = vunpack.c.l.b16 %v871
  %v895 = vunpack.c.l.b16 %v872
  %v896 = vunpack.c.l.b16 %v873
  %v897 = vunpack.c.l.b16 %v874
  %v898 = vpack.c.b16 %v891, %v890
  %v899 = vpack.c.b16 %v893, %v892
  %v900 = vpack.c.b16 %v895, %v894
  %v901 = vpack.c.b16 %v897, %v896
  %vm906 = vcmask 523264
  %v908 = vsel %vm906, %v866, 0
  %910 = vmatprep.subr.bf16.mxu0 0
  %911 = vmatpush1.bf16.msra.mxu0 0
  %912 = vmatprep.subr.bf16.mxu0 0
  %913 = vmatpush1.bf16.msra.mxu0 0
  %914 = vmatprep.subr.bf16.mxu0 0
  %915 = vmatpush1.bf16.msra.mxu0 0
  %916 = vmatprep.subr.bf16.mxu0 0
  %917 = vmatpush1.bf16.msra.mxu0 0
  %918 = vmatprep.subr.bf16.mxu0 0
  %919 = vmatpush1.bf16.msra.mxu0 %v901
  %920 = vmatprep.subr.bf16.mxu0 0
  %921 = vmatpush1.bf16.msra.mxu0 %v900
  %922 = vmatprep.subr.bf16.mxu0 0
  %923 = vmatpush1.bf16.msra.mxu0 %v899
  %924 = vmatprep.subr.bf16.mxu0 0
  %925 = vmatpush1.bf16.msra.mxu0 %v898
  %926 = vmatprep.subr.bf16.mxu0 0
  %927 = vmatpush2.bf16.msra.mxu0 0
  %928 = vmatprep.subr.bf16.mxu0 0
  %929 = vmatpush2.bf16.msra.mxu0 0
  %930 = vmatprep.subr.bf16.mxu0 0
  %931 = vmatpush2.bf16.msra.mxu0 0
  %932 = vmatprep.subr.bf16.mxu0 0
  %933 = vmatpush2.bf16.msra.mxu0 0
  %934 = vmatprep.subr.bf16.mxu0 0
  %935 = vmatpush2.bf16.msra.mxu0 0
  %936 = vmatprep.subr.bf16.mxu0 0
  %937 = vmatpush2.bf16.msra.mxu0 0
  %938 = vmatprep.subr.bf16.mxu0 0
  %939 = vmatpush2.bf16.msra.mxu0 0
  %940 = vmatprep.subr.bf16.mxu0 0
  %941 = vmatpush2.bf16.msra.mxu0 0
  %942 = vmatprep.mubr.bf16.mxu0 0
  %943 = vmatmul.mubr.bf16.gmra.mxu0 %v908
  %v944 = vpop.f32.mrf.mxu0
  %v945 = vadd.f32 %v880, %v944
  %v946 = vpop.f32.mrf.mxu0
  %v947 = vpop.f32.mrf.mxu0
  %v948 = vadd.f32 %v880, %v947
  %v949 = vpop.f32.mrf.mxu0
  %950 = vdwg.mxu0
  %v951 = vmul.f32 %v945, 1.442695
  %v952 = vpow.pop %v951
  %v953 = vmul.f32 %v948, 1.442695
  %v954 = vpow.pop %v953
  %v955 = vsub.f32 0.0, %v952
  %v956 = vsub.f32 0.0, %v954
  %vm957 = vcmask 130048
  %958 = vst.msk [vmem:[%s17] sm:$0xff] %vm957, %v955
  %959 = vst.msk [vmem:[%s17 + $0x8] sm:$0xff] %vm957, %v956
  // Predicated region
  $region54: #{_lambda_.7} parent=0 // pred_check
    _
  $region55: #{_lambda_.7} parent=0 // pred_check_branch
    %961 = sbr.rel (0) target = $region57
  $region56: #{_lambda_.7} parent=0 // pred_region
    _
  $region57: #{_lambda_.7} parent=0 // pred_fallthru
    _
  // Predicated region
  $region58: #{_lambda_.7} parent=0 // pred_check
    _
  $region59: #{_lambda_.7} parent=0 // pred_check_branch
    %963 = sbr.rel (0) target = $region61
  $region60: #{_lambda_.7} parent=0 // pred_region
    _
  $region61: #{_lambda_.7} parent=0 // pred_fallthru
    _
  // Predicated region
  $region62: #{_lambda_.7} parent=0 // pred_check
    _
  $region63: #{_lambda_.7} parent=0 // pred_check_branch
    %965 = sbr.rel (0) target = $region65
  $region64: #{_lambda_.7} parent=0 // pred_region
    _
  $region65: #{_lambda_.7} parent=0 // pred_fallthru
    _
  // Predicated region
  $region66: #{_lambda_.7} parent=0 // pred_check
    _
  $region67: #{_lambda_.7} parent=0 // pred_check_branch
    %967 = sbr.rel (0) target = $region69
  $region68: #{_lambda_.7} parent=0 // pred_region
    _
  $region69: #{_lambda_.7} parent=0 // pred_fallthru
    _
  // Predicated region
  $region70: #{_lambda_.7} parent=0 // pred_check
    _
  $region71: #{_lambda_.7} parent=0 // pred_check_branch
    %969 = sbr.rel (0) target = $region73
  $region72: #{_lambda_.7} parent=0 // pred_region
    _
  $region73: #{_lambda_.7} parent=0 // pred_fallthru
    _
  // Predicated region
  $region74: #{_lambda_.7} parent=0 // pred_check
    _
  $region75: #{_lambda_.7} parent=0 // pred_check_branch
    %971 = sbr.rel (0) target = $region77
  $region76: #{_lambda_.7} parent=0 // pred_region
    _
  $region77: #{_lambda_.7} parent=0 // pred_fallthru
    _
  // Predicated region
  $region78: #{_lambda_.7} parent=0 // pred_check
    _
  $region79: #{_lambda_.7} parent=0 // pred_check_branch
    %973 = sbr.rel (0) target = $region81
  $region80: #{_lambda_.7} parent=0 // pred_region
    _
  $region81: #{_lambda_.7} parent=0 // pred_fallthru
    _
  // Predicated region
  $region82: #{_lambda_.7} parent=0 // pred_check
    _
  $region83: #{_lambda_.7} parent=0 // pred_check_branch
    %975 = sbr.rel (0) target = $region85
  $region84: #{_lambda_.7} parent=0 // pred_region
    _
  $region85: #{_lambda_.7} parent=0 // pred_fallthru
    _
  // Predicated region
  $region86: #{_lambda_.7} parent=0 // pred_check
    _
  $region87: #{_lambda_.7} parent=0 // pred_check_branch
    %977 = sbr.rel (0) target = $region89
  $region88: #{_lambda_.7} parent=0 // pred_region
    _
  $region89: #{_lambda_.7} parent=0 // pred_fallthru
    _
  // Predicated region
  $region90: #{_lambda_.7} parent=0 // pred_check
    _
  $region91: #{_lambda_.7} parent=0 // pred_check_branch
    %979 = sbr.rel (0) target = $region93
  $region92: #{_lambda_.7} parent=0 // pred_region
    _
  $region93: #{_lambda_.7} parent=0 // pred_fallthru
    _

// kernel: _lambda_.8
$region0: #{_lambda_.8}
  #allocation0 [shape = 'u32[]', space=smem, size = 0x4, offset = 0x4, fixed_abs, tag = 'smem constant byte address 0x4 - core index']
  #allocation1 [shape = 'u32[144,128]{1,0:T(1,128)}', space=vmem, size = 0x12000, scoped, tag = 'internal scratch']
  #allocation2 [shape = 'f32[4,8,4]{2,1,0:T(8,128)}', space=vmem, size = 0x4000, scoped, tag = 'scratch operand']
  %s0 = inlined_call_operand.vmem [shape: bf16[2,8,16], index: 0, kind: input, shape index: {}]
  %s1 = inlined_call_operand.vmem [shape: bf16[2,8,16], index: 1, kind: input, shape index: {}]
  %s2 = inlined_call_operand.vmem [shape: bf16[2,8,32], index: 2, kind: input, shape index: {}]
  %s3 = inlined_call_operand.vmem [shape: f32[2,8,16], index: 3, kind: input, shape index: {}]
  %s4 = inlined_call_operand.vmem [shape: f32[1,16], index: 4, kind: input, shape index: {}]
  %s5 = inlined_call_operand.vmem [shape: bf16[2,8,32], index: 5, kind: output, shape index: {0}]
  %s6 = inlined_call_operand.vmem [shape: f32[2,4,8,4], index: 6, kind: output, shape index: {1}]
  %7 = xla_tuple %s5, %s6
  %s8 = sld [smem:[#allocation0]]
  $region65: #{_lambda_.8} parent=0
    _
  %s10 = ssub.s32 1, %s8
  %s11 = scalar_select 0, %s10, %s8
  loop: start=0, step=1, limit=4
  $region2: #{_lambda_.8} parent=0 // loop_pre_header
    _
  $region3: #{_lambda_.8} parent=0 // loop_header
    %s13 = sphi 0, %s17
    %p14 = scmp.ge.s32.totalorder %s13, 4
    %s20 = sphi 0, %s32
    %s21 = sphi 0, %s28
    %s22 = sphi 0, %s20
    %s23 = sphi 0, %s21
    %s24 = sphi 0, %s22
    %s25 = sphi 0, %s23
    %s37 = sphi 0, %s39
    %s40 = sphi 0, %s37
    %s41 = sphi 0, %s40
    %s57 = sphi 0, %s41
    %s65 = sphi 0, %s67
    %s68 = sphi 0, %s65
    %s69 = sphi 0, %s68
    %s85 = sphi 0, %s69
    %s93 = sphi 0, %s95
    %s96 = sphi 0, %s93
    %s97 = sphi 0, %s96
    %s113 = sphi 0, %s97
    %s121 = sphi 0, %s123
    %s124 = sphi 0, %s121
    %s125 = sphi 0, %s124
    %s141 = sphi 0, %s125
    %s145 = sphi 0, %s145
    %s147 = sphi 0, %s145
    %s148 = sphi 0, %s147
    %s162 = sphi 0, %s148
    %s170 = sphi 0, %s172
    %s173 = sphi 0, %s170
    %s174 = sphi 0, %s173
    %s190 = sphi 0, %s174
    %s196 = sphi 0, %s198
    %s199 = sphi 0, %s196
    %s200 = sphi 0, %s199
    %s216 = sphi 0, %s200
  $region4: #{_lambda_.8} parent=0 // loop_header_branch
    %16 = sbr.rel (%p14) target = $region8
  $region5: #{_lambda_.8} parent=0 // loop_body
    %s18 = ssub.s32 %s13, 1
    %s19 = ssub.s32 %s13, 2
    %s26 = sadd.s32 1, %s21
    %p27 = scmp.ge.s32.totalorder %s26, 1
    %s28 = scalar_select %p27, 0, %s26
    %s29 = sadd.s32 1, %s20
    %s30 = scalar_select %p27, %s29, %s20
    %p31 = scmp.ge.s32.totalorder %s30, 2
    %s32 = scalar_select %p31, 0, %s30
    %s33 = ssub.s32 %s20, %s32
    %s34 = ssub.s32 %s21, %s28
    %s35 = sor.u32 %s33, %s34
    %p36 = scmp.eq.s32.totalorder %s35, 0
    %s38 = sadd.s32 %s37, 1
    %s39 = scalar_select %p36, %s37, %s38
    %p42 = pneg %p36
    %p43 = scmp.eq.s32.totalorder %s13, 1
    %p44 = por %p42, %p43
    %p45 = scmp.ne.s32.totalorder %s37, %s40
    %p46 = scmp.eq.s32.totalorder %s13, 0
    %p47 = por %p45, %p46
    %p48 = scmp.ne.s32.totalorder %s37, %s40
    %p49 = scmp.eq.s32.totalorder %s18, 1
    %p50 = por %p48, %p49
    %p51 = scmp.ne.s32.totalorder %s40, %s41
    %p52 = scmp.eq.s32.totalorder %s18, 0
    %p53 = por %p51, %p52
    %p54 = scmp.ne.s32.totalorder %s40, %s41
    %p55 = scmp.eq.s32.totalorder %s19, 1
    %p56 = por %p54, %p55
    %p58 = scmp.ne.s32.totalorder %s41, %s57
    %p59 = scmp.eq.s32.totalorder %s19, 0
    %p60 = por %p58, %p59
    %s61 = ssub.s32 %s20, %s32
    %s62 = ssub.s32 %s21, %s28
    %s63 = sor.u32 %s61, %s62
    %p64 = scmp.eq.s32.totalorder %s63, 0
    %s66 = sadd.s32 %s65, 1
    %s67 = scalar_select %p64, %s65, %s66
    %p70 = pneg %p64
    %p71 = scmp.eq.s32.totalorder %s13, 1
    %p72 = por %p70, %p71
    %p73 = scmp.ne.s32.totalorder %s65, %s68
    %p74 = scmp.eq.s32.totalorder %s13, 0
    %p75 = por %p73, %p74
    %p76 = scmp.ne.s32.totalorder %s65, %s68
    %p77 = scmp.eq.s32.totalorder %s18, 1
    %p78 = por %p76, %p77
    %p79 = scmp.ne.s32.totalorder %s68, %s69
    %p80 = scmp.eq.s32.totalorder %s18, 0
    %p81 = por %p79, %p80
    %p82 = scmp.ne.s32.totalorder %s68, %s69
    %p83 = scmp.eq.s32.totalorder %s19, 1
    %p84 = por %p82, %p83
    %p86 = scmp.ne.s32.totalorder %s69, %s85
    %p87 = scmp.eq.s32.totalorder %s19, 0
    %p88 = por %p86, %p87
    %s89 = ssub.s32 %s20, %s32
    %s90 = ssub.s32 %s21, %s28
    %s91 = sor.u32 %s89, %s90
    %p92 = scmp.eq.s32.totalorder %s91, 0
    %s94 = sadd.s32 %s93, 1
    %s95 = scalar_select %p92, %s93, %s94
    %p98 = pneg %p92
    %p99 = scmp.eq.s32.totalorder %s13, 1
    %p100 = por %p98, %p99
    %p101 = scmp.ne.s32.totalorder %s93, %s96
    %p102 = scmp.eq.s32.totalorder %s13, 0
    %p103 = por %p101, %p102
    %p104 = scmp.ne.s32.totalorder %s93, %s96
    %p105 = scmp.eq.s32.totalorder %s18, 1
    %p106 = por %p104, %p105
    %p107 = scmp.ne.s32.totalorder %s96, %s97
    %p108 = scmp.eq.s32.totalorder %s18, 0
    %p109 = por %p107, %p108
    %p110 = scmp.ne.s32.totalorder %s96, %s97
    %p111 = scmp.eq.s32.totalorder %s19, 1
    %p112 = por %p110, %p111
    %p114 = scmp.ne.s32.totalorder %s97, %s113
    %p115 = scmp.eq.s32.totalorder %s19, 0
    %p116 = por %p114, %p115
    %s117 = ssub.s32 %s20, %s32
    %s118 = ssub.s32 %s21, %s28
    %s119 = sor.u32 %s117, %s118
    %p120 = scmp.eq.s32.totalorder %s119, 0
    %s122 = sadd.s32 %s121, 1
    %s123 = scalar_select %p120, %s121, %s122
    %p126 = pneg %p120
    %p127 = scmp.eq.s32.totalorder %s13, 1
    %p128 = por %p126, %p127
    %p129 = scmp.ne.s32.totalorder %s121, %s124
    %p130 = scmp.eq.s32.totalorder %s13, 0
    %p131 = por %p129, %p130
    %p132 = scmp.ne.s32.totalorder %s121, %s124
    %p133 = scmp.eq.s32.totalorder %s18, 1
    %p134 = por %p132, %p133
    %p135 = scmp.ne.s32.totalorder %s124, %s125
    %p136 = scmp.eq.s32.totalorder %s18, 0
    %p137 = por %p135, %p136
    %p138 = scmp.ne.s32.totalorder %s124, %s125
    %p139 = scmp.eq.s32.totalorder %s19, 1
    %p140 = por %p138, %p139
    %p142 = scmp.ne.s32.totalorder %s125, %s141
    %p143 = scmp.eq.s32.totalorder %s19, 0
    %p144 = por %p142, %p143
    %s146 = sadd.s32 %s145, 1
    %p149 = scmp.eq.s32.totalorder %s13, 1
    %p150 = scmp.ne.s32.totalorder %s145, %s147
    %p151 = scmp.eq.s32.totalorder %s13, 0
    %p152 = por %p150, %p151
    %p153 = scmp.ne.s32.totalorder %s145, %s147
    %p154 = scmp.eq.s32.totalorder %s18, 1
    %p155 = por %p153, %p154
    %p156 = scmp.ne.s32.totalorder %s147, %s148
    %p157 = scmp.eq.s32.totalorder %s18, 0
    %p158 = por %p156, %p157
    %p159 = scmp.ne.s32.totalorder %s147, %s148
    %p160 = scmp.eq.s32.totalorder %s19, 1
    %p161 = por %p159, %p160
    %p163 = scmp.ne.s32.totalorder %s148, %s162
    %p164 = scmp.eq.s32.totalorder %s19, 0
    %p165 = por %p163, %p164
    %s166 = ssub.s32 %s20, %s32
    %s167 = ssub.s32 %s21, %s28
    %s168 = sor.u32 %s166, %s167
    %p169 = scmp.eq.s32.totalorder %s168, 0
    %s171 = sadd.s32 %s170, 1
    %s172 = scalar_select %p169, %s170, %s171
    %p175 = pneg %p169
    %p176 = scmp.eq.s32.totalorder %s13, 1
    %p177 = por %p175, %p176
    %p178 = scmp.ne.s32.totalorder %s170, %s173
    %p179 = scmp.eq.s32.totalorder %s13, 0
    %p180 = por %p178, %p179
    %p181 = scmp.ne.s32.totalorder %s170, %s173
    %p182 = scmp.eq.s32.totalorder %s18, 1
    %p183 = por %p181, %p182
    %p184 = scmp.ne.s32.totalorder %s173, %s174
    %p185 = scmp.eq.s32.totalorder %s18, 0
    %p186 = por %p184, %p185
    %p187 = scmp.ne.s32.totalorder %s173, %s174
    %p188 = scmp.eq.s32.totalorder %s19, 1
    %p189 = por %p187, %p188
    %p191 = scmp.ne.s32.totalorder %s174, %s190
    %p192 = scmp.eq.s32.totalorder %s19, 0
    %p193 = por %p191, %p192
    %s194 = ssub.s32 %s20, %s32
    %p195 = scmp.eq.s32.totalorder %s194, 0
    %s197 = sadd.s32 %s196, 1
    %s198 = scalar_select %p195, %s196, %s197
    %p201 = pneg %p195
    %p202 = scmp.eq.s32.totalorder %s13, 1
    %p203 = por %p201, %p202
    %p204 = scmp.ne.s32.totalorder %s196, %s199
    %p205 = scmp.eq.s32.totalorder %s13, 0
    %p206 = por %p204, %p205
    %p207 = scmp.ne.s32.totalorder %s196, %s199
    %p208 = scmp.eq.s32.totalorder %s18, 1
    %p209 = por %p207, %p208
    %p210 = scmp.ne.s32.totalorder %s199, %s200
    %p211 = scmp.eq.s32.totalorder %s18, 0
    %p212 = por %p210, %p211
    %p213 = scmp.ne.s32.totalorder %s199, %s200
    %p214 = scmp.eq.s32.totalorder %s19, 1
    %p215 = por %p213, %p214
    %p217 = scmp.ne.s32.totalorder %s200, %s216
    %p218 = scmp.eq.s32.totalorder %s19, 0
    %p219 = por %p217, %p218
    %p220 = scmp.le.s32.totalorder 1, %s13
    %p221 = scmp.lt.s32.totalorder %s13, 3
    %p222 = pnand %p220, %p221
    %p223 = pneg %p222
    // Predicated region
    $region9: #{_lambda_.8} parent=5 // pred_check
      _
    $region10: #{_lambda_.8} parent=5 // pred_check_branch
      %225 = sbr.rel (%p222) target = $region12
    $region11: #{_lambda_.8} parent=5 // pred_region
      %s226 = ssub.s32 %s13, 1
      // Predicated region
      $region13: #{_lambda_.8} parent=11 // pred_check
        %p227 = pneg %p158
      $region14: #{_lambda_.8} parent=11 // pred_check_branch
        %229 = sbr.rel (%p227) target = $region16
      $region15: #{_lambda_.8} parent=11 // pred_region
        _
      $region16: #{_lambda_.8} parent=11 // pred_fallthru
        _
    $region12: #{_lambda_.8} parent=5 // pred_fallthru
      _
    %p230 = scmp.lt.s32.totalorder %s13, 2
    // Predicated region
    $region17: #{_lambda_.8} parent=5 // pred_check
      %p231 = pneg %p230
    $region18: #{_lambda_.8} parent=5 // pred_check_branch
      %233 = sbr.rel (%p231) target = $region20
    $region19: #{_lambda_.8} parent=5 // pred_region
      // Predicated region
      $region21: #{_lambda_.8} parent=19 // pred_check
        %p234 = pneg %p47
      $region22: #{_lambda_.8} parent=19 // pred_check_branch
        %236 = sbr.rel (%p234) target = $region24
      $region23: #{_lambda_.8} parent=19 // pred_region
        %p237 = scmp.lt.s32.totalorder %s20, 1
        %s238 = scalar_select %p237, %s20, 1
        %p239 = scmp.lt.s32.totalorder %s21, 0
        %s240 = scalar_select %p239, %s21, 0
        %s241 = sadd.s32 %s240, %s238
        %s242 = smul.addr %s241, 4
        %s243 = scalar_lea.vmem %s0, %s242
      $region24: #{_lambda_.8} parent=19 // pred_fallthru
        _
      // Predicated region
      $region25: #{_lambda_.8} parent=19 // pred_check
        %p244 = pneg %p75
      $region26: #{_lambda_.8} parent=19 // pred_check_branch
        %246 = sbr.rel (%p244) target = $region28
      $region27: #{_lambda_.8} parent=19 // pred_region
        %p247 = scmp.lt.s32.totalorder %s20, 1
        %s248 = scalar_select %p247, %s20, 1
        %p249 = scmp.lt.s32.totalorder %s21, 0
        %s250 = scalar_select %p249, %s21, 0
        %s251 = sadd.s32 %s250, %s248
        %s252 = smul.addr %s251, 4
        %s253 = scalar_lea.vmem %s1, %s252
      $region28: #{_lambda_.8} parent=19 // pred_fallthru
        _
      // Predicated region
      $region29: #{_lambda_.8} parent=19 // pred_check
        %p254 = pneg %p103
      $region30: #{_lambda_.8} parent=19 // pred_check_branch
        %256 = sbr.rel (%p254) target = $region32
      $region31: #{_lambda_.8} parent=19 // pred_region
        %p257 = scmp.lt.s32.totalorder %s20, 1
        %s258 = scalar_select %p257, %s20, 1
        %p259 = scmp.lt.s32.totalorder %s21, 0
        %s260 = scalar_select %p259, %s21, 0
        %s261 = sadd.s32 %s260, %s258
        %s262 = smul.addr %s261, 4
        %s263 = scalar_lea.vmem %s2, %s262
      $region32: #{_lambda_.8} parent=19 // pred_fallthru
        _
      // Predicated region
      $region33: #{_lambda_.8} parent=19 // pred_check
        %p264 = pneg %p131
      $region34: #{_lambda_.8} parent=19 // pred_check_branch
        %266 = sbr.rel (%p264) target = $region36
      $region35: #{_lambda_.8} parent=19 // pred_region
        %p267 = scmp.lt.s32.totalorder %s20, 1
        %s268 = scalar_select %p267, %s20, 1
        %p269 = scmp.lt.s32.totalorder %s21, 0
        %s270 = scalar_select %p269, %s21, 0
        %s271 = sadd.s32 %s270, %s268
        %s272 = smul.addr %s271, 8
        %s273 = scalar_lea.vmem %s3, %s272
      $region36: #{_lambda_.8} parent=19 // pred_fallthru
        _
    $region20: #{_lambda_.8} parent=5 // pred_fallthru
      _
    %p274 = scmp.le.s32.totalorder 1, %s13
    %p275 = scmp.lt.s32.totalorder %s13, 3
    %p276 = pnand %p274, %p275
    %p277 = pneg %p276
    // Predicated region
    $region37: #{_lambda_.8} parent=5 // pred_check
      _
    $region38: #{_lambda_.8} parent=5 // pred_check_branch
      %279 = sbr.rel (%p276) target = $region40
    $region39: #{_lambda_.8} parent=5 // pred_region
      %s280 = ssub.s32 %s13, 1
      %p281 = scmp.lt.s32.totalorder %s22, 1
      %s282 = scalar_select %p281, %s22, 1
      %p283 = scmp.lt.s32.totalorder %s23, 0
      %s284 = scalar_select %p283, %s23, 0
      %s285 = sadd.s32 %s284, %s282
      %s286 = smul.addr %s285, 4
      %s287 = scalar_lea.vmem %s0, %s286
      %p288 = pneg %p53
      %p289 = pneg %p50
      %p290 = scmp.lt.s32.totalorder %s22, 1
      %s291 = scalar_select %p290, %s22, 1
      %p292 = scmp.lt.s32.totalorder %s23, 0
      %s293 = scalar_select %p292, %s23, 0
      %s294 = sadd.s32 %s293, %s291
      %s295 = smul.addr %s294, 4
      %s296 = scalar_lea.vmem %s1, %s295
      %p297 = pneg %p81
      %p298 = pneg %p78
      %p299 = scmp.lt.s32.totalorder %s22, 1
      %s300 = scalar_select %p299, %s22, 1
      %p301 = scmp.lt.s32.totalorder %s23, 0
      %s302 = scalar_select %p301, %s23, 0
      %s303 = sadd.s32 %s302, %s300
      %s304 = smul.addr %s303, 4
      %s305 = scalar_lea.vmem %s2, %s304
      %p306 = pneg %p109
      %p307 = pneg %p106
      %p308 = scmp.lt.s32.totalorder %s22, 1
      %s309 = scalar_select %p308, %s22, 1
      %p310 = scmp.lt.s32.totalorder %s23, 0
      %s311 = scalar_select %p310, %s23, 0
      %s312 = sadd.s32 %s311, %s309
      %s313 = smul.addr %s312, 8
      %s314 = scalar_lea.vmem %s3, %s313
      %p315 = pneg %p137
      %p316 = pneg %p134
      %p317 = pneg %p158
      %p318 = pneg %p155
      %p319 = pneg %p186
      %p320 = pneg %p183
      %p321 = scmp.lt.s32.totalorder %s22, 1
      %s322 = scalar_select %p321, %s22, 1
      %p323 = scmp.lt.s32.totalorder %s23, 0
      %s324 = scalar_select %p323, %s23, 0
      %s325 = sadd.s32 %s324, %s322
      %s326 = smul.addr %s325, 4
      %s327 = scalar_lea.vmem %s5, %s326
      %p328 = pneg %p212
      %p329 = pneg %p209
      %p330 = scmp.lt.s32.totalorder %s22, 1
      %s331 = scalar_select %p330, %s22, 1
      %s332 = smul.addr %s331, 4
      %s333 = smul.addr %s332, 8
      %s334 = scalar_lea.vmem %s6, %s333
      %p335 = scmp.lt.s32.totalorder %s22, 1
      %s336 = scalar_select %p335, %s22, 1
      %p337 = scmp.lt.s32.totalorder %s23, 0
      %s338 = scalar_select %p337, %s23, 0
      %s339 = sadd.s32 %s338, %s336
      %s340 = smul.addr %s339, 4
      %s341 = scalar_lea.vmem %s0, %s340
      %p342 = scmp.lt.s32.totalorder %s22, 1
      %s343 = scalar_select %p342, %s22, 1
      %p344 = scmp.lt.s32.totalorder %s23, 0
      %s345 = scalar_select %p344, %s23, 0
      %s346 = sadd.s32 %s345, %s343
      %s347 = smul.addr %s346, 4
      %s348 = scalar_lea.vmem %s1, %s347
      %p349 = scmp.lt.s32.totalorder %s22, 1
      %s350 = scalar_select %p349, %s22, 1
      %p351 = scmp.lt.s32.totalorder %s23, 0
      %s352 = scalar_select %p351, %s23, 0
      %s353 = sadd.s32 %s352, %s350
      %s354 = smul.addr %s353, 4
      %s355 = scalar_lea.vmem %s2, %s354
      %p356 = scmp.lt.s32.totalorder %s22, 1
      %s357 = scalar_select %p356, %s22, 1
      %p358 = scmp.lt.s32.totalorder %s23, 0
      %s359 = scalar_select %p358, %s23, 0
      %s360 = sadd.s32 %s359, %s357
      %s361 = smul.addr %s360, 8
      %s362 = scalar_lea.vmem %s3, %s361
      %p363 = scmp.lt.s32.totalorder %s22, 1
      %s364 = scalar_select %p363, %s22, 1
      %p365 = scmp.lt.s32.totalorder %s23, 0
      %s366 = scalar_select %p365, %s23, 0
      %s367 = sadd.s32 %s366, %s364
      %s368 = smul.addr %s367, 4
      %s369 = scalar_lea.vmem %s5, %s368
      %p370 = scmp.lt.s32.totalorder %s22, 1
      %s371 = scalar_select %p370, %s22, 1
      %s372 = smul.addr %s371, 4
      %s373 = smul.addr %s372, 8
      %s374 = scalar_lea.vmem %s6, %s373
      %p376 = scmp.eq.s32.totalorder %s23, 0
      // Predicated region
      $region41: #{_lambda_.8} parent=39 // pred_check
        %p377 = pneg %p376
      $region42: #{_lambda_.8} parent=39 // pred_check_branch
        %379 = sbr.rel (%p377) target = $region44
      $region43: #{_lambda_.8} parent=39 // pred_region
        %vm380 = vcmask 31744
        %381 = vst.msk [vmem:[#allocation2] sm:$0xff] %vm380, 0.0
        %382 = vst.msk [vmem:[#allocation2 + $0x8] sm:$0xff] %vm380, 0.0
        %383 = vst.msk [vmem:[#allocation2 + $0x10] sm:$0xff] %vm380, 0.0
        %384 = vst.msk [vmem:[#allocation2 + $0x18] sm:$0xff] %vm380, 0.0
      $region44: #{_lambda_.8} parent=39 // pred_fallthru
        _
      %v385 = vld [vmem:[%s341] sm:$0xf]
      %v386 = vunpack.c.l.bf16 %v385
      %v387 = vld [vmem:[%s348] sm:$0xf]
      %v388 = vunpack.c.l.bf16 %v387
      %v389 = vld [vmem:[%s355] sm:$0xf]
      %v390 = vld [vmem:[%s362] sm:$0xff]
      %v391 = vld [vmem:[%s4] sm:$0x1]
      %v392 = vlaneseq
      %v393 = vshrl.u32 %v392, 7
      %v394 = vlaneseq
      %v395 = vand.u32 %v394, 127
      %vm396 = vcmp.le.s32.totalorder %v395, %v393
      %v397 = vsel %vm396, 1, 0
      %v398 = vcvt.s32.f32 %v397
      %vm399 = vcmp.lt.s32.totalorder %v395, %v393
      %vm400 = vcmask 64512
      %v402 = vsel %vm400, %v398, 0
      %404 = vmatprep.subr.mxu0 0.0
      %405 = vmatpush1.msra.mxu0 0.0
      %406 = vmatprep.subr.mxu0 0.0
      %407 = vmatpush1.msra.mxu0 0.0
      %408 = vmatprep.subr.mxu0 0.0
      %409 = vmatpush1.msra.mxu0 0.0
      %410 = vmatprep.subr.mxu0 0.0
      %411 = vmatpush1.msra.mxu0 0.0
      %412 = vmatprep.subr.mxu0 0.0
      %413 = vmatpush1.msra.mxu0 0.0
      %414 = vmatprep.subr.mxu0 0.0
      %415 = vmatpush1.msra.mxu0 0.0
      %416 = vmatprep.subr.mxu0 0.0
      %417 = vmatpush1.msra.mxu0 0.0
      %418 = vmatprep.subr.mxu0 0.0
      %419 = vmatpush1.msra.mxu0 0.0
      %420 = vmatprep.subr.mxu0 0.0
      %421 = vmatpush1.msra.mxu0 0.0
      %422 = vmatprep.subr.mxu0 0.0
      %423 = vmatpush1.msra.mxu0 0.0
      %424 = vmatprep.subr.mxu0 0.0
      %425 = vmatpush1.msra.mxu0 0.0
      %426 = vmatprep.subr.mxu0 0.0
      %427 = vmatpush1.msra.mxu0 0.0
      %428 = vmatprep.subr.mxu0 0.0
      %429 = vmatpush1.msra.mxu0 0.0
      %430 = vmatprep.subr.mxu0 0.0
      %431 = vmatpush1.msra.mxu0 0.0
      %432 = vmatprep.subr.mxu0 0.0
      %433 = vmatpush1.msra.mxu0 0.0
      %434 = vmatprep.subr.mxu0 0.0
      %435 = vmatpush1.msra.mxu0 %v390
      %436 = vmatprep.subr.mxu0 0.0
      %437 = vmatpush2.msra.mxu0 0.0
      %438 = vmatprep.subr.mxu0 0.0
      %439 = vmatpush2.msra.mxu0 0.0
      %440 = vmatprep.subr.mxu0 0.0
      %441 = vmatpush2.msra.mxu0 0.0
      %442 = vmatprep.subr.mxu0 0.0
      %443 = vmatpush2.msra.mxu0 0.0
      %444 = vmatprep.subr.mxu0 0.0
      %445 = vmatpush2.msra.mxu0 0.0
      %446 = vmatprep.subr.mxu0 0.0
      %447 = vmatpush2.msra.mxu0 0.0
      %448 = vmatprep.subr.mxu0 0.0
      %449 = vmatpush2.msra.mxu0 0.0
      %450 = vmatprep.subr.mxu0 0.0
      %451 = vmatpush2.msra.mxu0 0.0
      %452 = vmatprep.subr.mxu0 0.0
      %453 = vmatpush2.msra.mxu0 0.0
      %454 = vmatprep.subr.mxu0 0.0
      %455 = vmatpush2.msra.mxu0 0.0
      %456 = vmatprep.subr.mxu0 0.0
      %457 = vmatpush2.msra.mxu0 0.0
      %458 = vmatprep.subr.mxu0 0.0
      %459 = vmatpush2.msra.mxu0 0.0
      %460 = vmatprep.subr.mxu0 0.0
      %461 = vmatpush2.msra.mxu0 0.0
      %462 = vmatprep.subr.mxu0 0.0
      %463 = vmatpush2.msra.mxu0 0.0
      %464 = vmatprep.subr.mxu0 0.0
      %465 = vmatpush2.msra.mxu0 0.0
      %466 = vmatprep.subr.mxu0 0.0
      %467 = vmatpush2.msra.mxu0 0.0
      %468 = vmatprep.mubr.f32.mxu0 0.0
      %469 = vmatmul.mubr.f32.gmra.mxu0 %v402
      %v470 = vpop.f32.mrf.mxu0
      %v471 = vadd.f32 0.0, %v470
      %v472 = vpop.f32.mrf.mxu0
      %473 = vdwg.mxu0
      %v474 = vsub.f32 %v471, %v390
      %vm475 = vcmask 130048
      %v476 = vsel %vm475, %v390, 0.0
      %v477 = vrot.slane %v476, 4
      %v478 = vadd.f32 %v476, %v477
      %v479 = vrot.slane %v478, 2
      %v480 = vadd.f32 %v478, %v479
      %v481 = vrot.slane %v480, 1
      %v482 = vadd.f32 %v480, %v481
      %v483 = vmul.f32 %v482, 0.5
      %v484 = vmul.f32 %v483, 1.442695
      %v485 = vpow.pop %v484
      %v486 = vsub.f32 %v474, %v483
      %v487 = vmul.f32 %v486, 1.442695
      %v488 = vpow.pop %v487
      %v489 = vmul.f32 %v386, %v488
      %v490 = vsub.f32 %v483, %v471
      %v491 = vmul.f32 %v490, 1.442695
      %v492 = vpow.pop %v491
      %v493 = vmul.f32 %v388, %v492
      %v494 = vmul.f32 %v489, %v485
      %v495 = vmul.f32 %v493, %v485
      %v496 = vmul.f32 %v485, %v485
      %v498 = vlaneseq
      %v499 = vshrl.u32 %v498, 7
      %v500 = vsub.s32 0, %v499
      %v501 = vrot.slane %v391, %v500
      %v503 = vmul.f32 %v386, %v501
      %v504 = vmul.f32 %v503, %v388
      %v505 = vpack.c.bf16 %v489, %v489
      %v506 = vpack.c.bf16 %v493, %v493
      %v507 = vpack.c.bf16 %v494, %v494
      %v508 = vpack.c.bf16 %v495, %v495
      %vm509 = vcmask 31744
      %v511 = vsel %vm509, %v505, 0
      %v514 = vsel %vm509, %v506, 0
      %516 = vmatprep.subr.bf16.mxu0 0
      %517 = vmatpush1.bf16.xpose.msra.mxu0 0
      %518 = vmatprep.subr.bf16.mxu0 0
      %519 = vmatpush1.bf16.xpose.msra.mxu0 0
      %520 = vmatprep.subr.bf16.mxu0 0
      %521 = vmatpush1.bf16.xpose.msra.mxu0 0
      %522 = vmatprep.subr.bf16.mxu0 0
      %523 = vmatpush1.bf16.xpose.msra.mxu0 0
      %524 = vmatprep.subr.bf16.mxu0 0
      %525 = vmatpush1.bf16.xpose.msra.mxu0 0
      %526 = vmatprep.subr.bf16.mxu0 0
      %527 = vmatpush1.bf16.xpose.msra.mxu0 0
      %528 = vmatprep.subr.bf16.mxu0 0
      %529 = vmatpush1.bf16.xpose.msra.mxu0 0
      %530 = vmatprep.subr.bf16.mxu0 0
      %531 = vmatpush1.bf16.xpose.msra.mxu0 %v514
      %532 = vmatprep.subr.bf16.mxu0 0
      %533 = vmatpush2.bf16.xpose.msra.mxu0 0
      %534 = vmatprep.subr.bf16.mxu0 0
      %535 = vmatpush2.bf16.xpose.msra.mxu0 0
      %536 = vmatprep.subr.bf16.mxu0 0
      %537 = vmatpush2.bf16.xpose.msra.mxu0 0
      %538 = vmatprep.subr.bf16.mxu0 0
      %539 = vmatpush2.bf16.xpose.msra.mxu0 0
      %540 = vmatprep.subr.bf16.mxu0 0
      %541 = vmatpush2.bf16.xpose.msra.mxu0 0
      %542 = vmatprep.subr.bf16.mxu0 0
      %543 = vmatpush2.bf16.xpose.msra.mxu0 0
      %544 = vmatprep.subr.bf16.mxu0 0
      %545 = vmatpush2.bf16.xpose.msra.mxu0 0
      %546 = vmatprep.subr.bf16.mxu0 0
      %547 = vmatpush2.bf16.xpose.msra.mxu0 0
      %548 = vmatprep.mubr.bf16.mxu0 0
      %549 = vmatmul.mubr.bf16.gmra.mxu0 %v511
      %v550 = vpop.f32.mrf.mxu0
      %v551 = vadd.f32 0.0, %v550
      %v552 = vpop.f32.mrf.mxu0
      %v553 = vpop.f32.mrf.mxu0
      %v554 = vpop.f32.mrf.mxu0
      %555 = vdwg.mxu0
      %v556 = vsel %vm399, %v551, 0.0
      %v557 = vpack.c.bf16 %v556, %v556
      %v559 = vsel %vm400, %v557, 0
      %vm561 = vcmask 1043456
      %v563 = vsel %vm561, %v389, 0
      %565 = vmatprep.subr.bf16.mxu0 0
      %566 = vmatpush1.bf16.msra.mxu0 0
      %567 = vmatprep.subr.bf16.mxu0 0
      %568 = vmatpush1.bf16.msra.mxu0 0
      %569 = vmatprep.subr.bf16.mxu0 0
      %570 = vmatpush1.bf16.msra.mxu0 0
      %571 = vmatprep.subr.bf16.mxu0 0
      %572 = vmatpush1.bf16.msra.mxu0 0
      %573 = vmatprep.subr.bf16.mxu0 0
      %574 = vmatpush1.bf16.msra.mxu0 0
      %575 = vmatprep.subr.bf16.mxu0 0
      %576 = vmatpush1.bf16.msra.mxu0 0
      %577 = vmatprep.subr.bf16.mxu0 0
      %578 = vmatpush1.bf16.msra.mxu0 0
      %579 = vmatprep.subr.bf16.mxu0 0
      %580 = vmatpush1.bf16.msra.mxu0 %v563
      %581 = vmatprep.subr.bf16.mxu0 0
      %582 = vmatpush2.bf16.msra.mxu0 0
      %583 = vmatprep.subr.bf16.mxu0 0
      %584 = vmatpush2.bf16.msra.mxu0 0
      %585 = vmatprep.subr.bf16.mxu0 0
      %586 = vmatpush2.bf16.msra.mxu0 0
      %587 = vmatprep.subr.bf16.mxu0 0
      %588 = vmatpush2.bf16.msra.mxu0 0
      %589 = vmatprep.subr.bf16.mxu0 0
      %590 = vmatpush2.bf16.msra.mxu0 0
      %591 = vmatprep.subr.bf16.mxu0 0
      %592 = vmatpush2.bf16.msra.mxu0 0
      %593 = vmatprep.subr.bf16.mxu0 0
      %594 = vmatpush2.bf16.msra.mxu0 0
      %595 = vmatprep.subr.bf16.mxu0 0
      %596 = vmatpush2.bf16.msra.mxu0 0
      %597 = vmatprep.mubr.bf16.mxu0 0
      %598 = vmatmul.mubr.bf16.gmra.mxu0 %v559
      %v599 = vpop.f32.mrf.mxu0
      %v600 = vadd.f32 0.0, %v599
      %v601 = vpop.f32.mrf.mxu0
      %v602 = vpop.f32.mrf.mxu0
      %v603 = vpop.f32.mrf.mxu0
      %604 = vdwg.mxu0
      %v605 = vsel %vm509, %v504, 0.0
      %606 = vadd.xlane.f32.xlu0 %v605
      %v607 = vpop.xlane.xlu0 %606
      %v608 = vld [vmem:[#allocation2] sm:$0xff]
      %v609 = vpack.c.bf16 %v608, %v608
      %v611 = vsel %vm509, %v507, 0
      %v614 = vsel %vm509, %v609, 0
      %616 = vmatprep.subr.bf16.mxu0 0
      %617 = vmatpush1.bf16.xpose.msra.mxu0 0
      %618 = vmatprep.subr.bf16.mxu0 0
      %619 = vmatpush1.bf16.xpose.msra.mxu0 0
      %620 = vmatprep.subr.bf16.mxu0 0
      %621 = vmatpush1.bf16.xpose.msra.mxu0 0
      %622 = vmatprep.subr.bf16.mxu0 0
      %623 = vmatpush1.bf16.xpose.msra.mxu0 0
      %624 = vmatprep.subr.bf16.mxu0 0
      %625 = vmatpush1.bf16.xpose.msra.mxu0 0
      %626 = vmatprep.subr.bf16.mxu0 0
      %627 = vmatpush1.bf16.xpose.msra.mxu0 0
      %628 = vmatprep.subr.bf16.mxu0 0
      %629 = vmatpush1.bf16.xpose.msra.mxu0 0
      %630 = vmatprep.subr.bf16.mxu0 0
      %631 = vmatpush1.bf16.xpose.msra.mxu0 %v614
      %632 = vmatprep.subr.bf16.mxu0 0
      %633 = vmatpush2.bf16.xpose.msra.mxu0 0
      %634 = vmatprep.subr.bf16.mxu0 0
      %635 = vmatpush2.bf16.xpose.msra.mxu0 0
      %636 = vmatprep.subr.bf16.mxu0 0
      %637 = vmatpush2.bf16.xpose.msra.mxu0 0
      %638 = vmatprep.subr.bf16.mxu0 0
      %639 = vmatpush2.bf16.xpose.msra.mxu0 0
      %640 = vmatprep.subr.bf16.mxu0 0
      %641 = vmatpush2.bf16.xpose.msra.mxu0 0
      %642 = vmatprep.subr.bf16.mxu0 0
      %643 = vmatpush2.bf16.xpose.msra.mxu0 0
      %644 = vmatprep.subr.bf16.mxu0 0
      %645 = vmatpush2.bf16.xpose.msra.mxu0 0
      %646 = vmatprep.subr.bf16.mxu0 0
      %647 = vmatpush2.bf16.xpose.msra.mxu0 0
      %648 = vmatprep.mubr.bf16.mxu0 0
      %649 = vmatmul.mubr.bf16.gmra.mxu0 %v611
      %v650 = vpop.f32.mrf.mxu0
      %v651 = vadd.f32 %v600, %v650
      %v652 = vpop.f32.mrf.mxu0
      %v653 = vpop.f32.mrf.mxu0
      %v654 = vpop.f32.mrf.mxu0
      %655 = vdwg.mxu0
      %v656 = vunpack.c.l.bf16 %v389
      %v657 = vmul.f32 %v607, %v656
      %v658 = vadd.f32 %v651, %v657
      %v659 = vpack.c.bf16 %v658, %v658
      %vm660 = vcmask 60416
      %661 = vst.msk [vmem:[%s369] sm:$0xf] %vm660, %v659
      %662 = vxpose.xlu0.c.b16.start [1/8] %v389, 128
      %663 = vxpose.xlu0.c.b16.cont [2/8] 0, 128
      %664 = vxpose.xlu0.c.b16.cont [3/8] 0, 128
      %665 = vxpose.xlu0.c.b16.cont [4/8] 0, 128
      %666 = vxpose.xlu0.c.b16.cont [5/8] 0, 128
      %667 = vxpose.xlu0.c.b16.cont [6/8] 0, 128
      %668 = vxpose.xlu0.c.b16.cont [7/8] 0, 128
      %669 = vxpose.xlu0.c.b16.end [8/8] 0, 128
      %v670 = vpop.trf.xlu0
      %v671 = vpop.trf.xlu0
      %v672 = vpop.trf.xlu0
      %v673 = vpop.trf.xlu0
      %v674 = vpop.trf.xlu0
      %v675 = vpop.trf.xlu0
      %v676 = vpop.trf.xlu0
      %v677 = vpop.trf.xlu0
      %v679 = vsel %vm400, %v670, 0
      %v682 = vsel %vm561, %v508, 0
      %684 = vmatprep.subr.bf16.mxu0 0
      %685 = vmatpush1.bf16.msra.mxu0 0
      %686 = vmatprep.subr.bf16.mxu0 0
      %687 = vmatpush1.bf16.msra.mxu0 0
      %688 = vmatprep.subr.bf16.mxu0 0
      %689 = vmatpush1.bf16.msra.mxu0 0
      %690 = vmatprep.subr.bf16.mxu0 0
      %691 = vmatpush1.bf16.msra.mxu0 0
      %692 = vmatprep.subr.bf16.mxu0 0
      %693 = vmatpush1.bf16.msra.mxu0 0
      %694 = vmatprep.subr.bf16.mxu0 0
      %695 = vmatpush1.bf16.msra.mxu0 0
      %696 = vmatprep.subr.bf16.mxu0 0
      %697 = vmatpush1.bf16.msra.mxu0 0
      %698 = vmatprep.subr.bf16.mxu0 0
      %699 = vmatpush1.bf16.msra.mxu0 %v682
      %700 = vmatprep.subr.bf16.mxu0 0
      %701 = vmatpush2.bf16.msra.mxu0 0
      %702 = vmatprep.subr.bf16.mxu0 0
      %703 = vmatpush2.bf16.msra.mxu0 0
      %704 = vmatprep.subr.bf16.mxu0 0
      %705 = vmatpush2.bf16.msra.mxu0 0
      %706 = vmatprep.subr.bf16.mxu0 0
      %707 = vmatpush2.bf16.msra.mxu0 0
      %708 = vmatprep.subr.bf16.mxu0 0
      %709 = vmatpush2.bf16.msra.mxu0 0
      %710 = vmatprep.subr.bf16.mxu0 0
      %711 = vmatpush2.bf16.msra.mxu0 0
      %712 = vmatprep.subr.bf16.mxu0 0
      %713 = vmatpush2.bf16.msra.mxu0 0
      %714 = vmatprep.subr.bf16.mxu0 0
      %715 = vmatpush2.bf16.msra.mxu0 0
      %716 = vmatprep.mubr.bf16.mxu0 0
      %717 = vmatmul.mubr.bf16.gmra.mxu0 %v679
      %v718 = vpop.f32.mrf.mxu0
      %v719 = vadd.f32 0.0, %v718
      %v720 = vpop.f32.mrf.mxu0
      %v721 = vpop.f32.mrf.mxu0
      %v722 = vpop.f32.mrf.mxu0
      %723 = vdwg.mxu0
      %v724 = vmul.f32 %v496, %v608
      %v725 = vadd.f32 %v724, %v719
      %726 = vst.msk [vmem:[#allocation2] sm:$0xff] %vm509, %v725
      %728 = vrot.lane.b32.xlu0 %v505, 124
      %v729 = vpop.permute.xlu0 %728
      %731 = vrot.lane.b32.xlu0 %v506, 124
      %v732 = vpop.permute.xlu0 %731
      %v734 = vsel %vm509, %v729, 0
      %v737 = vsel %vm509, %v732, 0
      %739 = vmatprep.subr.bf16.mxu0 0
      %740 = vmatpush1.bf16.xpose.msra.mxu0 0
      %741 = vmatprep.subr.bf16.mxu0 0
      %742 = vmatpush1.bf16.xpose.msra.mxu0 0
      %743 = vmatprep.subr.bf16.mxu0 0
      %744 = vmatpush1.bf16.xpose.msra.mxu0 0
      %745 = vmatprep.subr.bf16.mxu0 0
      %746 = vmatpush1.bf16.xpose.msra.mxu0 0
      %747 = vmatprep.subr.bf16.mxu0 0
      %748 = vmatpush1.bf16.xpose.msra.mxu0 0
      %749 = vmatprep.subr.bf16.mxu0 0
      %750 = vmatpush1.bf16.xpose.msra.mxu0 0
      %751 = vmatprep.subr.bf16.mxu0 0
      %752 = vmatpush1.bf16.xpose.msra.mxu0 0
      %753 = vmatprep.subr.bf16.mxu0 0
      %754 = vmatpush1.bf16.xpose.msra.mxu0 %v737
      %755 = vmatprep.subr.bf16.mxu0 0
      %756 = vmatpush2.bf16.xpose.msra.mxu0 0
      %757 = vmatprep.subr.bf16.mxu0 0
      %758 = vmatpush2.bf16.xpose.msra.mxu0 0
      %759 = vmatprep.subr.bf16.mxu0 0
      %760 = vmatpush2.bf16.xpose.msra.mxu0 0
      %761 = vmatprep.subr.bf16.mxu0 0
      %762 = vmatpush2.bf16.xpose.msra.mxu0 0
      %763 = vmatprep.subr.bf16.mxu0 0
      %764 = vmatpush2.bf16.xpose.msra.mxu0 0
      %765 = vmatprep.subr.bf16.mxu0 0
      %766 = vmatpush2.bf16.xpose.msra.mxu0 0
      %767 = vmatprep.subr.bf16.mxu0 0
      %768 = vmatpush2.bf16.xpose.msra.mxu0 0
      %769 = vmatprep.subr.bf16.mxu0 0
      %770 = vmatpush2.bf16.xpose.msra.mxu0 0
      %771 = vmatprep.mubr.bf16.mxu0 0
      %772 = vmatmul.mubr.bf16.gmra.mxu0 %v734
      %v773 = vpop.f32.mrf.mxu0
      %v774 = vadd.f32 0.0, %v773
      %v775 = vpop.f32.mrf.mxu0
      %v776 = vpop.f32.mrf.mxu0
      %v777 = vpop.f32.mrf.mxu0
      %778 = vdwg.mxu0
      %v779 = vsel %vm399, %v774, 0.0
      %v780 = vpack.c.bf16 %v779, %v779
      %v782 = vunpack.c.l.b16 %v389
      %v783 = vpack.c.b16 %v782, %v782
      %784 = vrot.lane.b32.xlu0 %v783, 120
      %v785 = vpop.permute.xlu0 %784
      %v787 = vsel %vm400, %v780, 0
      %v790 = vsel %vm561, %v785, 0
      %792 = vmatprep.subr.bf16.mxu0 0
      %793 = vmatpush1.bf16.msra.mxu0 0
      %794 = vmatprep.subr.bf16.mxu0 0
      %795 = vmatpush1.bf16.msra.mxu0 0
      %796 = vmatprep.subr.bf16.mxu0 0
      %797 = vmatpush1.bf16.msra.mxu0 0
      %798 = vmatprep.subr.bf16.mxu0 0
      %799 = vmatpush1.bf16.msra.mxu0 0
      %800 = vmatprep.subr.bf16.mxu0 0
      %801 = vmatpush1.bf16.msra.mxu0 0
      %802 = vmatprep.subr.bf16.mxu0 0
      %803 = vmatpush1.bf16.msra.mxu0 0
      %804 = vmatprep.subr.bf16.mxu0 0
      %805 = vmatpush1.bf16.msra.mxu0 0
      %806 = vmatprep.subr.bf16.mxu0 0
      %807 = vmatpush1.bf16.msra.mxu0 %v790
      %808 = vmatprep.subr.bf16.mxu0 0
      %809 = vmatpush2.bf16.msra.mxu0 0
      %810 = vmatprep.subr.bf16.mxu0 0
      %811 = vmatpush2.bf16.msra.mxu0 0
      %812 = vmatprep.subr.bf16.mxu0 0
      %813 = vmatpush2.bf16.msra.mxu0 0
      %814 = vmatprep.subr.bf16.mxu0 0
      %815 = vmatpush2.bf16.msra.mxu0 0
      %816 = vmatprep.subr.bf16.mxu0 0
      %817 = vmatpush2.bf16.msra.mxu0 0
      %818 = vmatprep.subr.bf16.mxu0 0
      %819 = vmatpush2.bf16.msra.mxu0 0
      %820 = vmatprep.subr.bf16.mxu0 0
      %821 = vmatpush2.bf16.msra.mxu0 0
      %822 = vmatprep.subr.bf16.mxu0 0
      %823 = vmatpush2.bf16.msra.mxu0 0
      %824 = vmatprep.mubr.bf16.mxu0 0
      %825 = vmatmul.mubr.bf16.gmra.mxu0 %v787
      %v826 = vpop.f32.mrf.mxu0
      %v827 = vadd.f32 0.0, %v826
      %v828 = vpop.f32.mrf.mxu0
      %v829 = vpop.f32.mrf.mxu0
      %v830 = vpop.f32.mrf.mxu0
      %831 = vdwg.mxu0
      %833 = vrot.lane.b32.xlu0 %v504, 124
      %v834 = vpop.permute.xlu0 %833
      %v836 = vsel %vm509, %v834, 0.0
      %837 = vadd.xlane.f32.xlu0 %v836
      %v838 = vpop.xlane.xlu0 %837
      %s839 = scalar_lea.vmem [#allocation2], 8
      %v840 = vld [vmem:[%s839] sm:$0xff]
      %v841 = vpack.c.bf16 %v840, %v840
      %843 = vrot.lane.b32.xlu0 %v507, 124
      %v844 = vpop.permute.xlu0 %843
      %v846 = vsel %vm509, %v844, 0
      %v849 = vsel %vm509, %v841, 0
      %851 = vmatprep.subr.bf16.mxu0 0
      %852 = vmatpush1.bf16.xpose.msra.mxu0 0
      %853 = vmatprep.subr.bf16.mxu0 0
      %854 = vmatpush1.bf16.xpose.msra.mxu0 0
      %855 = vmatprep.subr.bf16.mxu0 0
      %856 = vmatpush1.bf16.xpose.msra.mxu0 0
      %857 = vmatprep.subr.bf16.mxu0 0
      %858 = vmatpush1.bf16.xpose.msra.mxu0 0
      %859 = vmatprep.subr.bf16.mxu0 0
      %860 = vmatpush1.bf16.xpose.msra.mxu0 0
      %861 = vmatprep.subr.bf16.mxu0 0
      %862 = vmatpush1.bf16.xpose.msra.mxu0 0
      %863 = vmatprep.subr.bf16.mxu0 0
      %864 = vmatpush1.bf16.xpose.msra.mxu0 0
      %865 = vmatprep.subr.bf16.mxu0 0
      %866 = vmatpush1.bf16.xpose.msra.mxu0 %v849
      %867 = vmatprep.subr.bf16.mxu0 0
      %868 = vmatpush2.bf16.xpose.msra.mxu0 0
      %869 = vmatprep.subr.bf16.mxu0 0
      %870 = vmatpush2.bf16.xpose.msra.mxu0 0
      %871 = vmatprep.subr.bf16.mxu0 0
      %872 = vmatpush2.bf16.xpose.msra.mxu0 0
      %873 = vmatprep.subr.bf16.mxu0 0
      %874 = vmatpush2.bf16.xpose.msra.mxu0 0
      %875 = vmatprep.subr.bf16.mxu0 0
      %876 = vmatpush2.bf16.xpose.msra.mxu0 0
      %877 = vmatprep.subr.bf16.mxu0 0
      %878 = vmatpush2.bf16.xpose.msra.mxu0 0
      %879 = vmatprep.subr.bf16.mxu0 0
      %880 = vmatpush2.bf16.xpose.msra.mxu0 0
      %881 = vmatprep.subr.bf16.mxu0 0
      %882 = vmatpush2.bf16.xpose.msra.mxu0 0
      %883 = vmatprep.mubr.bf16.mxu0 0
      %884 = vmatmul.mubr.bf16.gmra.mxu0 %v846
      %v885 = vpop.f32.mrf.mxu0
      %v886 = vadd.f32 %v827, %v885
      %v887 = vpop.f32.mrf.mxu0
      %v888 = vpop.f32.mrf.mxu0
      %v889 = vpop.f32.mrf.mxu0
      %890 = vdwg.mxu0
      %v891 = vmul.f32 %v838, %v656
      %893 = vrot.lane.b32.xlu0 %v891, 120
      %v894 = vpop.permute.xlu0 %893
      %v896 = vadd.f32 %v886, %v894
      %v897 = vpack.c.bf16 %v896, %v896
      %v899 = vunpack.c.l.b16 %v897
      %v900 = vpack.c.b16 %v899, %v899
      %901 = vrot.lane.b32.xlu0 %v900, 8
      %v902 = vpop.permute.xlu0 %901
      %vm904 = vcmask 126016
      %905 = vst.msk [vmem:[%s369] sm:$0xf] %vm904, %v902
      %907 = vxpose.xlu0.c.b16.start [1/8] %v785, 128
      %908 = vxpose.xlu0.c.b16.cont [2/8] 0, 128
      %909 = vxpose.xlu0.c.b16.cont [3/8] 0, 128
      %910 = vxpose.xlu0.c.b16.cont [4/8] 0, 128
      %911 = vxpose.xlu0.c.b16.cont [5/8] 0, 128
      %912 = vxpose.xlu0.c.b16.cont [6/8] 0, 128
      %913 = vxpose.xlu0.c.b16.cont [7/8] 0, 128
      %914 = vxpose.xlu0.c.b16.end [8/8] 0, 128
      %v915 = vpop.trf.xlu0
      %v916 = vpop.trf.xlu0
      %v917 = vpop.trf.xlu0
      %v918 = vpop.trf.xlu0
      %v919 = vpop.trf.xlu0
      %v920 = vpop.trf.xlu0
      %v921 = vpop.trf.xlu0
      %v922 = vpop.trf.xlu0
      %924 = vrot.lane.b32.xlu0 %v508, 124
      %v925 = vpop.permute.xlu0 %924
      %v927 = vsel %vm400, %v915, 0
      %v930 = vsel %vm561, %v925, 0
      %932 = vmatprep.subr.bf16.mxu0 0
      %933 = vmatpush1.bf16.msra.mxu0 0
      %934 = vmatprep.subr.bf16.mxu0 0
      %935 = vmatpush1.bf16.msra.mxu0 0
      %936 = vmatprep.subr.bf16.mxu0 0
      %937 = vmatpush1.bf16.msra.mxu0 0
      %938 = vmatprep.subr.bf16.mxu0 0
      %939 = vmatpush1.bf16.msra.mxu0 0
      %940 = vmatprep.subr.bf16.mxu0 0
      %941 = vmatpush1.bf16.msra.mxu0 0
      %942 = vmatprep.subr.bf16.mxu0 0
      %943 = vmatpush1.bf16.msra.mxu0 0
      %944 = vmatprep.subr.bf16.mxu0 0
      %945 = vmatpush1.bf16.msra.mxu0 0
      %946 = vmatprep.subr.bf16.mxu0 0
      %947 = vmatpush1.bf16.msra.mxu0 %v930
      %948 = vmatprep.subr.bf16.mxu0 0
      %949 = vmatpush2.bf16.msra.mxu0 0
      %950 = vmatprep.subr.bf16.mxu0 0
      %951 = vmatpush2.bf16.msra.mxu0 0
      %952 = vmatprep.subr.bf16.mxu0 0
      %953 = vmatpush2.bf16.msra.mxu0 0
      %954 = vmatprep.subr.bf16.mxu0 0
      %955 = vmatpush2.bf16.msra.mxu0 0
      %956 = vmatprep.subr.bf16.mxu0 0
      %957 = vmatpush2.bf16.msra.mxu0 0
      %958 = vmatprep.subr.bf16.mxu0 0
      %959 = vmatpush2.bf16.msra.mxu0 0
      %960 = vmatprep.subr.bf16.mxu0 0
      %961 = vmatpush2.bf16.msra.mxu0 0
      %962 = vmatprep.subr.bf16.mxu0 0
      %963 = vmatpush2.bf16.msra.mxu0 0
      %964 = vmatprep.mubr.bf16.mxu0 0
      %965 = vmatmul.mubr.bf16.gmra.mxu0 %v927
      %v966 = vpop.f32.mrf.mxu0
      %v967 = vadd.f32 0.0, %v966
      %v968 = vpop.f32.mrf.mxu0
      %v969 = vpop.f32.mrf.mxu0
      %v970 = vpop.f32.mrf.mxu0
      %971 = vdwg.mxu0
      %973 = vrot.lane.b32.xlu0 %v840, 4
      %v974 = vpop.permute.xlu0 %973
      %v976 = vmul.f32 %v496, %v974
      %978 = vrot.lane.b32.xlu0 %v967, 4
      %v979 = vpop.permute.xlu0 %978
      %v981 = vadd.f32 %v976, %v979
      %983 = vrot.lane.b32.xlu0 %v981, 124
      %v984 = vpop.permute.xlu0 %983
      %986 = vst.msk [vmem:[%s839] sm:$0xff] %vm509, %v984
      %987 = vrot.lane.b32.xlu0 %v505, 120
      %v988 = vpop.permute.xlu0 %987
      %989 = vrot.lane.b32.xlu0 %v506, 120
      %v990 = vpop.permute.xlu0 %989
      %v992 = vsel %vm509, %v988, 0
      %v995 = vsel %vm509, %v990, 0
      %997 = vmatprep.subr.bf16.mxu0 0
      %998 = vmatpush1.bf16.xpose.msra.mxu0 0
      %999 = vmatprep.subr.bf16.mxu0 0
      %1000 = vmatpush1.bf16.xpose.msra.mxu0 0
      %1001 = vmatprep.subr.bf16.mxu0 0
      %1002 = vmatpush1.bf16.xpose.msra.mxu0 0
      %1003 = vmatprep.subr.bf16.mxu0 0
      %1004 = vmatpush1.bf16.xpose.msra.mxu0 0
      %1005 = vmatprep.subr.bf16.mxu0 0
      %1006 = vmatpush1.bf16.xpose.msra.mxu0 0
      %1007 = vmatprep.subr.bf16.mxu0 0
      %1008 = vmatpush1.bf16.xpose.msra.mxu0 0
      %1009 = vmatprep.subr.bf16.mxu0 0
      %1010 = vmatpush1.bf16.xpose.msra.mxu0 0
      %1011 = vmatprep.subr.bf16.mxu0 0
      %1012 = vmatpush1.bf16.xpose.msra.mxu0 %v995
      %1013 = vmatprep.subr.bf16.mxu0 0
      %1014 = vmatpush2.bf16.xpose.msra.mxu0 0
      %1015 = vmatprep.subr.bf16.mxu0 0
      %1016 = vmatpush2.bf16.xpose.msra.mxu0 0
      %1017 = vmatprep.subr.bf16.mxu0 0
      %1018 = vmatpush2.bf16.xpose.msra.mxu0 0
      %1019 = vmatprep.subr.bf16.mxu0 0
      %1020 = vmatpush2.bf16.xpose.msra.mxu0 0
      %1021 = vmatprep.subr.bf16.mxu0 0
      %1022 = vmatpush2.bf16.xpose.msra.mxu0 0
      %1023 = vmatprep.subr.bf16.mxu0 0
      %1024 = vmatpush2.bf16.xpose.msra.mxu0 0
      %1025 = vmatprep.subr.bf16.mxu0 0
      %1026 = vmatpush2.bf16.xpose.msra.mxu0 0
      %1027 = vmatprep.subr.bf16.mxu0 0
      %1028 = vmatpush2.bf16.xpose.msra.mxu0 0
      %1029 = vmatprep.mubr.bf16.mxu0 0
      %1030 = vmatmul.mubr.bf16.gmra.mxu0 %v992
      %v1031 = vpop.f32.mrf.mxu0
      %v1032 = vadd.f32 0.0, %v1031
      %v1033 = vpop.f32.mrf.mxu0
      %v1034 = vpop.f32.mrf.mxu0
      %v1035 = vpop.f32.mrf.mxu0
      %1036 = vdwg.mxu0
      %v1037 = vsel %vm399, %v1032, 0.0
      %v1038 = vpack.c.bf16 %v1037, %v1037
      %1039 = vrot.lane.b32.xlu0 %v783, 112
      %v1040 = vpop.permute.xlu0 %1039
      %v1042 = vsel %vm400, %v1038, 0
      %v1045 = vsel %vm561, %v1040, 0
      %1047 = vmatprep.subr.bf16.mxu0 0
      %1048 = vmatpush1.bf16.msra.mxu0 0
      %1049 = vmatprep.subr.bf16.mxu0 0
      %1050 = vmatpush1.bf16.msra.mxu0 0
      %1051 = vmatprep.subr.bf16.mxu0 0
      %1052 = vmatpush1.bf16.msra.mxu0 0
      %1053 = vmatprep.subr.bf16.mxu0 0
      %1054 = vmatpush1.bf16.msra.mxu0 0
      %1055 = vmatprep.subr.bf16.mxu0 0
      %1056 = vmatpush1.bf16.msra.mxu0 0
      %1057 = vmatprep.subr.bf16.mxu0 0
      %1058 = vmatpush1.bf16.msra.mxu0 0
      %1059 = vmatprep.subr.bf16.mxu0 0
      %1060 = vmatpush1.bf16.msra.mxu0 0
      %1061 = vmatprep.subr.bf16.mxu0 0
      %1062 = vmatpush1.bf16.msra.mxu0 %v1045
      %1063 = vmatprep.subr.bf16.mxu0 0
      %1064 = vmatpush2.bf16.msra.mxu0 0
      %1065 = vmatprep.subr.bf16.mxu0 0
      %1066 = vmatpush2.bf16.msra.mxu0 0
      %1067 = vmatprep.subr.bf16.mxu0 0
      %1068 = vmatpush2.bf16.msra.mxu0 0
      %1069 = vmatprep.subr.bf16.mxu0 0
      %1070 = vmatpush2.bf16.msra.mxu0 0
      %1071 = vmatprep.subr.bf16.mxu0 0
      %1072 = vmatpush2.bf16.msra.mxu0 0
      %1073 = vmatprep.subr.bf16.mxu0 0
      %1074 = vmatpush2.bf16.msra.mxu0 0
      %1075 = vmatprep.subr.bf16.mxu0 0
      %1076 = vmatpush2.bf16.msra.mxu0 0
      %1077 = vmatprep.subr.bf16.mxu0 0
      %1078 = vmatpush2.bf16.msra.mxu0 0
      %1079 = vmatprep.mubr.bf16.mxu0 0
      %1080 = vmatmul.mubr.bf16.gmra.mxu0 %v1042
      %v1081 = vpop.f32.mrf.mxu0
      %v1082 = vadd.f32 0.0, %v1081
      %v1083 = vpop.f32.mrf.mxu0
      %v1084 = vpop.f32.mrf.mxu0
      %v1085 = vpop.f32.mrf.mxu0
      %1086 = vdwg.mxu0
      %1087 = vrot.lane.b32.xlu0 %v504, 120
      %v1088 = vpop.permute.xlu0 %1087
      %v1090 = vsel %vm509, %v1088, 0.0
      %1091 = vadd.xlane.f32.xlu0 %v1090
      %v1092 = vpop.xlane.xlu0 %1091
      %s1093 = scalar_lea.vmem [#allocation2], 16
      %v1094 = vld [vmem:[%s1093] sm:$0xff]
      %v1095 = vpack.c.bf16 %v1094, %v1094
      %1096 = vrot.lane.b32.xlu0 %v507, 120
      %v1097 = vpop.permute.xlu0 %1096
      %v1099 = vsel %vm509, %v1097, 0
      %v1102 = vsel %vm509, %v1095, 0
      %1104 = vmatprep.subr.bf16.mxu0 0
      %1105 = vmatpush1.bf16.xpose.msra.mxu0 0
      %1106 = vmatprep.subr.bf16.mxu0 0
      %1107 = vmatpush1.bf16.xpose.msra.mxu0 0
      %1108 = vmatprep.subr.bf16.mxu0 0
      %1109 = vmatpush1.bf16.xpose.msra.mxu0 0
      %1110 = vmatprep.subr.bf16.mxu0 0
      %1111 = vmatpush1.bf16.xpose.msra.mxu0 0
      %1112 = vmatprep.subr.bf16.mxu0 0
      %1113 = vmatpush1.bf16.xpose.msra.mxu0 0
      %1114 = vmatprep.subr.bf16.mxu0 0
      %1115 = vmatpush1.bf16.xpose.msra.mxu0 0
      %1116 = vmatprep.subr.bf16.mxu0 0
      %1117 = vmatpush1.bf16.xpose.msra.mxu0 0
      %1118 = vmatprep.subr.bf16.mxu0 0
      %1119 = vmatpush1.bf16.xpose.msra.mxu0 %v1102
      %1120 = vmatprep.subr.bf16.mxu0 0
      %1121 = vmatpush2.bf16.xpose.msra.mxu0 0
      %1122 = vmatprep.subr.bf16.mxu0 0
      %1123 = vmatpush2.bf16.xpose.msra.mxu0 0
      %1124 = vmatprep.subr.bf16.mxu0 0
      %1125 = vmatpush2.bf16.xpose.msra.mxu0 0
      %1126 = vmatprep.subr.bf16.mxu0 0
      %1127 = vmatpush2.bf16.xpose.msra.mxu0 0
      %1128 = vmatprep.subr.bf16.mxu0 0
      %1129 = vmatpush2.bf16.xpose.msra.mxu0 0
      %1130 = vmatprep.subr.bf16.mxu0 0
      %1131 = vmatpush2.bf16.xpose.msra.mxu0 0
      %1132 = vmatprep.subr.bf16.mxu0 0
      %1133 = vmatpush2.bf16.xpose.msra.mxu0 0
      %1134 = vmatprep.subr.bf16.mxu0 0
      %1135 = vmatpush2.bf16.xpose.msra.mxu0 0
      %1136 = vmatprep.mubr.bf16.mxu0 0
      %1137 = vmatmul.mubr.bf16.gmra.mxu0 %v1099
      %v1138 = vpop.f32.mrf.mxu0
      %v1139 = vadd.f32 %v1082, %v1138
      %v1140 = vpop.f32.mrf.mxu0
      %v1141 = vpop.f32.mrf.mxu0
      %v1142 = vpop.f32.mrf.mxu0
      %1143 = vdwg.mxu0
      %v1144 = vmul.f32 %v1092, %v656
      %1146 = vrot.lane.b32.xlu0 %v1144, 112
      %v1147 = vpop.permute.xlu0 %1146
      %v1149 = vadd.f32 %v1139, %v1147
      %v1150 = vpack.c.bf16 %v1149, %v1149
      %v1152 = vunpack.c.l.b16 %v1150
      %v1153 = vpack.c.b16 %v1152, %v1152
      %1154 = vrot.lane.b32.xlu0 %v1153, 16
      %v1155 = vpop.permute.xlu0 %1154
      %vm1157 = vcmask 191616
      %1158 = vst.msk [vmem:[%s369] sm:$0xf] %vm1157, %v1155
      %1160 = vxpose.xlu0.c.b16.start [1/8] %v1040, 128
      %1161 = vxpose.xlu0.c.b16.cont [2/8] 0, 128
      %1162 = vxpose.xlu0.c.b16.cont [3/8] 0, 128
      %1163 = vxpose.xlu0.c.b16.cont [4/8] 0, 128
      %1164 = vxpose.xlu0.c.b16.cont [5/8] 0, 128
      %1165 = vxpose.xlu0.c.b16.cont [6/8] 0, 128
      %1166 = vxpose.xlu0.c.b16.cont [7/8] 0, 128
      %1167 = vxpose.xlu0.c.b16.end [8/8] 0, 128
      %v1168 = vpop.trf.xlu0
      %v1169 = vpop.trf.xlu0
      %v1170 = vpop.trf.xlu0
      %v1171 = vpop.trf.xlu0
      %v1172 = vpop.trf.xlu0
      %v1173 = vpop.trf.xlu0
      %v1174 = vpop.trf.xlu0
      %v1175 = vpop.trf.xlu0
      %1176 = vrot.lane.b32.xlu0 %v508, 120
      %v1177 = vpop.permute.xlu0 %1176
      %v1179 = vsel %vm400, %v1168, 0
      %v1182 = vsel %vm561, %v1177, 0
      %1184 = vmatprep.subr.bf16.mxu0 0
      %1185 = vmatpush1.bf16.msra.mxu0 0
      %1186 = vmatprep.subr.bf16.mxu0 0
      %1187 = vmatpush1.bf16.msra.mxu0 0
      %1188 = vmatprep.subr.bf16.mxu0 0
      %1189 = vmatpush1.bf16.msra.mxu0 0
      %1190 = vmatprep.subr.bf16.mxu0 0
      %1191 = vmatpush1.bf16.msra.mxu0 0
      %1192 = vmatprep.subr.bf16.mxu0 0
      %1193 = vmatpush1.bf16.msra.mxu0 0
      %1194 = vmatprep.subr.bf16.mxu0 0
      %1195 = vmatpush1.bf16.msra.mxu0 0
      %1196 = vmatprep.subr.bf16.mxu0 0
      %1197 = vmatpush1.bf16.msra.mxu0 0
      %1198 = vmatprep.subr.bf16.mxu0 0
      %1199 = vmatpush1.bf16.msra.mxu0 %v1182
      %1200 = vmatprep.subr.bf16.mxu0 0
      %1201 = vmatpush2.bf16.msra.mxu0 0
      %1202 = vmatprep.subr.bf16.mxu0 0
      %1203 = vmatpush2.bf16.msra.mxu0 0
      %1204 = vmatprep.subr.bf16.mxu0 0
      %1205 = vmatpush2.bf16.msra.mxu0 0
      %1206 = vmatprep.subr.bf16.mxu0 0
      %1207 = vmatpush2.bf16.msra.mxu0 0
      %1208 = vmatprep.subr.bf16.mxu0 0
      %1209 = vmatpush2.bf16.msra.mxu0 0
      %1210 = vmatprep.subr.bf16.mxu0 0
      %1211 = vmatpush2.bf16.msra.mxu0 0
      %1212 = vmatprep.subr.bf16.mxu0 0
      %1213 = vmatpush2.bf16.msra.mxu0 0
      %1214 = vmatprep.subr.bf16.mxu0 0
      %1215 = vmatpush2.bf16.msra.mxu0 0
      %1216 = vmatprep.mubr.bf16.mxu0 0
      %1217 = vmatmul.mubr.bf16.gmra.mxu0 %v1179
      %v1218 = vpop.f32.mrf.mxu0
      %v1219 = vadd.f32 0.0, %v1218
      %v1220 = vpop.f32.mrf.mxu0
      %v1221 = vpop.f32.mrf.mxu0
      %v1222 = vpop.f32.mrf.mxu0
      %1223 = vdwg.mxu0
      %1225 = vrot.lane.b32.xlu0 %v1094, 8
      %v1226 = vpop.permute.xlu0 %1225
      %v1228 = vmul.f32 %v496, %v1226
      %1230 = vrot.lane.b32.xlu0 %v1219, 8
      %v1231 = vpop.permute.xlu0 %1230
      %v1233 = vadd.f32 %v1228, %v1231
      %1235 = vrot.lane.b32.xlu0 %v1233, 120
      %v1236 = vpop.permute.xlu0 %1235
      %1238 = vst.msk [vmem:[%s1093] sm:$0xff] %vm509, %v1236
      %1239 = vrot.lane.b32.xlu0 %v505, 116
      %v1240 = vpop.permute.xlu0 %1239
      %1241 = vrot.lane.b32.xlu0 %v506, 116
      %v1242 = vpop.permute.xlu0 %1241
      %v1244 = vsel %vm509, %v1240, 0
      %v1247 = vsel %vm509, %v1242, 0
      %1249 = vmatprep.subr.bf16.mxu0 0
      %1250 = vmatpush1.bf16.xpose.msra.mxu0 0
      %1251 = vmatprep.subr.bf16.mxu0 0
      %1252 = vmatpush1.bf16.xpose.msra.mxu0 0
      %1253 = vmatprep.subr.bf16.mxu0 0
      %1254 = vmatpush1.bf16.xpose.msra.mxu0 0
      %1255 = vmatprep.subr.bf16.mxu0 0
      %1256 = vmatpush1.bf16.xpose.msra.mxu0 0
      %1257 = vmatprep.subr.bf16.mxu0 0
      %1258 = vmatpush1.bf16.xpose.msra.mxu0 0
      %1259 = vmatprep.subr.bf16.mxu0 0
      %1260 = vmatpush1.bf16.xpose.msra.mxu0 0
      %1261 = vmatprep.subr.bf16.mxu0 0
      %1262 = vmatpush1.bf16.xpose.msra.mxu0 0
      %1263 = vmatprep.subr.bf16.mxu0 0
      %1264 = vmatpush1.bf16.xpose.msra.mxu0 %v1247
      %1265 = vmatprep.subr.bf16.mxu0 0
      %1266 = vmatpush2.bf16.xpose.msra.mxu0 0
      %1267 = vmatprep.subr.bf16.mxu0 0
      %1268 = vmatpush2.bf16.xpose.msra.mxu0 0
      %1269 = vmatprep.subr.bf16.mxu0 0
      %1270 = vmatpush2.bf16.xpose.msra.mxu0 0
      %1271 = vmatprep.subr.bf16.mxu0 0
      %1272 = vmatpush2.bf16.xpose.msra.mxu0 0
      %1273 = vmatprep.subr.bf16.mxu0 0
      %1274 = vmatpush2.bf16.xpose.msra.mxu0 0
      %1275 = vmatprep.subr.bf16.mxu0 0
      %1276 = vmatpush2.bf16.xpose.msra.mxu0 0
      %1277 = vmatprep.subr.bf16.mxu0 0
      %1278 = vmatpush2.bf16.xpose.msra.mxu0 0
      %1279 = vmatprep.subr.bf16.mxu0 0
      %1280 = vmatpush2.bf16.xpose.msra.mxu0 0
      %1281 = vmatprep.mubr.bf16.mxu0 0
      %1282 = vmatmul.mubr.bf16.gmra.mxu0 %v1244
      %v1283 = vpop.f32.mrf.mxu0
      %v1284 = vadd.f32 0.0, %v1283
      %v1285 = vpop.f32.mrf.mxu0
      %v1286 = vpop.f32.mrf.mxu0
      %v1287 = vpop.f32.mrf.mxu0
      %1288 = vdwg.mxu0
      %v1289 = vsel %vm399, %v1284, 0.0
      %v1290 = vpack.c.bf16 %v1289, %v1289
      %1291 = vrot.lane.b32.xlu0 %v783, 104
      %v1292 = vpop.permute.xlu0 %1291
      %v1294 = vsel %vm400, %v1290, 0
      %v1297 = vsel %vm561, %v1292, 0
      %1299 = vmatprep.subr.bf16.mxu0 0
      %1300 = vmatpush1.bf16.msra.mxu0 0
      %1301 = vmatprep.subr.bf16.mxu0 0
      %1302 = vmatpush1.bf16.msra.mxu0 0
      %1303 = vmatprep.subr.bf16.mxu0 0
      %1304 = vmatpush1.bf16.msra.mxu0 0
      %1305 = vmatprep.subr.bf16.mxu0 0
      %1306 = vmatpush1.bf16.msra.mxu0 0
      %1307 = vmatprep.subr.bf16.mxu0 0
      %1308 = vmatpush1.bf16.msra.mxu0 0
      %1309 = vmatprep.subr.bf16.mxu0 0
      %1310 = vmatpush1.bf16.msra.mxu0 0
      %1311 = vmatprep.subr.bf16.mxu0 0
      %1312 = vmatpush1.bf16.msra.mxu0 0
      %1313 = vmatprep.subr.bf16.mxu0 0
      %1314 = vmatpush1.bf16.msra.mxu0 %v1297
      %1315 = vmatprep.subr.bf16.mxu0 0
      %1316 = vmatpush2.bf16.msra.mxu0 0
      %1317 = vmatprep.subr.bf16.mxu0 0
      %1318 = vmatpush2.bf16.msra.mxu0 0
      %1319 = vmatprep.subr.bf16.mxu0 0
      %1320 = vmatpush2.bf16.msra.mxu0 0
      %1321 = vmatprep.subr.bf16.mxu0 0
      %1322 = vmatpush2.bf16.msra.mxu0 0
      %1323 = vmatprep.subr.bf16.mxu0 0
      %1324 = vmatpush2.bf16.msra.mxu0 0
      %1325 = vmatprep.subr.bf16.mxu0 0
      %1326 = vmatpush2.bf16.msra.mxu0 0
      %1327 = vmatprep.subr.bf16.mxu0 0
      %1328 = vmatpush2.bf16.msra.mxu0 0
      %1329 = vmatprep.subr.bf16.mxu0 0
      %1330 = vmatpush2.bf16.msra.mxu0 0
      %1331 = vmatprep.mubr.bf16.mxu0 0
      %1332 = vmatmul.mubr.bf16.gmra.mxu0 %v1294
      %v1333 = vpop.f32.mrf.mxu0
      %v1334 = vadd.f32 0.0, %v1333
      %v1335 = vpop.f32.mrf.mxu0
      %v1336 = vpop.f32.mrf.mxu0
      %v1337 = vpop.f32.mrf.mxu0
      %1338 = vdwg.mxu0
      %1339 = vrot.lane.b32.xlu0 %v504, 116
      %v1340 = vpop.permute.xlu0 %1339
      %v1342 = vsel %vm509, %v1340, 0.0
      %1343 = vadd.xlane.f32.xlu0 %v1342
      %v1344 = vpop.xlane.xlu0 %1343
      %s1345 = scalar_lea.vmem [#allocation2], 24
      %v1346 = vld [vmem:[%s1345] sm:$0xff]
      %v1347 = vpack.c.bf16 %v1346, %v1346
      %1348 = vrot.lane.b32.xlu0 %v507, 116
      %v1349 = vpop.permute.xlu0 %1348
      %v1351 = vsel %vm509, %v1349, 0
      %v1354 = vsel %vm509, %v1347, 0
      %1356 = vmatprep.subr.bf16.mxu0 0
      %1357 = vmatpush1.bf16.xpose.msra.mxu0 0
      %1358 = vmatprep.subr.bf16.mxu0 0
      %1359 = vmatpush1.bf16.xpose.msra.mxu0 0
      %1360 = vmatprep.subr.bf16.mxu0 0
      %1361 = vmatpush1.bf16.xpose.msra.mxu0 0
      %1362 = vmatprep.subr.bf16.mxu0 0
      %1363 = vmatpush1.bf16.xpose.msra.mxu0 0
      %1364 = vmatprep.subr.bf16.mxu0 0
      %1365 = vmatpush1.bf16.xpose.msra.mxu0 0
      %1366 = vmatprep.subr.bf16.mxu0 0
      %1367 = vmatpush1.bf16.xpose.msra.mxu0 0
      %1368 = vmatprep.subr.bf16.mxu0 0
      %1369 = vmatpush1.bf16.xpose.msra.mxu0 0
      %1370 = vmatprep.subr.bf16.mxu0 0
      %1371 = vmatpush1.bf16.xpose.msra.mxu0 %v1354
      %1372 = vmatprep.subr.bf16.mxu0 0
      %1373 = vmatpush2.bf16.xpose.msra.mxu0 0
      %1374 = vmatprep.subr.bf16.mxu0 0
      %1375 = vmatpush2.bf16.xpose.msra.mxu0 0
      %1376 = vmatprep.subr.bf16.mxu0 0
      %1377 = vmatpush2.bf16.xpose.msra.mxu0 0
      %1378 = vmatprep.subr.bf16.mxu0 0
      %1379 = vmatpush2.bf16.xpose.msra.mxu0 0
      %1380 = vmatprep.subr.bf16.mxu0 0
      %1381 = vmatpush2.bf16.xpose.msra.mxu0 0
      %1382 = vmatprep.subr.bf16.mxu0 0
      %1383 = vmatpush2.bf16.xpose.msra.mxu0 0
      %1384 = vmatprep.subr.bf16.mxu0 0
      %1385 = vmatpush2.bf16.xpose.msra.mxu0 0
      %1386 = vmatprep.subr.bf16.mxu0 0
      %1387 = vmatpush2.bf16.xpose.msra.mxu0 0
      %1388 = vmatprep.mubr.bf16.mxu0 0
      %1389 = vmatmul.mubr.bf16.gmra.mxu0 %v1351
      %v1390 = vpop.f32.mrf.mxu0
      %v1391 = vadd.f32 %v1334, %v1390
      %v1392 = vpop.f32.mrf.mxu0
      %v1393 = vpop.f32.mrf.mxu0
      %v1394 = vpop.f32.mrf.mxu0
      %1395 = vdwg.mxu0
      %v1396 = vmul.f32 %v1344, %v656
      %1398 = vrot.lane.b32.xlu0 %v1396, 104
      %v1399 = vpop.permute.xlu0 %1398
      %v1401 = vadd.f32 %v1391, %v1399
      %v1402 = vpack.c.bf16 %v1401, %v1401
      %v1404 = vunpack.c.l.b16 %v1402
      %v1405 = vpack.c.b16 %v1404, %v1404
      %1406 = vrot.lane.b32.xlu0 %v1405, 24
      %v1407 = vpop.permute.xlu0 %1406
      %vm1409 = vcmask 257216
      %1410 = vst.msk [vmem:[%s369] sm:$0xf] %vm1409, %v1407
      %1412 = vxpose.xlu0.c.b16.start [1/8] %v1292, 128
      %1413 = vxpose.xlu0.c.b16.cont [2/8] 0, 128
      %1414 = vxpose.xlu0.c.b16.cont [3/8] 0, 128
      %1415 = vxpose.xlu0.c.b16.cont [4/8] 0, 128
      %1416 = vxpose.xlu0.c.b16.cont [5/8] 0, 128
      %1417 = vxpose.xlu0.c.b16.cont [6/8] 0, 128
      %1418 = vxpose.xlu0.c.b16.cont [7/8] 0, 128
      %1419 = vxpose.xlu0.c.b16.end [8/8] 0, 128
      %v1420 = vpop.trf.xlu0
      %v1421 = vpop.trf.xlu0
      %v1422 = vpop.trf.xlu0
      %v1423 = vpop.trf.xlu0
      %v1424 = vpop.trf.xlu0
      %v1425 = vpop.trf.xlu0
      %v1426 = vpop.trf.xlu0
      %v1427 = vpop.trf.xlu0
      %1428 = vrot.lane.b32.xlu0 %v508, 116
      %v1429 = vpop.permute.xlu0 %1428
      %v1431 = vsel %vm400, %v1420, 0
      %v1434 = vsel %vm561, %v1429, 0
      %1436 = vmatprep.subr.bf16.mxu0 0
      %1437 = vmatpush1.bf16.msra.mxu0 0
      %1438 = vmatprep.subr.bf16.mxu0 0
      %1439 = vmatpush1.bf16.msra.mxu0 0
      %1440 = vmatprep.subr.bf16.mxu0 0
      %1441 = vmatpush1.bf16.msra.mxu0 0
      %1442 = vmatprep.subr.bf16.mxu0 0
      %1443 = vmatpush1.bf16.msra.mxu0 0
      %1444 = vmatprep.subr.bf16.mxu0 0
      %1445 = vmatpush1.bf16.msra.mxu0 0
      %1446 = vmatprep.subr.bf16.mxu0 0
      %1447 = vmatpush1.bf16.msra.mxu0 0
      %1448 = vmatprep.subr.bf16.mxu0 0
      %1449 = vmatpush1.bf16.msra.mxu0 0
      %1450 = vmatprep.subr.bf16.mxu0 0
      %1451 = vmatpush1.bf16.msra.mxu0 %v1434
      %1452 = vmatprep.subr.bf16.mxu0 0
      %1453 = vmatpush2.bf16.msra.mxu0 0
      %1454 = vmatprep.subr.bf16.mxu0 0
      %1455 = vmatpush2.bf16.msra.mxu0 0
      %1456 = vmatprep.subr.bf16.mxu0 0
      %1457 = vmatpush2.bf16.msra.mxu0 0
      %1458 = vmatprep.subr.bf16.mxu0 0
      %1459 = vmatpush2.bf16.msra.mxu0 0
      %1460 = vmatprep.subr.bf16.mxu0 0
      %1461 = vmatpush2.bf16.msra.mxu0 0
      %1462 = vmatprep.subr.bf16.mxu0 0
      %1463 = vmatpush2.bf16.msra.mxu0 0
      %1464 = vmatprep.subr.bf16.mxu0 0
      %1465 = vmatpush2.bf16.msra.mxu0 0
      %1466 = vmatprep.subr.bf16.mxu0 0
      %1467 = vmatpush2.bf16.msra.mxu0 0
      %1468 = vmatprep.mubr.bf16.mxu0 0
      %1469 = vmatmul.mubr.bf16.gmra.mxu0 %v1431
      %v1470 = vpop.f32.mrf.mxu0
      %v1471 = vadd.f32 0.0, %v1470
      %v1472 = vpop.f32.mrf.mxu0
      %v1473 = vpop.f32.mrf.mxu0
      %v1474 = vpop.f32.mrf.mxu0
      %1475 = vdwg.mxu0
      %1477 = vrot.lane.b32.xlu0 %v1346, 12
      %v1478 = vpop.permute.xlu0 %1477
      %v1480 = vmul.f32 %v496, %v1478
      %1482 = vrot.lane.b32.xlu0 %v1471, 12
      %v1483 = vpop.permute.xlu0 %1482
      %v1485 = vadd.f32 %v1480, %v1483
      %1487 = vrot.lane.b32.xlu0 %v1485, 116
      %v1488 = vpop.permute.xlu0 %1487
      %1490 = vst.msk [vmem:[%s1345] sm:$0xff] %vm509, %v1488
      %v1491 = vld [vmem:[#allocation2] sm:$0xff]
      %v1492 = vld [vmem:[#allocation2 + $0x8] sm:$0xff]
      %v1493 = vld [vmem:[#allocation2 + $0x10] sm:$0xff]
      %v1494 = vld [vmem:[#allocation2 + $0x18] sm:$0xff]
      %1495 = vst.msk [vmem:[%s374] sm:$0xff] %vm509, %v1491
      %1496 = vst.msk [vmem:[%s374 + $0x8] sm:$0xff] %vm509, %v1492
      %1497 = vst.msk [vmem:[%s374 + $0x10] sm:$0xff] %vm509, %v1493
      %1498 = vst.msk [vmem:[%s374 + $0x18] sm:$0xff] %vm509, %v1494
      %p1499 = scmp.lt.s32.totalorder %s22, 1
      %s1500 = scalar_select %p1499, %s22, 1
      %p1501 = scmp.lt.s32.totalorder %s23, 0
      %s1502 = scalar_select %p1501, %s23, 0
      %s1503 = sadd.s32 %s1502, %s1500
      %s1504 = smul.addr %s1503, 4
      %s1505 = scalar_lea.vmem %s5, %s1504
      %p1506 = scmp.lt.s32.totalorder %s22, 1
      %s1507 = scalar_select %p1506, %s22, 1
      %s1508 = smul.addr %s1507, 4
      %s1509 = smul.addr %s1508, 8
      %s1510 = scalar_lea.vmem %s6, %s1509
      // Predicated region
      $region45: #{_lambda_.8} parent=39 // pred_check
        %p1511 = pneg %p183
      $region46: #{_lambda_.8} parent=39 // pred_check_branch
        %1513 = sbr.rel (%p1511) target = $region48
      $region47: #{_lambda_.8} parent=39 // pred_region
        _
      $region48: #{_lambda_.8} parent=39 // pred_fallthru
        _
      // Predicated region
      $region49: #{_lambda_.8} parent=39 // pred_check
        %p1514 = pneg %p209
      $region50: #{_lambda_.8} parent=39 // pred_check_branch
        %1516 = sbr.rel (%p1514) target = $region52
      $region51: #{_lambda_.8} parent=39 // pred_region
        _
      $region52: #{_lambda_.8} parent=39 // pred_fallthru
        _
    $region40: #{_lambda_.8} parent=5 // pred_fallthru
      _
    %p1517 = scmp.le.s32.totalorder 2, %s13
    // Predicated region
    $region53: #{_lambda_.8} parent=5 // pred_check
      %p1518 = pneg %p1517
    $region54: #{_lambda_.8} parent=5 // pred_check_branch
      %1520 = sbr.rel (%p1518) target = $region56
    $region55: #{_lambda_.8} parent=5 // pred_region
      %s1521 = ssub.s32 %s13, 2
      // Predicated region
      $region57: #{_lambda_.8} parent=55 // pred_check
        %p1522 = pneg %p189
      $region58: #{_lambda_.8} parent=55 // pred_check_branch
        %1524 = sbr.rel (%p1522) target = $region60
      $region59: #{_lambda_.8} parent=55 // pred_region
        %p1525 = scmp.lt.s32.totalorder %s24, 1
        %s1526 = scalar_select %p1525, %s24, 1
        %p1527 = scmp.lt.s32.totalorder %s25, 0
        %s1528 = scalar_select %p1527, %s25, 0
        %s1529 = sadd.s32 %s1528, %s1526
        %s1530 = smul.addr %s1529, 4
        %s1531 = scalar_lea.vmem %s5, %s1530
      $region60: #{_lambda_.8} parent=55 // pred_fallthru
        _
      // Predicated region
      $region61: #{_lambda_.8} parent=55 // pred_check
        %p1532 = pneg %p215
      $region62: #{_lambda_.8} parent=55 // pred_check_branch
        %1534 = sbr.rel (%p1532) target = $region64
      $region63: #{_lambda_.8} parent=55 // pred_region
        %p1535 = scmp.lt.s32.totalorder %s24, 1
        %s1536 = scalar_select %p1535, %s24, 1
        %s1537 = smul.addr %s1536, 4
        %s1538 = smul.addr %s1537, 8
        %s1539 = scalar_lea.vmem %s6, %s1538
      $region64: #{_lambda_.8} parent=55 // pred_fallthru
        _
    $region56: #{_lambda_.8} parent=5 // pred_fallthru
      _
  $region6: #{_lambda_.8} parent=0 // loop_footer
    %s17 = sadd.s32 1, %s13
  $region7: #{_lambda_.8} parent=0 // loop_footer_branch
    %12 = sbr.rel target = $region3
  $region8: #{_lambda_.8} parent=0 // loop_exit
    _

// kernel: _lambda_.10
$region0: #{_lambda_.10}
  #allocation0 [shape = 'u32[]', space=smem, size = 0x4, offset = 0x4, fixed_abs, tag = 'smem constant byte address 0x4 - core index']
  #allocation1 [shape = 'u32[144,128]{1,0:T(1,128)}', space=vmem, size = 0x12000, scoped, tag = 'internal scratch']
  %s0 = inlined_call_operand.vmem [shape: f32[16,32], index: 0, kind: input, shape index: {}]
  %s1 = inlined_call_operand.vmem [shape: f32[16,32], index: 1, kind: input, shape index: {}]
  %s2 = inlined_call_operand.vmem [shape: f32[1,32], index: 2, kind: input, shape index: {}]
  %s3 = inlined_call_operand.vmem [shape: f32[1,32], index: 3, kind: input, shape index: {}]
  %s4 = inlined_call_operand.vmem [shape: f32[16,32], index: 4, kind: output, shape index: {0}]
  %s5 = inlined_call_operand.vmem [shape: bf16[16,32], index: 5, kind: output, shape index: {1}]
  %6 = xla_tuple %s4, %s5
  %s7 = sld [smem:[#allocation0]]
  $region34: #{_lambda_.10} parent=0
    _
  %s9 = ssub.s32 1, %s7
  %s10 = scalar_select 0, %s9, %s7
  // Predicated region
  $region2: #{_lambda_.10} parent=0 // pred_check
    _
  $region3: #{_lambda_.10} parent=0 // pred_check_branch
    %12 = sbr.rel (0) target = $region5
  $region4: #{_lambda_.10} parent=0 // pred_region
    _
  $region5: #{_lambda_.10} parent=0 // pred_fallthru
    _
  // Predicated region
  $region6: #{_lambda_.10} parent=0 // pred_check
    _
  $region7: #{_lambda_.10} parent=0 // pred_check_branch
    %14 = sbr.rel (0) target = $region9
  $region8: #{_lambda_.10} parent=0 // pred_region
    _
  $region9: #{_lambda_.10} parent=0 // pred_fallthru
    _
  // Predicated region
  $region10: #{_lambda_.10} parent=0 // pred_check
    _
  $region11: #{_lambda_.10} parent=0 // pred_check_branch
    %16 = sbr.rel (0) target = $region13
  $region12: #{_lambda_.10} parent=0 // pred_region
    _
  $region13: #{_lambda_.10} parent=0 // pred_fallthru
    _
  // Predicated region
  $region14: #{_lambda_.10} parent=0 // pred_check
    _
  $region15: #{_lambda_.10} parent=0 // pred_check_branch
    %18 = sbr.rel (0) target = $region17
  $region16: #{_lambda_.10} parent=0 // pred_region
    _
  $region17: #{_lambda_.10} parent=0 // pred_fallthru
    _
  %v19 = vld [vmem:[%s0] sm:$0xff]
  %v20 = vld [vmem:[%s0 + $0x8] sm:$0xff]
  %v21 = vld [vmem:[%s1] sm:$0xff]
  %v22 = vld [vmem:[%s1 + $0x8] sm:$0xff]
  %v23 = vadd.f32 %v19, %v21
  %v24 = vadd.f32 %v20, %v22
  %vm25 = vcmask 261120
  %26 = vst.msk [vmem:[%s4] sm:$0xff] %vm25, %v23
  %27 = vst.msk [vmem:[%s4 + $0x8] sm:$0xff] %vm25, %v24
  %v28 = vld [vmem:[%s2] sm:$0x1]
  %v29 = vld [vmem:[%s3] sm:$0x1]
  %v30 = vsel %vm25, %v23, 0.0
  %31 = vadd.xlane.f32.xlu0 %v30
  %v32 = vpop.xlane.xlu0 %31
  %v33 = vsel %vm25, %v24, 0.0
  %34 = vadd.xlane.f32.xlu0 %v33
  %v35 = vpop.xlane.xlu0 %34
  %v36 = vrcp.pop 32.0
  %v37 = vmul.f32 %v32, %v36
  %v38 = vmul.f32 %v35, %v36
  %v39 = vsub.f32 %v23, %v37
  %v40 = vsub.f32 %v24, %v38
  %v41 = vmul.f32 %v39, %v39
  %v42 = vmul.f32 %v40, %v40
  %v43 = vsel %vm25, %v41, 0.0
  %44 = vadd.xlane.f32.xlu0 %v43
  %v45 = vpop.xlane.xlu0 %44
  %v46 = vsel %vm25, %v42, 0.0
  %47 = vadd.xlane.f32.xlu0 %v46
  %v48 = vpop.xlane.xlu0 %47
  %v49 = vmul.f32 %v45, %v36
  %v50 = vmul.f32 %v48, %v36
  %v51 = vadd.f32 %v49, 1e-05
  %v52 = vadd.f32 %v50, 1e-05
  %v53 = vrsqrt.pop %v51
  %v54 = vrsqrt.pop %v52
  %v55 = vmul.f32 %v39, %v53
  %v56 = vmul.f32 %v40, %v54
  %v58 = vlaneseq
  %v59 = vshrl.u32 %v58, 7
  %v60 = vsub.s32 0, %v59
  %v61 = vrot.slane %v28, %v60
  %v63 = vmul.f32 %v55, %v61
  %v64 = vmul.f32 %v56, %v61
  %v66 = vlaneseq
  %v67 = vshrl.u32 %v66, 7
  %v68 = vsub.s32 0, %v67
  %v69 = vrot.slane %v29, %v68
  %v71 = vadd.f32 %v63, %v69
  %v72 = vadd.f32 %v64, %v69
  %v73 = vpack.c.bf16 %v72, %v71
  %v75 = vunpack.c.l.b16 %v73
  %v76 = vunpack.c.h.b16 %v73
  %v77 = vpack.c.b16 %v75, %v75
  %v78 = vpack.c.b16 %v76, %v76
  %vm81 = vcmask 257024
  %82 = vst.msk [vmem:[%s5] sm:$0xf] %vm81, %v77
  %83 = vst.msk [vmem:[%s5 + $0x4] sm:$0xf] %vm81, %v78
  // Predicated region
  $region18: #{_lambda_.10} parent=0 // pred_check
    _
  $region19: #{_lambda_.10} parent=0 // pred_check_branch
    %85 = sbr.rel (0) target = $region21
  $region20: #{_lambda_.10} parent=0 // pred_region
    _
  $region21: #{_lambda_.10} parent=0 // pred_fallthru
    _
  // Predicated region
  $region22: #{_lambda_.10} parent=0 // pred_check
    _
  $region23: #{_lambda_.10} parent=0 // pred_check_branch
    %87 = sbr.rel (0) target = $region25
  $region24: #{_lambda_.10} parent=0 // pred_region
    _
  $region25: #{_lambda_.10} parent=0 // pred_fallthru
    _
  // Predicated region
  $region26: #{_lambda_.10} parent=0 // pred_check
    _
  $region27: #{_lambda_.10} parent=0 // pred_check_branch
    %89 = sbr.rel (0) target = $region29
  $region28: #{_lambda_.10} parent=0 // pred_region
    _
  $region29: #{_lambda_.10} parent=0 // pred_fallthru
    _
  // Predicated region
  $region30: #{_lambda_.10} parent=0 // pred_check
    _
  $region31: #{_lambda_.10} parent=0 // pred_check_branch
    %91 = sbr.rel (0) target = $region33
  $region32: #{_lambda_.10} parent=0 // pred_region
    _
  $region33: #{_lambda_.10} parent=0 // pred_fallthru
    _

// kernel: _lambda_.11
$region0: #{_lambda_.11}
  #allocation0 [shape = 'u32[]', space=smem, size = 0x4, offset = 0x4, fixed_abs, tag = 'smem constant byte address 0x4 - core index']
  #allocation1 [shape = 'u32[144,128]{1,0:T(1,128)}', space=vmem, size = 0x12000, scoped, tag = 'internal scratch']
  %s0 = inlined_call_operand.vmem [shape: bf16[16,32], index: 0, kind: input, shape index: {}]
  %s1 = inlined_call_operand.vmem [shape: bf16[16,32], index: 1, kind: input, shape index: {}]
  %s2 = inlined_call_operand.vmem [shape: f32[16,32], index: 2, kind: input, shape index: {}]
  %s3 = inlined_call_operand.vmem [shape: f32[1,32], index: 3, kind: input, shape index: {}]
  %s4 = inlined_call_operand.vmem [shape: f32[1,32], index: 4, kind: input, shape index: {}]
  %s5 = inlined_call_operand.vmem [shape: bf16[32,64], index: 5, kind: input, shape index: {}]
  %s6 = inlined_call_operand.vmem [shape: bf16[64,32], index: 6, kind: input, shape index: {}]
  %s7 = inlined_call_operand.vmem [shape: bf16[32,32], index: 7, kind: input, shape index: {}]
  %s8 = inlined_call_operand.hbm [shape: f32[16,32], index: 8, kind: output, shape index: {}]
  %s9 = sld [smem:[#allocation0]]
  $region42: #{_lambda_.11} parent=0
    _
  %s11 = ssub.s32 1, %s9
  %s12 = scalar_select 0, %s11, %s9
  $region1: #{_lambda_.11} parent=0
    #allocation2 [shape = 'u8[8192]{0}', space=vmem, size = 0x2000, scoped, tag = 'output window, operand 0, single buffered']
    #allocation3 [shape = 's32[1]{0}', space=sflag, size = 0x4, scoped, tag = 'scoped memory for _lambda_.11']
    %13 = vsyncpa [#allocation3], 0
    // Predicated region
    $region2: #{_lambda_.11} parent=1 // pred_check
      _
    $region3: #{_lambda_.11} parent=1 // pred_check_branch
      %15 = sbr.rel (0) target = $region5
    $region4: #{_lambda_.11} parent=1 // pred_region
      _
    $region5: #{_lambda_.11} parent=1 // pred_fallthru
      _
    // Predicated region
    $region6: #{_lambda_.11} parent=1 // pred_check
      _
    $region7: #{_lambda_.11} parent=1 // pred_check_branch
      %17 = sbr.rel (0) target = $region9
    $region8: #{_lambda_.11} parent=1 // pred_region
      _
    $region9: #{_lambda_.11} parent=1 // pred_fallthru
      _
    // Predicated region
    $region10: #{_lambda_.11} parent=1 // pred_check
      _
    $region11: #{_lambda_.11} parent=1 // pred_check_branch
      %19 = sbr.rel (0) target = $region13
    $region12: #{_lambda_.11} parent=1 // pred_region
      _
    $region13: #{_lambda_.11} parent=1 // pred_fallthru
      _
    // Predicated region
    $region14: #{_lambda_.11} parent=1 // pred_check
      _
    $region15: #{_lambda_.11} parent=1 // pred_check_branch
      %21 = sbr.rel (0) target = $region17
    $region16: #{_lambda_.11} parent=1 // pred_region
      _
    $region17: #{_lambda_.11} parent=1 // pred_fallthru
      _
    // Predicated region
    $region18: #{_lambda_.11} parent=1 // pred_check
      _
    $region19: #{_lambda_.11} parent=1 // pred_check_branch
      %23 = sbr.rel (0) target = $region21
    $region20: #{_lambda_.11} parent=1 // pred_region
      _
    $region21: #{_lambda_.11} parent=1 // pred_fallthru
      _
    // Predicated region
    $region22: #{_lambda_.11} parent=1 // pred_check
      _
    $region23: #{_lambda_.11} parent=1 // pred_check_branch
      %25 = sbr.rel (0) target = $region25
    $region24: #{_lambda_.11} parent=1 // pred_region
      _
    $region25: #{_lambda_.11} parent=1 // pred_fallthru
      _
    // Predicated region
    $region26: #{_lambda_.11} parent=1 // pred_check
      _
    $region27: #{_lambda_.11} parent=1 // pred_check_branch
      %27 = sbr.rel (0) target = $region29
    $region28: #{_lambda_.11} parent=1 // pred_region
      _
    $region29: #{_lambda_.11} parent=1 // pred_fallthru
      _
    // Predicated region
    $region30: #{_lambda_.11} parent=1 // pred_check
      _
    $region31: #{_lambda_.11} parent=1 // pred_check_branch
      %29 = sbr.rel (0) target = $region33
    $region32: #{_lambda_.11} parent=1 // pred_region
      _
    $region33: #{_lambda_.11} parent=1 // pred_fallthru
      _
    %v31 = vld [vmem:[%s0] sm:$0xf]
    %v32 = vld [vmem:[%s0 + $0x4] sm:$0xf]
    %v33 = vunpack.c.l.bf16 %v31
    %v34 = vunpack.c.l.bf16 %v32
    %v35 = vld [vmem:[%s1] sm:$0xf]
    %v36 = vld [vmem:[%s1 + $0x4] sm:$0xf]
    %v37 = vunpack.c.l.bf16 %v35
    %v38 = vunpack.c.l.bf16 %v36
    %v39 = vld [vmem:[%s3] sm:$0x1]
    %v41 = vlaneseq
    %v42 = vshrl.u32 %v41, 7
    %v43 = vsub.s32 0, %v42
    %v44 = vrot.slane %v39, %v43
    %v46 = vmul.f32 %v37, %v44
    %v47 = vmul.f32 %v38, %v44
    %v48 = vadd.f32 %v33, %v46
    %v49 = vadd.f32 %v34, %v47
    %v50 = vpack.c.bf16 %v49, %v48
    %v51 = vld [vmem:[%s4] sm:$0x1]
    %v53 = vlaneseq
    %v54 = vshrl.u32 %v53, 7
    %v55 = vsub.s32 0, %v54
    %v56 = vrot.slane %v51, %v55
    %v58 = vmul.f32 %v37, %v56
    %v59 = vmul.f32 %v38, %v56
    %v60 = vadd.f32 %v33, %v58
    %v61 = vadd.f32 %v34, %v59
    %v62 = vpack.c.bf16 %v61, %v60
    %v63 = vld [vmem:[%s5] sm:$0xf]
    %v64 = vld [vmem:[%s5 + $0x4] sm:$0xf]
    %v65 = vld [vmem:[%s5 + $0x8] sm:$0xf]
    %v66 = vld [vmem:[%s5 + $0xc] sm:$0xf]
    %v71 = vunpack.c.l.b16 %v63
    %v72 = vunpack.c.l.b16 %v64
    %v73 = vunpack.c.l.b16 %v65
    %v74 = vunpack.c.l.b16 %v66
    %v75 = vpack.c.b16 %v72, %v71
    %v76 = vpack.c.b16 %v74, %v73
    %vm79 = vcmask 261120
    %v81 = vsel %vm79, %v50, 0
    %83 = vmatprep.subr.bf16.mxu0 0
    %84 = vmatpush1.bf16.msra.mxu0 0
    %85 = vmatprep.subr.bf16.mxu0 0
    %86 = vmatpush1.bf16.msra.mxu0 0
    %87 = vmatprep.subr.bf16.mxu0 0
    %88 = vmatpush1.bf16.msra.mxu0 0
    %89 = vmatprep.subr.bf16.mxu0 0
    %90 = vmatpush1.bf16.msra.mxu0 0
    %91 = vmatprep.subr.bf16.mxu0 0
    %92 = vmatpush1.bf16.msra.mxu0 0
    %93 = vmatprep.subr.bf16.mxu0 0
    %94 = vmatpush1.bf16.msra.mxu0 0
    %95 = vmatprep.subr.bf16.mxu0 0
    %96 = vmatpush1.bf16.msra.mxu0 %v76
    %97 = vmatprep.subr.bf16.mxu0 0
    %98 = vmatpush1.bf16.msra.mxu0 %v75
    %99 = vmatprep.subr.bf16.mxu0 0
    %100 = vmatpush2.bf16.msra.mxu0 0
    %101 = vmatprep.subr.bf16.mxu0 0
    %102 = vmatpush2.bf16.msra.mxu0 0
    %103 = vmatprep.subr.bf16.mxu0 0
    %104 = vmatpush2.bf16.msra.mxu0 0
    %105 = vmatprep.subr.bf16.mxu0 0
    %106 = vmatpush2.bf16.msra.mxu0 0
    %107 = vmatprep.subr.bf16.mxu0 0
    %108 = vmatpush2.bf16.msra.mxu0 0
    %109 = vmatprep.subr.bf16.mxu0 0
    %110 = vmatpush2.bf16.msra.mxu0 0
    %111 = vmatprep.subr.bf16.mxu0 0
    %112 = vmatpush2.bf16.msra.mxu0 0
    %113 = vmatprep.subr.bf16.mxu0 0
    %114 = vmatpush2.bf16.msra.mxu0 0
    %115 = vmatprep.mubr.bf16.mxu0 0
    %116 = vmatmul.mubr.bf16.gmra.mxu0 %v81
    %v117 = vpop.f32.mrf.mxu0
    %v118 = vadd.f32 0.0, %v117
    %v119 = vpop.f32.mrf.mxu0
    %v120 = vpop.f32.mrf.mxu0
    %v121 = vadd.f32 0.0, %v120
    %v122 = vpop.f32.mrf.mxu0
    %123 = vdwg.mxu0
    %v124 = vmax.f32 %v118, 0.0
    %v125 = vmax.f32 %v121, 0.0
    %v126 = vmul.f32 %v124, %v124
    %v127 = vmul.f32 %v125, %v125
    %v128 = vpack.c.bf16 %v127, %v126
    %v129 = vld [vmem:[%s6] sm:$0xf]
    %v130 = vld [vmem:[%s6 + $0x4] sm:$0xf]
    %v131 = vld [vmem:[%s6 + $0x8] sm:$0xf]
    %v132 = vld [vmem:[%s6 + $0xc] sm:$0xf]
    %v133 = vld [vmem:[%s6 + $0x10] sm:$0xf]
    %v134 = vld [vmem:[%s6 + $0x14] sm:$0xf]
    %v135 = vld [vmem:[%s6 + $0x18] sm:$0xf]
    %v136 = vld [vmem:[%s6 + $0x1c] sm:$0xf]
    %v145 = vunpack.c.l.b16 %v129
    %v146 = vunpack.c.l.b16 %v130
    %v147 = vunpack.c.l.b16 %v131
    %v148 = vunpack.c.l.b16 %v132
    %v149 = vunpack.c.l.b16 %v133
    %v150 = vunpack.c.l.b16 %v134
    %v151 = vunpack.c.l.b16 %v135
    %v152 = vunpack.c.l.b16 %v136
    %v153 = vpack.c.b16 %v146, %v145
    %v154 = vpack.c.b16 %v148, %v147
    %v155 = vpack.c.b16 %v150, %v149
    %v156 = vpack.c.b16 %v152, %v151
    %vm161 = vcmask 523264
    %v163 = vsel %vm161, %v128, 0
    %165 = vmatprep.subr.bf16.mxu0 0
    %166 = vmatpush1.bf16.msra.mxu0 0
    %167 = vmatprep.subr.bf16.mxu0 0
    %168 = vmatpush1.bf16.msra.mxu0 0
    %169 = vmatprep.subr.bf16.mxu0 0
    %170 = vmatpush1.bf16.msra.mxu0 0
    %171 = vmatprep.subr.bf16.mxu0 0
    %172 = vmatpush1.bf16.msra.mxu0 0
    %173 = vmatprep.subr.bf16.mxu0 0
    %174 = vmatpush1.bf16.msra.mxu0 %v156
    %175 = vmatprep.subr.bf16.mxu0 0
    %176 = vmatpush1.bf16.msra.mxu0 %v155
    %177 = vmatprep.subr.bf16.mxu0 0
    %178 = vmatpush1.bf16.msra.mxu0 %v154
    %179 = vmatprep.subr.bf16.mxu0 0
    %180 = vmatpush1.bf16.msra.mxu0 %v153
    %181 = vmatprep.subr.bf16.mxu0 0
    %182 = vmatpush2.bf16.msra.mxu0 0
    %183 = vmatprep.subr.bf16.mxu0 0
    %184 = vmatpush2.bf16.msra.mxu0 0
    %185 = vmatprep.subr.bf16.mxu0 0
    %186 = vmatpush2.bf16.msra.mxu0 0
    %187 = vmatprep.subr.bf16.mxu0 0
    %188 = vmatpush2.bf16.msra.mxu0 0
    %189 = vmatprep.subr.bf16.mxu0 0
    %190 = vmatpush2.bf16.msra.mxu0 0
    %191 = vmatprep.subr.bf16.mxu0 0
    %192 = vmatpush2.bf16.msra.mxu0 0
    %193 = vmatprep.subr.bf16.mxu0 0
    %194 = vmatpush2.bf16.msra.mxu0 0
    %195 = vmatprep.subr.bf16.mxu0 0
    %196 = vmatpush2.bf16.msra.mxu0 0
    %197 = vmatprep.mubr.bf16.mxu0 0
    %198 = vmatmul.mubr.bf16.gmra.mxu0 %v163
    %v199 = vpop.f32.mrf.mxu0
    %v200 = vadd.f32 0.0, %v199
    %v201 = vpop.f32.mrf.mxu0
    %v202 = vpop.f32.mrf.mxu0
    %v203 = vadd.f32 0.0, %v202
    %v204 = vpop.f32.mrf.mxu0
    %205 = vdwg.mxu0
    %v206 = vld [vmem:[%s7] sm:$0xf]
    %v207 = vld [vmem:[%s7 + $0x4] sm:$0xf]
    %v208 = vld [vmem:[%s7 + $0x8] sm:$0xf]
    %v209 = vld [vmem:[%s7 + $0xc] sm:$0xf]
    %v214 = vunpack.c.l.b16 %v206
    %v215 = vunpack.c.l.b16 %v207
    %v216 = vunpack.c.l.b16 %v208
    %v217 = vunpack.c.l.b16 %v209
    %v218 = vpack.c.b16 %v215, %v214
    %v219 = vpack.c.b16 %v217, %v216
    %v223 = vsel %vm79, %v62, 0
    %225 = vmatprep.subr.bf16.mxu0 0
    %226 = vmatpush1.bf16.msra.mxu0 0
    %227 = vmatprep.subr.bf16.mxu0 0
    %228 = vmatpush1.bf16.msra.mxu0 0
    %229 = vmatprep.subr.bf16.mxu0 0
    %230 = vmatpush1.bf16.msra.mxu0 0
    %231 = vmatprep.subr.bf16.mxu0 0
    %232 = vmatpush1.bf16.msra.mxu0 0
    %233 = vmatprep.subr.bf16.mxu0 0
    %234 = vmatpush1.bf16.msra.mxu0 0
    %235 = vmatprep.subr.bf16.mxu0 0
    %236 = vmatpush1.bf16.msra.mxu0 0
    %237 = vmatprep.subr.bf16.mxu0 0
    %238 = vmatpush1.bf16.msra.mxu0 %v219
    %239 = vmatprep.subr.bf16.mxu0 0
    %240 = vmatpush1.bf16.msra.mxu0 %v218
    %241 = vmatprep.subr.bf16.mxu0 0
    %242 = vmatpush2.bf16.msra.mxu0 0
    %243 = vmatprep.subr.bf16.mxu0 0
    %244 = vmatpush2.bf16.msra.mxu0 0
    %245 = vmatprep.subr.bf16.mxu0 0
    %246 = vmatpush2.bf16.msra.mxu0 0
    %247 = vmatprep.subr.bf16.mxu0 0
    %248 = vmatpush2.bf16.msra.mxu0 0
    %249 = vmatprep.subr.bf16.mxu0 0
    %250 = vmatpush2.bf16.msra.mxu0 0
    %251 = vmatprep.subr.bf16.mxu0 0
    %252 = vmatpush2.bf16.msra.mxu0 0
    %253 = vmatprep.subr.bf16.mxu0 0
    %254 = vmatpush2.bf16.msra.mxu0 0
    %255 = vmatprep.subr.bf16.mxu0 0
    %256 = vmatpush2.bf16.msra.mxu0 0
    %257 = vmatprep.mubr.bf16.mxu0 0
    %258 = vmatmul.mubr.bf16.gmra.mxu0 %v223
    %v259 = vpop.f32.mrf.mxu0
    %v260 = vadd.f32 0.0, %v259
    %v261 = vpop.f32.mrf.mxu0
    %v262 = vpop.f32.mrf.mxu0
    %v263 = vadd.f32 0.0, %v262
    %v264 = vpop.f32.mrf.mxu0
    %265 = vdwg.mxu0
    %v266 = vsub.f32 0.0, %v260
    %v267 = vsub.f32 0.0, %v263
    %v268 = vmul.f32 %v266, 1.442695
    %v269 = vpow.pop %v268
    %v270 = vmul.f32 %v267, 1.442695
    %v271 = vpow.pop %v270
    %v272 = vadd.f32 %v269, 1.0
    %v273 = vadd.f32 %v271, 1.0
    %v274 = vrcp.pop %v272
    %v275 = vrcp.pop %v273
    %v276 = vld [vmem:[%s2] sm:$0xff]
    %v277 = vld [vmem:[%s2 + $0x8] sm:$0xff]
    %v278 = vmul.f32 %v200, %v274
    %v279 = vmul.f32 %v203, %v275
    %v280 = vadd.f32 %v276, %v278
    %v281 = vadd.f32 %v277, %v279
    %282 = vst.msk [vmem:[#allocation2] sm:$0xff] %vm79, %v280
    %283 = vst.msk [vmem:[#allocation2 + $0x8] sm:$0xff] %vm79, %v281
    // Predicated region
    $region34: #{_lambda_.11} parent=1 // pred_check
      _
    $region35: #{_lambda_.11} parent=1 // pred_check_branch
      %285 = sbr.rel (0) target = $region37
    $region36: #{_lambda_.11} parent=1 // pred_region
      %s287 = ssub.s32 256, 256
      %288 = vsyncadd [#allocation3], %s287
      %s289 = sshll.u32 [#allocation2], 4
      %s290 = int_to_ptr.vmem [resolvable:$true] %s289
      %295 = dma.vmem_to_hbm [thread:$0]  %s290, 256, %s8, [#allocation3], 128, 128, 8
    $region37: #{_lambda_.11} parent=1 // pred_fallthru
      _
    // Predicated region
    $region38: #{_lambda_.11} parent=1 // pred_check
      _
    $region39: #{_lambda_.11} parent=1 // pred_check_branch
      %297 = sbr.rel (0) target = $region41
    $region40: #{_lambda_.11} parent=1 // pred_region
      %298 = dma.done [#allocation3], 256
    $region41: #{_lambda_.11} parent=1 // pred_fallthru
      _
    %299 = vsyncpa [#allocation3], 1

</llo_original>
